<compile_context>
chip_gen: v5e
topology: v5e:2x2
jax: 0.10.0
libtpu: 0.0.40
codegen_flags: <defaults>
</compile_context>

<pallas_src>
import functools
import math

import jax
import jax.numpy as jnp
import numpy as np
from jax.experimental import pallas as pl
from jax.experimental.pallas import tpu as pltpu

_LANE = 128


def _round_up(x, m):
    return (x + m - 1) // m * m


def _channel_pad(cin):
    """Smallest padded per-column channel count that tiles 128 lanes cleanly."""
    if _LANE % cin == 0:
        return cin
    return _round_up(cin, _LANE)


def _halo_cols(pw, cp):
    """Halo width in columns: >= pw and lane-aligned (halo*cp % 128 == 0)."""
    if pw == 0:
        return 0
    unit = _LANE // math.gcd(_LANE, cp)
    return _round_up(pw, unit)


def _resnet_layer_kernel(x_ref, scale_ref, shift_ref, wb_ref, b_ref, o_ref,
                         xpad_ref, *, use_relu, pad_left_lanes):
    # Per grid step: one image.
    # x_ref:     (H, W*Cp)           f32   NHWC rows, (w, c) fused on lanes
    # scale_ref: (1, W*Cp)           f32   folded BN scale, tiled per w
    # shift_ref: (1, W*Cp)           f32   folded BN shift, tiled per w
    # wb_ref:    (KH, Wp*Cp, W*Cout) bf16  banded (block-Toeplitz over w) weights
    # b_ref:     (1, W*Cout)         f32   conv bias, tiled per w
    # o_ref:     (H, W*Cout)         f32   lane-dense output rows of this image
    # xpad_ref:  (Hp, Wp*Cp)         bf16  scratch: zero-haloed activations
    H, WCp = x_ref.shape
    KH = wb_ref.shape[0]
    Hp, WpCp = xpad_ref.shape
    ph = (Hp - H) // 2
    WCout = o_ref.shape[1]
    pad_right_lanes = WpCp - pad_left_lanes - WCp

    # ---- BatchNorm (folded scale/shift) + ReLU: f32 on the VPU, ONE bf16 cast
    y = x_ref[...] * scale_ref[...] + shift_ref[...]
    if use_relu:
        y = jnp.maximum(y, 0.0)
    y = y.astype(jnp.bfloat16)

    # ---- padded activation plane: zero ONLY the halo, then fill the interior
    if ph > 0:
        xpad_ref[0:ph, :] = jnp.zeros((ph, WpCp), jnp.bfloat16)
        xpad_ref[ph + H:Hp, :] = jnp.zeros((Hp - ph - H, WpCp), jnp.bfloat16)
    if pad_left_lanes > 0:
        xpad_ref[ph:ph + H, 0:pad_left_lanes] = jnp.zeros(
            (H, pad_left_lanes), jnp.bfloat16)
    if pad_right_lanes > 0:
        xpad_ref[ph:ph + H, pad_left_lanes + WCp:WpCp] = jnp.zeros(
            (H, pad_right_lanes), jnp.bfloat16)
    xpad_ref[ph:ph + H, pad_left_lanes:pad_left_lanes + WCp] = y

    # ---- conv = KH banded matmuls on the MXU (bf16 in, f32 acc).
    # lhs row h of slice kh = padded image row h + kh; the banded RHS places
    # conv_w[:, :, kh, kw] at column-block (w - pw + kw + halo, w), so the
    # result lands directly in the lane-dense (H, W*Cout) output layout.
    acc = jnp.broadcast_to(b_ref[...], (H, WCout))     # bias-initialized acc
    for kh in range(KH):
        acc = acc + jnp.dot(xpad_ref[kh:kh + H, :], wb_ref[kh],
                            preferred_element_type=jnp.float32)
    o_ref[...] = acc.astype(o_ref.dtype)


def make_resnet_layer_params(conv_w, conv_b, *, width):
    """One-time prep (per conv weight): banded bf16 conv weights + tiled bias.

    Host-side numpy; call once and reuse the returned arrays for every forward
    call -- the band depends only on conv_w and the spatial width, not on x.
    """
    conv_w = np.asarray(jax.device_get(conv_w), np.float32)
    conv_b = np.asarray(jax.device_get(conv_b), np.float32)
    Cout, Cin, KH, KW = conv_w.shape
    W = int(width)
    assert KH % 2 == 1 and KW % 2 == 1, "padding='same' implemented for odd kernels"
    Cp = _channel_pad(Cin)
    pw = (KW - 1) // 2
    halo = _halo_cols(pw, Cp)                      # lane-aligned w-halo columns
    Wp = halo + W + halo
    assert (W * Cp) % _LANE == 0, "W*Cp must be a multiple of 128 (lane-dense input)"
    assert (W * Cout) % _LANE == 0, "W*Cout must be a multiple of 128 (lane-dense output)"

    # wb[kh, p*Cp + ci, w*Cout + co] = conv_w[co, ci, kh, kw],
    # with padded column p = w - pw + kw + halo (halo columns are zero inputs).
    w_t = np.transpose(conv_w, (2, 3, 1, 0))       # (KH, KW, Cin, Cout)
    wb = np.zeros((KH, Wp * Cp, W * Cout), np.float32)
    for w in range(W):
        for kw in range(KW):
            p = w - pw + kw + halo
            wb[:, p * Cp:p * Cp + Cin, w * Cout:(w + 1) * Cout] = w_t[:, kw]
    wb = jnp.asarray(wb, dtype=jnp.bfloat16)       # (KH, Wp*Cp, W*Cout)
    bias_t = jnp.asarray(np.tile(conv_b, W).reshape(1, W * Cout), jnp.float32)
    return wb, bias_t


def resnet_layer_forward(x_nchw, gamma, beta, wb, bias_t, *, eps=1e-5,
                         use_relu=True):
    """ResnetLayer forward.  x_nchw: (N, Cin, H, W); (wb, bias_t) come from
    make_resnet_layer_params() (built once, reused every call)."""
    N, Cin, H, W = x_nchw.shape
    KH = wb.shape[0]
    Cp = _channel_pad(Cin)
    Wp = wb.shape[1] // Cp
    Cout = bias_t.shape[1] // W
    ph = (KH - 1) // 2
    Hp = H + 2 * ph
    halo_lanes = (Wp - W) // 2 * Cp

    assert wb.shape[1] == Wp * Cp and wb.shape[2] == W * Cout, "wb/shape mismatch"
    assert H % 8 == 0, "H must be a multiple of 8 (sublane-aligned row blocks)"
    assert (W * Cp) % _LANE == 0 and (W * Cout) % _LANE == 0, "lane-dense layout"

    x = jnp.transpose(x_nchw.astype(jnp.float32), (0, 2, 3, 1))   # NHWC

    # --- BatchNorm2d (training mode) batch stats: two-pass (stable), computed
    #     from the already-transposed activations so XLA fuses with the layout.
    mean = jnp.mean(x, axis=(0, 1, 2))
    var = jnp.mean(jnp.square(x - mean), axis=(0, 1, 2))          # biased variance
    inv_std = jax.lax.rsqrt(var + eps)
    scale = gamma.astype(jnp.float32) * inv_std
    shift = beta.astype(jnp.float32) - mean * scale
    # TODO(synk): running_mean / running_var buffer updates are not produced.

    scale_t = jnp.tile(jnp.pad(scale, (0, Cp - Cin)), W).reshape(1, W * Cp)
    shift_t = jnp.tile(jnp.pad(shift, (0, Cp - Cin)), W).reshape(1, W * Cp)

    if Cp > Cin:
        x = jnp.pad(x, ((0, 0), (0, 0), (0, 0), (0, Cp - Cin)))
    x_in = x.reshape(N * H, W * Cp)                               # lane-dense

    kernel = functools.partial(_resnet_layer_kernel, use_relu=use_relu,
                               pad_left_lanes=halo_lanes)

    # VMEM working set: resident band + double-buffered x/out blocks + small
    # params + bf16 scratch.  Set the limit explicitly (v7x has 64 MiB/TC).
    vmem_est = (wb.size * 2
                + 2 * (H * W * Cp * 4 + H * W * Cout * 4)
                + 2 * (2 * W * Cp * 4 + W * Cout * 4)
                + Hp * Wp * Cp * 2)
    vmem_limit = int(min(max(4 * vmem_est, 16 * 1024 * 1024), 48 * 1024 * 1024))

    def _wb_spec():
        # Constant index_map -> band stays resident; don't double-buffer it.
        try:
            return pl.BlockSpec((KH, Wp * Cp, W * Cout), lambda n: (0, 0, 0),
                                pipeline_mode=pl.Buffered(1))
        except (AttributeError, TypeError):   # fallback: default buffering
            return pl.BlockSpec((KH, Wp * Cp, W * Cout), lambda n: (0, 0, 0))

    out2d = pl.pallas_call(
        kernel,
        out_shape=jax.ShapeDtypeStruct((N * H, W * Cout), jnp.float32),
        grid_spec=pltpu.PrefetchScalarGridSpec(
            num_scalar_prefetch=0,
            grid=(N,),                        # one image per step, pipelined
            in_specs=[
                pl.BlockSpec((H, W * Cp), lambda n: (n, 0)),
                pl.BlockSpec((1, W * Cp), lambda n: (0, 0)),
                pl.BlockSpec((1, W * Cp), lambda n: (0, 0)),
                _wb_spec(),
                pl.BlockSpec((1, W * Cout), lambda n: (0, 0)),
            ],
            out_specs=pl.BlockSpec((H, W * Cout), lambda n: (n, 0)),
            scratch_shapes=[
                pltpu.VMEM((Hp, Wp * Cp), jnp.bfloat16),
            ],
        ),
        compiler_params=pltpu.CompilerParams(
            dimension_semantics=("parallel",),
            vmem_limit_bytes=vmem_limit),
    )(x_in, scale_t, shift_t, wb, bias_t)

    # (N*H, W*Cout) -> NCHW (pure layout plumbing).
    return jnp.transpose(out2d.reshape(N, H, W, Cout), (0, 3, 1, 2))


def _reference(x, gamma, beta, conv_w, conv_b, *, eps=1e-5, use_relu=True):
    """Pure-JAX f32 reference matching the PyTorch module (training-mode BN)."""
    mean = jnp.mean(x, axis=(0, 2, 3), keepdims=True)
    var = jnp.mean(jnp.square(x - mean), axis=(0, 2, 3), keepdims=True)
    y = (x - mean) * jax.lax.rsqrt(var + eps)
    y = y * gamma[None, :, None, None] + beta[None, :, None, None]
    if use_relu:
        y = jnp.maximum(y, 0.0)
    out = jax.lax.conv_general_dilated(
        y, conv_w, window_strides=(1, 1), padding="SAME",
        dimension_numbers=("NCHW", "OIHW", "NCHW"))
    return out + conv_b[None, :, None, None]


if __name__ == "__main__":
    # Small shapes consistent with the module defaults (in=64, out=16, k=3).
    N, Cin, H, W = 2, 64, 16, 16
    Cout, K = 16, 3

    key = jax.random.PRNGKey(0)
    kx, kw, kb = jax.random.split(key, 3)

    x = jax.random.normal(kx, (N, Cin, H, W), dtype=jnp.float32)

    # BatchNorm2d(affine=True) init -> weight=1, bias=0.
    gamma = jnp.ones((Cin,), jnp.float32)
    beta = jnp.zeros((Cin,), jnp.float32)
    conv_w = 0.05 * jax.random.normal(kw, (Cout, Cin, K, K), dtype=jnp.float32)
    conv_b = 0.1 * jax.random.normal(kb, (Cout,), dtype=jnp.float32)

    # One-time banded-weight prep (cached; reused by every forward call).
    wb, bias_t = make_resnet_layer_params(conv_w, conv_b, width=W)

    fwd = jax.jit(resnet_layer_forward)
    out = jax.block_until_ready(fwd(x, gamma, beta, wb, bias_t))

    ref = _reference(x, gamma, beta, conv_w, conv_b)
    assert out.shape == (N, Cout, H, W), out.shape
    # bf16 MXU operands (f32 accumulation) -> bf16-level comparison tolerance.
    max_err = float(jnp.max(jnp.abs(out - ref)))
    assert jnp.allclose(out, ref, rtol=2e-2, atol=2e-2), max_err

    print("KERNEL_OK")
</pallas_src>

<mosaic_0001>
module attributes {stable_mosaic.version = 11 : i64} {
  func.func @_resnet_layer_kernel(%arg0: i32, %arg1: memref<16x1024xf32, #tpu.memory_space<vmem>>, %arg2: memref<1x1024xf32, #tpu.memory_space<vmem>>, %arg3: memref<1x1024xf32, #tpu.memory_space<vmem>>, %arg4: memref<3x1280x256xbf16, #tpu.memory_space<vmem>>, %arg5: memref<1x256xf32, #tpu.memory_space<vmem>>, %arg6: memref<16x256xf32, #tpu.memory_space<vmem>>, %arg7: memref<18x1280xbf16, #tpu.memory_space<vmem>>) attributes {dimension_semantics = [#tpu.dimension_semantics<parallel>], iteration_bounds = array<i64: 2>, scalar_prefetch = 0 : i64, scratch_operands = 1 : i64, tpu.core_type = #tpu.core_type<tc>, window_params = [{transform_indices = @transform_0, window_bounds = array<i64: 16, 1024>}, {pipeline_mode = #tpu.pipeline_mode<synchronous>, transform_indices = @transform_1, window_bounds = array<i64: 1, 1024>}, {pipeline_mode = #tpu.pipeline_mode<synchronous>, transform_indices = @transform_2, window_bounds = array<i64: 1, 1024>}, {pipeline_mode = #tpu.pipeline_mode<synchronous>, transform_indices = @transform_3, window_bounds = array<i64: 3, 1280, 256>}, {pipeline_mode = #tpu.pipeline_mode<synchronous>, transform_indices = @transform_4, window_bounds = array<i64: 1, 256>}, {transform_indices = @transform_5, window_bounds = array<i64: 16, 256>}]} {
    %c0 = arith.constant 0 : index
    %c0_0 = arith.constant 0 : index
    %0 = vector.load %arg1[%c0, %c0_0] : memref<16x1024xf32, #tpu.memory_space<vmem>>, vector<16x1024xf32>
    %c0_1 = arith.constant 0 : index
    %c0_2 = arith.constant 0 : index
    %1 = vector.load %arg2[%c0_1, %c0_2] : memref<1x1024xf32, #tpu.memory_space<vmem>>, vector<1x1024xf32>
    %2 = vector.broadcast %1 : vector<1x1024xf32> to vector<16x1024xf32>
    %3 = arith.mulf %0, %2 : vector<16x1024xf32>
    %c0_3 = arith.constant 0 : index
    %c0_4 = arith.constant 0 : index
    %4 = vector.load %arg3[%c0_3, %c0_4] : memref<1x1024xf32, #tpu.memory_space<vmem>>, vector<1x1024xf32>
    %5 = vector.broadcast %4 : vector<1x1024xf32> to vector<16x1024xf32>
    %6 = arith.addf %3, %5 : vector<16x1024xf32>
    %cst = arith.constant 0.000000e+00 : f32
    %7 = vector.broadcast %cst : f32 to vector<16x1024xf32>
    %8 = arith.maximumf %6, %7 : vector<16x1024xf32>
    %9 = arith.truncf %8 : vector<16x1024xf32> to vector<16x1024xbf16>
    %cst_5 = arith.constant 0.000000e+00 : bf16
    %10 = vector.broadcast %cst_5 : bf16 to vector<1x1280xbf16>
    %c0_6 = arith.constant 0 : index
    %c0_7 = arith.constant 0 : index
    %11 = vector.load %arg7[%c0_6, %c0_7] : memref<18x1280xbf16, #tpu.memory_space<vmem>>, vector<1x1280xbf16>
    tpu.vector_store %arg7[%c0_6, %c0_7], %10 {strides = array<i32>} : memref<18x1280xbf16, #tpu.memory_space<vmem>>, vector<1x1280xbf16>,
    %cst_8 = arith.constant 0.000000e+00 : bf16
    %12 = vector.broadcast %cst_8 : bf16 to vector<1x1280xbf16>
    %c17 = arith.constant 17 : index
    %c0_9 = arith.constant 0 : index
    %13 = vector.load %arg7[%c17, %c0_9] : memref<18x1280xbf16, #tpu.memory_space<vmem>>, vector<1x1280xbf16>
    tpu.vector_store %arg7[%c17, %c0_9], %12 {strides = array<i32>} : memref<18x1280xbf16, #tpu.memory_space<vmem>>, vector<1x1280xbf16>,
    %cst_10 = arith.constant 0.000000e+00 : bf16
    %14 = vector.broadcast %cst_10 : bf16 to vector<16x128xbf16>
    %c1 = arith.constant 1 : index
    %c0_11 = arith.constant 0 : index
    %15 = vector.load %arg7[%c1, %c0_11] : memref<18x1280xbf16, #tpu.memory_space<vmem>>, vector<16x128xbf16>
    tpu.vector_store %arg7[%c1, %c0_11], %14 {strides = array<i32>} : memref<18x1280xbf16, #tpu.memory_space<vmem>>, vector<16x128xbf16>,
    %cst_12 = arith.constant 0.000000e+00 : bf16
    %16 = vector.broadcast %cst_12 : bf16 to vector<16x128xbf16>
    %c1_13 = arith.constant 1 : index
    %c1152 = arith.constant 1152 : index
    %17 = vector.load %arg7[%c1_13, %c1152] : memref<18x1280xbf16, #tpu.memory_space<vmem>>, vector<16x128xbf16>
    tpu.vector_store %arg7[%c1_13, %c1152], %16 {strides = array<i32>} : memref<18x1280xbf16, #tpu.memory_space<vmem>>, vector<16x128xbf16>,
    %c1_14 = arith.constant 1 : index
    %c128 = arith.constant 128 : index
    %18 = vector.load %arg7[%c1_14, %c128] : memref<18x1280xbf16, #tpu.memory_space<vmem>>, vector<16x1024xbf16>
    tpu.vector_store %arg7[%c1_14, %c128], %9 {strides = array<i32>} : memref<18x1280xbf16, #tpu.memory_space<vmem>>, vector<16x1024xbf16>,
    %c0_15 = arith.constant 0 : index
    %c0_16 = arith.constant 0 : index
    %19 = vector.load %arg5[%c0_15, %c0_16] : memref<1x256xf32, #tpu.memory_space<vmem>>, vector<1x256xf32>
    %20 = vector.shape_cast %19 : vector<1x256xf32> to vector<1x256xf32>
    %21 = vector.broadcast %20 : vector<1x256xf32> to vector<16x256xf32>
    %c0_17 = arith.constant 0 : index
    %c0_18 = arith.constant 0 : index
    %22 = vector.load %arg7[%c0_17, %c0_18] : memref<18x1280xbf16, #tpu.memory_space<vmem>>, vector<16x1280xbf16>
    %c0_19 = arith.constant 0 : index
    %c0_20 = arith.constant 0 : index
    %c0_21 = arith.constant 0 : index
    %23 = vector.load %arg4[%c0_19, %c0_20, %c0_21] : memref<3x1280x256xbf16, #tpu.memory_space<vmem>>, vector<1x1280x256xbf16>
    %24 = vector.shape_cast %23 : vector<1x1280x256xbf16> to vector<1280x256xbf16>
    %cst_22 = arith.constant dense<0.000000e+00> : vector<16x256xf32>
    %25 = tpu.matmul %22, %24, %cst_22 {dimension_numbers = #tpu.dot_dimension_numbers<[1], [0], [0], [1], [0, 0, 1, 1], [], []>} : vector<16x1280xbf16>, vector<1280x256xbf16>, vector<16x256xf32> -> vector<16x256xf32>
    %26 = arith.addf %21, %25 : vector<16x256xf32>
    %c1_23 = arith.constant 1 : index
    %c0_24 = arith.constant 0 : index
    %27 = vector.load %arg7[%c1_23, %c0_24] : memref<18x1280xbf16, #tpu.memory_space<vmem>>, vector<16x1280xbf16>
    %c1_25 = arith.constant 1 : index
    %c0_26 = arith.constant 0 : index
    %c0_27 = arith.constant 0 : index
    %28 = vector.load %arg4[%c1_25, %c0_26, %c0_27] : memref<3x1280x256xbf16, #tpu.memory_space<vmem>>, vector<1x1280x256xbf16>
    %29 = vector.shape_cast %28 : vector<1x1280x256xbf16> to vector<1280x256xbf16>
    %cst_28 = arith.constant dense<0.000000e+00> : vector<16x256xf32>
    %30 = tpu.matmul %27, %29, %cst_28 {dimension_numbers = #tpu.dot_dimension_numbers<[1], [0], [0], [1], [0, 0, 1, 1], [], []>} : vector<16x1280xbf16>, vector<1280x256xbf16>, vector<16x256xf32> -> vector<16x256xf32>
    %31 = arith.addf %26, %30 : vector<16x256xf32>
    %c2 = arith.constant 2 : index
    %c0_29 = arith.constant 0 : index
    %32 = vector.load %arg7[%c2, %c0_29] : memref<18x1280xbf16, #tpu.memory_space<vmem>>, vector<16x1280xbf16>
    %c2_30 = arith.constant 2 : index
    %c0_31 = arith.constant 0 : index
    %c0_32 = arith.constant 0 : index
    %33 = vector.load %arg4[%c2_30, %c0_31, %c0_32] : memref<3x1280x256xbf16, #tpu.memory_space<vmem>>, vector<1x1280x256xbf16>
    %34 = vector.shape_cast %33 : vector<1x1280x256xbf16> to vector<1280x256xbf16>
    %cst_33 = arith.constant dense<0.000000e+00> : vector<16x256xf32>
    %35 = tpu.matmul %32, %34, %cst_33 {dimension_numbers = #tpu.dot_dimension_numbers<[1], [0], [0], [1], [0, 0, 1, 1], [], []>} : vector<16x1280xbf16>, vector<1280x256xbf16>, vector<16x256xf32> -> vector<16x256xf32>
    %36 = arith.addf %31, %35 : vector<16x256xf32>
    %c0_34 = arith.constant 0 : index
    %c0_35 = arith.constant 0 : index
    %37 = vector.load %arg6[%c0_34, %c0_35] : memref<16x256xf32, #tpu.memory_space<vmem>>, vector<16x256xf32>
    tpu.vector_store %arg6[%c0_34, %c0_35], %36 {strides = array<i32>} : memref<16x256xf32, #tpu.memory_space<vmem>>, vector<16x256xf32>,
    return
  }
  func.func @transform_0(%arg0: i32) -> (i32, i32) {
    %c0_i32 = arith.constant 0 : i32
    %c0_i32_0 = arith.constant 0 : i32
    return %arg0, %c0_i32 : i32, i32
  }
  func.func @transform_1(%arg0: i32) -> (i32, i32) {
    %c0_i32 = arith.constant 0 : i32
    %c0_i32_0 = arith.constant 0 : i32
    %c0_i32_1 = arith.constant 0 : i32
    return %c0_i32, %c0_i32_0 : i32, i32
  }
  func.func @transform_2(%arg0: i32) -> (i32, i32) {
    %c0_i32 = arith.constant 0 : i32
    %c0_i32_0 = arith.constant 0 : i32
    %c0_i32_1 = arith.constant 0 : i32
    return %c0_i32, %c0_i32_0 : i32, i32
  }
  func.func @transform_3(%arg0: i32) -> (i32, i32, i32) {
    %c0_i32 = arith.constant 0 : i32
    %c0_i32_0 = arith.constant 0 : i32
    %c0_i32_1 = arith.constant 0 : i32
    %c0_i32_2 = arith.constant 0 : i32
    return %c0_i32, %c0_i32_0, %c0_i32_1 : i32, i32, i32
  }
  func.func @transform_4(%arg0: i32) -> (i32, i32) {
    %c0_i32 = arith.constant 0 : i32
    %c0_i32_0 = arith.constant 0 : i32
    %c0_i32_1 = arith.constant 0 : i32
    return %c0_i32, %c0_i32_0 : i32, i32
  }
  func.func @transform_5(%arg0: i32) -> (i32, i32) {
    %c0_i32 = arith.constant 0 : i32
    %c0_i32_0 = arith.constant 0 : i32
    return %arg0, %c0_i32 : i32, i32
  }
}

</mosaic_0001>

<llo_original>
// kernel: tile.18
$region0: #{tile.18}
  #allocation0 [shape = 's32[1]{0}', space=sflag, size = 0x4, scoped, tag = 'scoped memory for tile.18']
  %s0 = inlined_call_operand.vmem [shape: f32[64], index: 0, kind: input, shape index: {}]
  %s1 = inlined_call_operand.vmem [shape: f32[16,64], index: 1, kind: output, shape index: {}]
  // Predicated region
  $region2: #{tile.18} parent=0 // pred_check
    _
  $region3: #{tile.18} parent=0 // pred_check_branch
    %3 = sbr.rel (0) target = $region5
  $region4: #{tile.18} parent=0 // pred_region
    _
  $region5: #{tile.18} parent=0 // pred_fallthru
    _
  %v4 = vld [vmem:[%s0] ss:$0 sm:$0xff]
  %5 = vst [vmem:[%s1] sm:$0xff] %v4
  %s6 = scalar_lea.vmem %s1, 8
  %7 = vst [vmem:[%s6] sm:$0xff] %v4

// kernel: tile.19
$region0: #{tile.19}
  %s0 = inlined_call_operand.vmem [shape: f32[16,64], index: 0, kind: input, shape index: {}]
  %s1 = inlined_call_operand.vmem [shape: f32[1,1024], index: 1, kind: output, shape index: {}]
  $region1: #{tile.19} parent=0
    #allocation0 [shape = 'u8[32768]{0}', space=vmem, size = 0x8000, scoped, tag = 'scoped mem for output reshape']
    %v2 = vld [vmem:[%s0] ss:$2 sm:$0xff]
    %vm3 = vcmask 523264
    %4 = vst.msk [vmem:[#allocation0] ss:$8 sm:$0xf] %vm3, %v2
    %5 = vst.msk [vmem:[#allocation0] ss:$8 sm:$0xf0] %vm3, %v2
    %s6 = scalar_lea.vmem %s0, 1
    %v7 = vld [vmem:[%s6] ss:$2 sm:$0xff]
    %8 = vrot.lane.b32.xlu0 %v7, 64
    %v9 = vpop.permute.xlu0 %8
    %vm10 = vcmask 1048064
    %11 = vst.msk [vmem:[#allocation0] ss:$8 sm:$0xf] %vm10, %v9
    %12 = vst.msk [vmem:[#allocation0] ss:$8 sm:$0xf0] %vm10, %v9
    %s14 = ssub.s32 2, 1
    %v15 = vld [vmem:[#allocation0] sm:%s14]
    %s17 = ssub.s32 2, 1
    %18 = vst [vmem:[%s1] sm:%s17] %v15
    %s19 = scalar_lea.vmem [#allocation0], 8
    %v20 = vld [vmem:[%s19] sm:%s14]
    %s22 = ssub.s32 2, 1
    %s23 = scalar_lea.vmem %s1, 1
    %24 = vst [vmem:[%s23] sm:%s22] %v20
    %s25 = scalar_lea.vmem [#allocation0], 16
    %v26 = vld [vmem:[%s25] sm:%s14]
    %s28 = ssub.s32 2, 1
    %s29 = scalar_lea.vmem %s1, 2
    %30 = vst [vmem:[%s29] sm:%s28] %v26
    %s31 = scalar_lea.vmem [#allocation0], 24
    %v32 = vld [vmem:[%s31] sm:%s14]
    %s34 = ssub.s32 2, 1
    %s35 = scalar_lea.vmem %s1, 3
    %36 = vst [vmem:[%s35] sm:%s34] %v32
    %s37 = scalar_lea.vmem [#allocation0], 32
    %v38 = vld [vmem:[%s37] sm:%s14]
    %s40 = ssub.s32 2, 1
    %s41 = scalar_lea.vmem %s1, 4
    %42 = vst [vmem:[%s41] sm:%s40] %v38
    %s43 = scalar_lea.vmem [#allocation0], 40
    %v44 = vld [vmem:[%s43] sm:%s14]
    %s46 = ssub.s32 2, 1
    %s47 = scalar_lea.vmem %s1, 5
    %48 = vst [vmem:[%s47] sm:%s46] %v44
    %s49 = scalar_lea.vmem [#allocation0], 48
    %v50 = vld [vmem:[%s49] sm:%s14]
    %s52 = ssub.s32 2, 1
    %s53 = scalar_lea.vmem %s1, 6
    %54 = vst [vmem:[%s53] sm:%s52] %v50
    %s55 = scalar_lea.vmem [#allocation0], 56
    %v56 = vld [vmem:[%s55] sm:%s14]
    %s58 = ssub.s32 2, 1
    %s59 = scalar_lea.vmem %s1, 7
    %60 = vst [vmem:[%s59] sm:%s58] %v56

// kernel: resnet_layer_forward.1
$region0: #{resnet_layer_forward.1}
  #allocation0 [shape = 'u32[]', space=smem, size = 0x4, offset = 0x4, fixed_abs, tag = 'smem constant byte address 0x4 - core index']
  #allocation1 [shape = 'u32[72,128]{1,0:T(1,128)}', space=vmem, size = 0x9000, scoped, tag = 'internal scratch']
  #allocation2 [shape = 'bf16[18,1280]{1,0:T(8,128)(2,1)}', space=vmem, size = 0xf000, scoped, tag = 'scratch operand']
  %s0 = inlined_call_operand.vmem [shape: f32[32,1024], index: 0, kind: input, shape index: {}]
  %s1 = inlined_call_operand.vmem [shape: f32[1,1024], index: 1, kind: input, shape index: {}]
  %s2 = inlined_call_operand.vmem [shape: f32[1,1024], index: 2, kind: input, shape index: {}]
  %s3 = inlined_call_operand.hbm [shape: bf16[3,1280,256], index: 3, kind: input, shape index: {}]
  %s4 = inlined_call_operand.hbm [shape: f32[1,256], index: 4, kind: input, shape index: {}]
  %s5 = inlined_call_operand.vmem [shape: f32[32,256], index: 5, kind: output, shape index: {}]
  %s6 = sld [smem:[#allocation0]]
  $region61: #{resnet_layer_forward.1} parent=0
    _
  %s8 = ssub.s32 1, %s6
  %s9 = scalar_select 0, %s8, %s6
  $region1: #{resnet_layer_forward.1} parent=0
    #allocation3 [shape = 'u8[1966080]{0}', space=vmem, size = 0x1e0000, scoped, tag = 'input window, operand 3, single buffered']
    #allocation4 [shape = 's32[2]{0}', space=sflag, size = 0x8, scoped, tag = 'scoped memory for resnet_layer_forward.1']
    #allocation5 [shape = 'u8[1024]{0}', space=vmem, size = 0x400, scoped, tag = 'input window, operand 4, single buffered']
    #allocation6 [shape = 's32[1]{0}', space=sflag, size = 0x4, scoped, tag = 'scoped memory for resnet_layer_forward.1']
    %10 = vsyncpa [#allocation4], 0
    %11 = vsyncpa [#allocation6], 0
    loop: start=0, step=1, limit=4
    $region2: #{resnet_layer_forward.1} parent=1 // loop_pre_header
      _
    $region3: #{resnet_layer_forward.1} parent=1 // loop_header
      %s13 = sphi 0, %s17
      %p14 = scmp.ge.s32.totalorder %s13, 4
      %s23 = sphi 0, %s25
      %s26 = sphi 0, %s23
      %s27 = sphi 0, %s26
      %s43 = sphi 0, %s27
      %s47 = sphi 0, %s47
      %s49 = sphi 0, %s47
      %s50 = sphi 0, %s49
      %s64 = sphi 0, %s50
      %s68 = sphi 0, %s68
      %s70 = sphi 0, %s68
      %s71 = sphi 0, %s70
      %s85 = sphi 0, %s71
      %s89 = sphi 0, %s89
      %s91 = sphi 0, %s89
      %s92 = sphi 0, %s91
      %s106 = sphi 0, %s92
      %s110 = sphi 0, %s110
      %s112 = sphi 0, %s110
      %s113 = sphi 0, %s112
      %s127 = sphi 0, %s113
      %s133 = sphi 0, %s135
      %s136 = sphi 0, %s133
      %s137 = sphi 0, %s136
      %s153 = sphi 0, %s137
    $region4: #{resnet_layer_forward.1} parent=1 // loop_header_branch
      %16 = sbr.rel (%p14) target = $region8
    $region5: #{resnet_layer_forward.1} parent=1 // loop_body
      %s18 = ssub.s32 %s13, 1
      %s19 = ssub.s32 %s13, 2
      %s20 = sadd.s32 %s13, 1
      %s21 = ssub.s32 %s13, %s20
      %p22 = scmp.eq.s32.totalorder %s21, 0
      %s24 = sadd.s32 %s23, 1
      %s25 = scalar_select %p22, %s23, %s24
      %p28 = pneg %p22
      %p29 = scmp.eq.s32.totalorder %s13, 1
      %p30 = por %p28, %p29
      %p31 = scmp.ne.s32.totalorder %s23, %s26
      %p32 = scmp.eq.s32.totalorder %s13, 0
      %p33 = por %p31, %p32
      %p34 = scmp.ne.s32.totalorder %s23, %s26
      %p35 = scmp.eq.s32.totalorder %s18, 1
      %p36 = por %p34, %p35
      %p37 = scmp.ne.s32.totalorder %s26, %s27
      %p38 = scmp.eq.s32.totalorder %s18, 0
      %p39 = por %p37, %p38
      %p40 = scmp.ne.s32.totalorder %s26, %s27
      %p41 = scmp.eq.s32.totalorder %s19, 1
      %p42 = por %p40, %p41
      %p44 = scmp.ne.s32.totalorder %s27, %s43
      %p45 = scmp.eq.s32.totalorder %s19, 0
      %p46 = por %p44, %p45
      %s48 = sadd.s32 %s47, 1
      %p51 = scmp.eq.s32.totalorder %s13, 1
      %p52 = scmp.ne.s32.totalorder %s47, %s49
      %p53 = scmp.eq.s32.totalorder %s13, 0
      %p54 = por %p52, %p53
      %p55 = scmp.ne.s32.totalorder %s47, %s49
      %p56 = scmp.eq.s32.totalorder %s18, 1
      %p57 = por %p55, %p56
      %p58 = scmp.ne.s32.totalorder %s49, %s50
      %p59 = scmp.eq.s32.totalorder %s18, 0
      %p60 = por %p58, %p59
      %p61 = scmp.ne.s32.totalorder %s49, %s50
      %p62 = scmp.eq.s32.totalorder %s19, 1
      %p63 = por %p61, %p62
      %p65 = scmp.ne.s32.totalorder %s50, %s64
      %p66 = scmp.eq.s32.totalorder %s19, 0
      %p67 = por %p65, %p66
      %s69 = sadd.s32 %s68, 1
      %p72 = scmp.eq.s32.totalorder %s13, 1
      %p73 = scmp.ne.s32.totalorder %s68, %s70
      %p74 = scmp.eq.s32.totalorder %s13, 0
      %p75 = por %p73, %p74
      %p76 = scmp.ne.s32.totalorder %s68, %s70
      %p77 = scmp.eq.s32.totalorder %s18, 1
      %p78 = por %p76, %p77
      %p79 = scmp.ne.s32.totalorder %s70, %s71
      %p80 = scmp.eq.s32.totalorder %s18, 0
      %p81 = por %p79, %p80
      %p82 = scmp.ne.s32.totalorder %s70, %s71
      %p83 = scmp.eq.s32.totalorder %s19, 1
      %p84 = por %p82, %p83
      %p86 = scmp.ne.s32.totalorder %s71, %s85
      %p87 = scmp.eq.s32.totalorder %s19, 0
      %p88 = por %p86, %p87
      %s90 = sadd.s32 %s89, 1
      %p93 = scmp.eq.s32.totalorder %s13, 1
      %p94 = scmp.ne.s32.totalorder %s89, %s91
      %p95 = scmp.eq.s32.totalorder %s13, 0
      %p96 = por %p94, %p95
      %p97 = scmp.ne.s32.totalorder %s89, %s91
      %p98 = scmp.eq.s32.totalorder %s18, 1
      %p99 = por %p97, %p98
      %p100 = scmp.ne.s32.totalorder %s91, %s92
      %p101 = scmp.eq.s32.totalorder %s18, 0
      %p102 = por %p100, %p101
      %p103 = scmp.ne.s32.totalorder %s91, %s92
      %p104 = scmp.eq.s32.totalorder %s19, 1
      %p105 = por %p103, %p104
      %p107 = scmp.ne.s32.totalorder %s92, %s106
      %p108 = scmp.eq.s32.totalorder %s19, 0
      %p109 = por %p107, %p108
      %s111 = sadd.s32 %s110, 1
      %p114 = scmp.eq.s32.totalorder %s13, 1
      %p115 = scmp.ne.s32.totalorder %s110, %s112
      %p116 = scmp.eq.s32.totalorder %s13, 0
      %p117 = por %p115, %p116
      %p118 = scmp.ne.s32.totalorder %s110, %s112
      %p119 = scmp.eq.s32.totalorder %s18, 1
      %p120 = por %p118, %p119
      %p121 = scmp.ne.s32.totalorder %s112, %s113
      %p122 = scmp.eq.s32.totalorder %s18, 0
      %p123 = por %p121, %p122
      %p124 = scmp.ne.s32.totalorder %s112, %s113
      %p125 = scmp.eq.s32.totalorder %s19, 1
      %p126 = por %p124, %p125
      %p128 = scmp.ne.s32.totalorder %s113, %s127
      %p129 = scmp.eq.s32.totalorder %s19, 0
      %p130 = por %p128, %p129
      %s131 = ssub.s32 %s13, %s20
      %p132 = scmp.eq.s32.totalorder %s131, 0
      %s134 = sadd.s32 %s133, 1
      %s135 = scalar_select %p132, %s133, %s134
      %p138 = pneg %p132
      %p139 = scmp.eq.s32.totalorder %s13, 1
      %p140 = por %p138, %p139
      %p141 = scmp.ne.s32.totalorder %s133, %s136
      %p142 = scmp.eq.s32.totalorder %s13, 0
      %p143 = por %p141, %p142
      %p144 = scmp.ne.s32.totalorder %s133, %s136
      %p145 = scmp.eq.s32.totalorder %s18, 1
      %p146 = por %p144, %p145
      %p147 = scmp.ne.s32.totalorder %s136, %s137
      %p148 = scmp.eq.s32.totalorder %s18, 0
      %p149 = por %p147, %p148
      %p150 = scmp.ne.s32.totalorder %s136, %s137
      %p151 = scmp.eq.s32.totalorder %s19, 1
      %p152 = por %p150, %p151
      %p154 = scmp.ne.s32.totalorder %s137, %s153
      %p155 = scmp.eq.s32.totalorder %s19, 0
      %p156 = por %p154, %p155
      %p157 = scmp.le.s32.totalorder 1, %s13
      %p158 = scmp.lt.s32.totalorder %s13, 3
      %p159 = pnand %p157, %p158
      %p160 = pneg %p159
      // Predicated region
      $region9: #{resnet_layer_forward.1} parent=5 // pred_check
        _
      $region10: #{resnet_layer_forward.1} parent=5 // pred_check_branch
        %162 = sbr.rel (%p159) target = $region12
      $region11: #{resnet_layer_forward.1} parent=5 // pred_region
        %s163 = ssub.s32 %s13, 1
        // Predicated region
        $region13: #{resnet_layer_forward.1} parent=11 // pred_check
          %p164 = pneg %p60
        $region14: #{resnet_layer_forward.1} parent=11 // pred_check_branch
          %166 = sbr.rel (%p164) target = $region16
        $region15: #{resnet_layer_forward.1} parent=11 // pred_region
          _
        $region16: #{resnet_layer_forward.1} parent=11 // pred_fallthru
          _
        // Predicated region
        $region17: #{resnet_layer_forward.1} parent=11 // pred_check
          %p167 = pneg %p81
        $region18: #{resnet_layer_forward.1} parent=11 // pred_check_branch
          %169 = sbr.rel (%p167) target = $region20
        $region19: #{resnet_layer_forward.1} parent=11 // pred_region
          _
        $region20: #{resnet_layer_forward.1} parent=11 // pred_fallthru
          _
        // Predicated region
        $region21: #{resnet_layer_forward.1} parent=11 // pred_check
          %p170 = pneg %p102
        $region22: #{resnet_layer_forward.1} parent=11 // pred_check_branch
          %172 = sbr.rel (%p170) target = $region24
        $region23: #{resnet_layer_forward.1} parent=11 // pred_region
          %174 = vsyncadd [#allocation4], 0
          %s175 = sshll.u32 %s3, 4
          %s176 = int_to_ptr.hbm [resolvable:$true] %s175
          %s177 = sshll.u32 [#allocation3], 4
          %s178 = int_to_ptr.vmem [resolvable:$true] %s177
          %183 = dma.hbm_to_vmem [thread:$0]  %s176, 61440, %s178, [#allocation4], 128, 128, 8
        $region24: #{resnet_layer_forward.1} parent=11 // pred_fallthru
          _
        // Predicated region
        $region25: #{resnet_layer_forward.1} parent=11 // pred_check
          %p184 = pneg %p123
        $region26: #{resnet_layer_forward.1} parent=11 // pred_check_branch
          %186 = sbr.rel (%p184) target = $region28
        $region27: #{resnet_layer_forward.1} parent=11 // pred_region
          %188 = vsyncadd [#allocation6], 0
          %s190 = sshll.u32 %s4, 4
          %s191 = int_to_ptr.hbm [resolvable:$true] %s190
          %s192 = sshll.u32 [#allocation5], 4
          %s193 = int_to_ptr.vmem [resolvable:$true] %s192
          %195 = dma.hbm_to_vmem [thread:$0]  %s191, 32, %s193, [#allocation6]
        $region28: #{resnet_layer_forward.1} parent=11 // pred_fallthru
          _
      $region12: #{resnet_layer_forward.1} parent=5 // pred_fallthru
        _
      %p196 = scmp.lt.s32.totalorder %s13, 2
      // Predicated region
      $region29: #{resnet_layer_forward.1} parent=5 // pred_check
        %p197 = pneg %p196
      $region30: #{resnet_layer_forward.1} parent=5 // pred_check_branch
        %199 = sbr.rel (%p197) target = $region32
      $region31: #{resnet_layer_forward.1} parent=5 // pred_region
        // Predicated region
        $region33: #{resnet_layer_forward.1} parent=31 // pred_check
          %p200 = pneg %p33
        $region34: #{resnet_layer_forward.1} parent=31 // pred_check_branch
          %202 = sbr.rel (%p200) target = $region36
        $region35: #{resnet_layer_forward.1} parent=31 // pred_region
          %s203 = smul.u32 2, %s13
          %p204 = scmp.lt.s32.totalorder %s203, 3
          %s205 = scalar_select %p204, %s203, 3
          %s206 = smul.addr %s205, 8
          %s207 = smul.addr %s206, 8
          %s208 = scalar_lea.vmem %s0, %s207
          %s209 = smul.u32 2, %s13
        $region36: #{resnet_layer_forward.1} parent=31 // pred_fallthru
          _
      $region32: #{resnet_layer_forward.1} parent=5 // pred_fallthru
        _
      %p210 = scmp.le.s32.totalorder 1, %s13
      %p211 = scmp.lt.s32.totalorder %s13, 3
      %p212 = pnand %p210, %p211
      %p213 = pneg %p212
      // Predicated region
      $region37: #{resnet_layer_forward.1} parent=5 // pred_check
        _
      $region38: #{resnet_layer_forward.1} parent=5 // pred_check_branch
        %215 = sbr.rel (%p212) target = $region40
      $region39: #{resnet_layer_forward.1} parent=5 // pred_region
        %s216 = ssub.s32 %s13, 1
        // Predicated region
        $region41: #{resnet_layer_forward.1} parent=39 // pred_check
          %p217 = pneg %p102
        $region42: #{resnet_layer_forward.1} parent=39 // pred_check_branch
          %219 = sbr.rel (%p217) target = $region44
        $region43: #{resnet_layer_forward.1} parent=39 // pred_region
          %221 = dma.done [#allocation4], 61440
        $region44: #{resnet_layer_forward.1} parent=39 // pred_fallthru
          _
        // Predicated region
        $region45: #{resnet_layer_forward.1} parent=39 // pred_check
          %p222 = pneg %p123
        $region46: #{resnet_layer_forward.1} parent=39 // pred_check_branch
          %224 = sbr.rel (%p222) target = $region48
        $region47: #{resnet_layer_forward.1} parent=39 // pred_region
          %226 = dma.done [#allocation6], 32
        $region48: #{resnet_layer_forward.1} parent=39 // pred_fallthru
          _
        %s227 = smul.u32 2, %s18
        %p228 = scmp.lt.s32.totalorder %s227, 3
        %s229 = scalar_select %p228, %s227, 3
        %s230 = smul.addr %s229, 8
        %s231 = smul.addr %s230, 8
        %s232 = scalar_lea.vmem %s0, %s231
        %p233 = pneg %p39
        %p234 = pneg %p36
        %p235 = pneg %p60
        %p236 = pneg %p57
        %p237 = pneg %p81
        %p238 = pneg %p78
        %p239 = pneg %p102
        %p240 = pneg %p99
        %p241 = pneg %p123
        %p242 = pneg %p120
        %p243 = pneg %p149
        %p244 = pneg %p146
        %s245 = smul.u32 2, %s18
        %p246 = scmp.lt.s32.totalorder %s245, 3
        %s247 = scalar_select %p246, %s245, 3
        %s248 = smul.addr %s247, 2
        %s249 = smul.addr %s248, 8
        %s250 = scalar_lea.vmem %s5, %s249
        %s251 = smul.u32 2, %s18
        %p252 = scmp.lt.s32.totalorder %s251, 3
        %s253 = scalar_select %p252, %s251, 3
        %s254 = smul.addr %s253, 8
        %s255 = smul.addr %s254, 8
        %s256 = scalar_lea.vmem %s0, %s255
        %s257 = smul.u32 2, %s18
        %s258 = smul.u32 2, %s18
        %p259 = scmp.lt.s32.totalorder %s258, 3
        %s260 = scalar_select %p259, %s258, 3
        %s261 = smul.addr %s260, 2
        %s262 = smul.addr %s261, 8
        %s263 = scalar_lea.vmem %s5, %s262
        %s264 = smul.u32 2, %s18
        %v266 = vld [vmem:[%s256] sm:$0xff]
        %v267 = vld [vmem:[%s256 + $0x8] sm:$0xff]
        %v268 = vld [vmem:[%s256 + $0x10] sm:$0xff]
        %v269 = vld [vmem:[%s256 + $0x18] sm:$0xff]
        %v270 = vld [vmem:[%s256 + $0x20] sm:$0xff]
        %v271 = vld [vmem:[%s256 + $0x28] sm:$0xff]
        %v272 = vld [vmem:[%s256 + $0x30] sm:$0xff]
        %v273 = vld [vmem:[%s256 + $0x38] sm:$0xff]
        %v274 = vld [vmem:[%s256 + $0x40] sm:$0xff]
        %v275 = vld [vmem:[%s256 + $0x48] sm:$0xff]
        %v276 = vld [vmem:[%s256 + $0x50] sm:$0xff]
        %v277 = vld [vmem:[%s256 + $0x58] sm:$0xff]
        %v278 = vld [vmem:[%s256 + $0x60] sm:$0xff]
        %v279 = vld [vmem:[%s256 + $0x68] sm:$0xff]
        %v280 = vld [vmem:[%s256 + $0x70] sm:$0xff]
        %v281 = vld [vmem:[%s256 + $0x78] sm:$0xff]
        %v282 = vld [vmem:[%s1] sm:$0xff]
        %v284 = vperm.slane %v282, 0
        %v285 = vperm.slane %v282, 1
        %v286 = vperm.slane %v282, 2
        %v287 = vperm.slane %v282, 3
        %v288 = vperm.slane %v282, 4
        %v289 = vperm.slane %v282, 5
        %v290 = vperm.slane %v282, 6
        %v291 = vperm.slane %v282, 7
        %v300 = vmul.f32 %v266, %v284
        %v301 = vmul.f32 %v267, %v285
        %v302 = vmul.f32 %v268, %v286
        %v303 = vmul.f32 %v269, %v287
        %v304 = vmul.f32 %v270, %v288
        %v305 = vmul.f32 %v271, %v289
        %v306 = vmul.f32 %v272, %v290
        %v307 = vmul.f32 %v273, %v291
        %v308 = vmul.f32 %v274, %v284
        %v309 = vmul.f32 %v275, %v285
        %v310 = vmul.f32 %v276, %v286
        %v311 = vmul.f32 %v277, %v287
        %v312 = vmul.f32 %v278, %v288
        %v313 = vmul.f32 %v279, %v289
        %v314 = vmul.f32 %v280, %v290
        %v315 = vmul.f32 %v281, %v291
        %v316 = vld [vmem:[%s2] sm:$0xff]
        %v318 = vperm.slane %v316, 0
        %v319 = vperm.slane %v316, 1
        %v320 = vperm.slane %v316, 2
        %v321 = vperm.slane %v316, 3
        %v322 = vperm.slane %v316, 4
        %v323 = vperm.slane %v316, 5
        %v324 = vperm.slane %v316, 6
        %v325 = vperm.slane %v316, 7
        %v334 = vadd.f32 %v300, %v318
        %v335 = vadd.f32 %v301, %v319
        %v336 = vadd.f32 %v302, %v320
        %v337 = vadd.f32 %v303, %v321
        %v338 = vadd.f32 %v304, %v322
        %v339 = vadd.f32 %v305, %v323
        %v340 = vadd.f32 %v306, %v324
        %v341 = vadd.f32 %v307, %v325
        %v342 = vadd.f32 %v308, %v318
        %v343 = vadd.f32 %v309, %v319
        %v344 = vadd.f32 %v310, %v320
        %v345 = vadd.f32 %v311, %v321
        %v346 = vadd.f32 %v312, %v322
        %v347 = vadd.f32 %v313, %v323
        %v348 = vadd.f32 %v314, %v324
        %v349 = vadd.f32 %v315, %v325
        %v350 = vmax.f32 %v334, 0.0
        %v351 = vmax.f32 %v335, 0.0
        %v352 = vmax.f32 %v336, 0.0
        %v353 = vmax.f32 %v337, 0.0
        %v354 = vmax.f32 %v338, 0.0
        %v355 = vmax.f32 %v339, 0.0
        %v356 = vmax.f32 %v340, 0.0
        %v357 = vmax.f32 %v341, 0.0
        %v358 = vmax.f32 %v342, 0.0
        %v359 = vmax.f32 %v343, 0.0
        %v360 = vmax.f32 %v344, 0.0
        %v361 = vmax.f32 %v345, 0.0
        %v362 = vmax.f32 %v346, 0.0
        %v363 = vmax.f32 %v347, 0.0
        %v364 = vmax.f32 %v348, 0.0
        %v365 = vmax.f32 %v349, 0.0
        %v366 = vpack.c.bf16 %v351, %v350
        %v367 = vpack.c.bf16 %v353, %v352
        %v368 = vpack.c.bf16 %v355, %v354
        %v369 = vpack.c.bf16 %v357, %v356
        %v370 = vpack.c.bf16 %v359, %v358
        %v371 = vpack.c.bf16 %v361, %v360
        %v372 = vpack.c.bf16 %v363, %v362
        %v373 = vpack.c.bf16 %v365, %v364
        %vm374 = vcmask 1040384
        %vm375 = vsmask.f32 256
        %vm376 = vmand %vm374, %vm375
        %vm377 = vcmask 1044484
        %vm378 = vsmask.f32 4352
        %vm379 = vmand %vm377, %vm378
        %vm380 = vmor %vm379, %vm376
        %v381 = vld [vmem:[#allocation2] sm:$0x11]
        %v382 = vsel %vm380, 0, %v381
        %383 = vst [vmem:[#allocation2] sm:$0x11] %v382
        %v384 = vld [vmem:[#allocation2 + $0x8] sm:$0x11]
        %v385 = vsel %vm380, 0, %v384
        %386 = vst [vmem:[#allocation2 + $0x8] sm:$0x11] %v385
        %v387 = vld [vmem:[#allocation2 + $0x10] sm:$0x11]
        %v388 = vsel %vm380, 0, %v387
        %389 = vst [vmem:[#allocation2 + $0x10] sm:$0x11] %v388
        %v390 = vld [vmem:[#allocation2 + $0x18] sm:$0x11]
        %v391 = vsel %vm380, 0, %v390
        %392 = vst [vmem:[#allocation2 + $0x18] sm:$0x11] %v391
        %v393 = vld [vmem:[#allocation2 + $0x20] sm:$0x11]
        %v394 = vsel %vm380, 0, %v393
        %395 = vst [vmem:[#allocation2 + $0x20] sm:$0x11] %v394
        %vm396 = vsmask.f32 7938
        %vm397 = vmand %vm374, %vm396
        %vm398 = vsmask.f32 7954
        %vm399 = vmand %vm377, %vm398
        %vm400 = vmor %vm399, %vm397
        %v401 = vld [vmem:[#allocation2 + $0x50] sm:$0x11]
        %v402 = vsel %vm400, 0, %v401
        %403 = vst [vmem:[#allocation2 + $0x50] sm:$0x11] %v402
        %v404 = vld [vmem:[#allocation2 + $0x58] sm:$0x11]
        %v405 = vsel %vm400, 0, %v404
        %406 = vst [vmem:[#allocation2 + $0x58] sm:$0x11] %v405
        %v407 = vld [vmem:[#allocation2 + $0x60] sm:$0x11]
        %v408 = vsel %vm400, 0, %v407
        %409 = vst [vmem:[#allocation2 + $0x60] sm:$0x11] %v408
        %v410 = vld [vmem:[#allocation2 + $0x68] sm:$0x11]
        %v411 = vsel %vm400, 0, %v410
        %412 = vst [vmem:[#allocation2 + $0x68] sm:$0x11] %v411
        %v413 = vld [vmem:[#allocation2 + $0x70] sm:$0x11]
        %v414 = vsel %vm400, 0, %v413
        %415 = vst [vmem:[#allocation2 + $0x70] sm:$0x11] %v414
        %vm416 = vcmask 1043456
        %vm417 = vmand %vm416, %vm396
        %v418 = vld [vmem:[#allocation2] sm:$0xf]
        %v419 = vsel %vm417, 0, %v418
        %420 = vst [vmem:[#allocation2] sm:$0xf] %v419
        %421 = vst [vmem:[#allocation2 + $0x28] sm:$0xf] 0
        %v422 = vld [vmem:[#allocation2 + $0x50] sm:$0x1]
        %v423 = vsel %vm376, 0, %v422
        %424 = vst [vmem:[#allocation2 + $0x50] sm:$0x1] %v423
        %v425 = vld [vmem:[#allocation2 + $0x24] sm:$0xf]
        %v426 = vsel %vm417, 0, %v425
        %427 = vst [vmem:[#allocation2 + $0x24] sm:$0xf] %v426
        %428 = vst [vmem:[#allocation2 + $0x4c] sm:$0xf] 0
        %v429 = vld [vmem:[#allocation2 + $0x74] sm:$0x1]
        %v430 = vsel %vm376, 0, %v429
        %431 = vst [vmem:[#allocation2 + $0x74] sm:$0x1] %v430
        %vm432 = vsmask.f32 4368
        %vm433 = vmor %vm375, %vm432
        %v435 = vshrl.u32 %v366, 16
        %v437 = vrot.slane %v435, 7
        %v438 = vshll.u32 %v366, 16
        %v440 = vor.u32 %v437, %v438
        %v442 = vshrl.u32 %v367, 16
        %v444 = vrot.slane %v442, 7
        %v445 = vshll.u32 %v367, 16
        %v447 = vor.u32 %v444, %v445
        %v449 = vshrl.u32 %v368, 16
        %v451 = vrot.slane %v449, 7
        %v452 = vshll.u32 %v368, 16
        %v454 = vor.u32 %v451, %v452
        %v456 = vshrl.u32 %v369, 16
        %v458 = vrot.slane %v456, 7
        %v459 = vshll.u32 %v369, 16
        %v461 = vor.u32 %v458, %v459
        %v462 = vrot.slane %v437, 4
        %v464 = vshrl.u32 %v370, 16
        %v466 = vrot.slane %v464, 7
        %v467 = vshll.u32 %v370, 16
        %v469 = vor.u32 %v466, %v467
        %v470 = vsel %vm433, %v462, %v469
        %v471 = vrot.slane %v444, 4
        %v473 = vshrl.u32 %v371, 16
        %v475 = vrot.slane %v473, 7
        %v476 = vshll.u32 %v371, 16
        %v478 = vor.u32 %v475, %v476
        %v479 = vsel %vm433, %v471, %v478
        %v480 = vrot.slane %v451, 4
        %v482 = vshrl.u32 %v372, 16
        %v484 = vrot.slane %v482, 7
        %v485 = vshll.u32 %v372, 16
        %v487 = vor.u32 %v484, %v485
        %v488 = vsel %vm433, %v480, %v487
        %v489 = vrot.slane %v458, 4
        %v491 = vshrl.u32 %v373, 16
        %v493 = vrot.slane %v491, 7
        %v494 = vshll.u32 %v373, 16
        %v496 = vor.u32 %v493, %v494
        %v497 = vsel %vm433, %v489, %v496
        %v498 = vrot.slane %v466, 4
        %v499 = vrot.slane %v475, 4
        %v500 = vrot.slane %v484, 4
        %v501 = vrot.slane %v493, 4
        %vm514 = vcmask 1047556
        %vm515 = vmand %vm514, %vm398
        %vm516 = vmor %vm515, %vm417
        %v517 = vld [vmem:[#allocation2 + $0x4] sm:$0xff]
        %v518 = vsel %vm516, %v440, %v517
        %519 = vst [vmem:[#allocation2 + $0x4] sm:$0xff] %v518
        %v520 = vld [vmem:[#allocation2 + $0xc] sm:$0xff]
        %v521 = vsel %vm516, %v447, %v520
        %522 = vst [vmem:[#allocation2 + $0xc] sm:$0xff] %v521
        %v523 = vld [vmem:[#allocation2 + $0x14] sm:$0xff]
        %v524 = vsel %vm516, %v454, %v523
        %525 = vst [vmem:[#allocation2 + $0x14] sm:$0xff] %v524
        %v526 = vld [vmem:[#allocation2 + $0x1c] sm:$0xff]
        %v527 = vsel %vm516, %v461, %v526
        %528 = vst [vmem:[#allocation2 + $0x1c] sm:$0xff] %v527
        %529 = vst [vmem:[#allocation2 + $0x2c] sm:$0xff] %v470
        %530 = vst [vmem:[#allocation2 + $0x34] sm:$0xff] %v479
        %531 = vst [vmem:[#allocation2 + $0x3c] sm:$0xff] %v488
        %532 = vst [vmem:[#allocation2 + $0x44] sm:$0xff] %v497
        %v533 = vld [vmem:[#allocation2 + $0x54] sm:$0x11]
        %v534 = vsel %vm380, %v498, %v533
        %535 = vst [vmem:[#allocation2 + $0x54] sm:$0x11] %v534
        %v536 = vld [vmem:[#allocation2 + $0x5c] sm:$0x11]
        %v537 = vsel %vm380, %v499, %v536
        %538 = vst [vmem:[#allocation2 + $0x5c] sm:$0x11] %v537
        %v539 = vld [vmem:[#allocation2 + $0x64] sm:$0x11]
        %v540 = vsel %vm380, %v500, %v539
        %541 = vst [vmem:[#allocation2 + $0x64] sm:$0x11] %v540
        %v542 = vld [vmem:[#allocation2 + $0x6c] sm:$0x11]
        %v543 = vsel %vm380, %v501, %v542
        %544 = vst [vmem:[#allocation2 + $0x6c] sm:$0x11] %v543
        %v545 = vld [vmem:[#allocation5] sm:$0x3]
        %v547 = vperm.slane %v545, 0
        %v548 = vperm.slane %v545, 1
        %v551 = vld [vmem:[#allocation2] sm:$0xff]
        %v552 = vld [vmem:[#allocation2 + $0x8] sm:$0xff]
        %v553 = vld [vmem:[#allocation2 + $0x10] sm:$0xff]
        %v554 = vld [vmem:[#allocation2 + $0x18] sm:$0xff]
        %v555 = vld [vmem:[#allocation2 + $0x20] sm:$0xff]
        %v556 = vld [vmem:[#allocation2 + $0x28] sm:$0xff]
        %v557 = vld [vmem:[#allocation2 + $0x30] sm:$0xff]
        %v558 = vld [vmem:[#allocation2 + $0x38] sm:$0xff]
        %v559 = vld [vmem:[#allocation2 + $0x40] sm:$0xff]
        %v560 = vld [vmem:[#allocation2 + $0x48] sm:$0xff]
        %v561 = vld [vmem:[#allocation3] sm:$0xff]
        %v562 = vld [vmem:[#allocation3 + $0x8] sm:$0xff]
        %v563 = vld [vmem:[#allocation3 + $0x10] sm:$0xff]
        %v564 = vld [vmem:[#allocation3 + $0x18] sm:$0xff]
        %v565 = vld [vmem:[#allocation3 + $0x20] sm:$0xff]
        %v566 = vld [vmem:[#allocation3 + $0x28] sm:$0xff]
        %v567 = vld [vmem:[#allocation3 + $0x30] sm:$0xff]
        %v568 = vld [vmem:[#allocation3 + $0x38] sm:$0xff]
        %v569 = vld [vmem:[#allocation3 + $0x40] sm:$0xff]
        %v570 = vld [vmem:[#allocation3 + $0x48] sm:$0xff]
        %v571 = vld [vmem:[#allocation3 + $0x50] sm:$0xff]
        %v572 = vld [vmem:[#allocation3 + $0x58] sm:$0xff]
        %v573 = vld [vmem:[#allocation3 + $0x60] sm:$0xff]
        %v574 = vld [vmem:[#allocation3 + $0x68] sm:$0xff]
        %v575 = vld [vmem:[#allocation3 + $0x70] sm:$0xff]
        %v576 = vld [vmem:[#allocation3 + $0x78] sm:$0xff]
        %v577 = vld [vmem:[#allocation3 + $0x80] sm:$0xff]
        %v578 = vld [vmem:[#allocation3 + $0x88] sm:$0xff]
        %v579 = vld [vmem:[#allocation3 + $0x90] sm:$0xff]
        %v580 = vld [vmem:[#allocation3 + $0x98] sm:$0xff]
        %v581 = vld [vmem:[#allocation3 + $0xa0] sm:$0xff]
        %v582 = vld [vmem:[#allocation3 + $0xa8] sm:$0xff]
        %v583 = vld [vmem:[#allocation3 + $0xb0] sm:$0xff]
        %v584 = vld [vmem:[#allocation3 + $0xb8] sm:$0xff]
        %v585 = vld [vmem:[#allocation3 + $0xc0] sm:$0xff]
        %v586 = vld [vmem:[#allocation3 + $0xc8] sm:$0xff]
        %v587 = vld [vmem:[#allocation3 + $0xd0] sm:$0xff]
        %v588 = vld [vmem:[#allocation3 + $0xd8] sm:$0xff]
        %v589 = vld [vmem:[#allocation3 + $0xe0] sm:$0xff]
        %v590 = vld [vmem:[#allocation3 + $0xe8] sm:$0xff]
        %v591 = vld [vmem:[#allocation3 + $0xf0] sm:$0xff]
        %v592 = vld [vmem:[#allocation3 + $0xf8] sm:$0xff]
        %v593 = vld [vmem:[#allocation3 + $0x100] sm:$0xff]
        %v594 = vld [vmem:[#allocation3 + $0x108] sm:$0xff]
        %v595 = vld [vmem:[#allocation3 + $0x110] sm:$0xff]
        %v596 = vld [vmem:[#allocation3 + $0x118] sm:$0xff]
        %v597 = vld [vmem:[#allocation3 + $0x120] sm:$0xff]
        %v598 = vld [vmem:[#allocation3 + $0x128] sm:$0xff]
        %v599 = vld [vmem:[#allocation3 + $0x130] sm:$0xff]
        %v600 = vld [vmem:[#allocation3 + $0x138] sm:$0xff]
        %v601 = vld [vmem:[#allocation3 + $0x140] sm:$0xff]
        %v602 = vld [vmem:[#allocation3 + $0x148] sm:$0xff]
        %v603 = vld [vmem:[#allocation3 + $0x150] sm:$0xff]
        %v604 = vld [vmem:[#allocation3 + $0x158] sm:$0xff]
        %v605 = vld [vmem:[#allocation3 + $0x160] sm:$0xff]
        %v606 = vld [vmem:[#allocation3 + $0x168] sm:$0xff]
        %v607 = vld [vmem:[#allocation3 + $0x170] sm:$0xff]
        %v608 = vld [vmem:[#allocation3 + $0x178] sm:$0xff]
        %v609 = vld [vmem:[#allocation3 + $0x180] sm:$0xff]
        %v610 = vld [vmem:[#allocation3 + $0x188] sm:$0xff]
        %v611 = vld [vmem:[#allocation3 + $0x190] sm:$0xff]
        %v612 = vld [vmem:[#allocation3 + $0x198] sm:$0xff]
        %v613 = vld [vmem:[#allocation3 + $0x1a0] sm:$0xff]
        %v614 = vld [vmem:[#allocation3 + $0x1a8] sm:$0xff]
        %v615 = vld [vmem:[#allocation3 + $0x1b0] sm:$0xff]
        %v616 = vld [vmem:[#allocation3 + $0x1b8] sm:$0xff]
        %v617 = vld [vmem:[#allocation3 + $0x1c0] sm:$0xff]
        %v618 = vld [vmem:[#allocation3 + $0x1c8] sm:$0xff]
        %v619 = vld [vmem:[#allocation3 + $0x1d0] sm:$0xff]
        %v620 = vld [vmem:[#allocation3 + $0x1d8] sm:$0xff]
        %v621 = vld [vmem:[#allocation3 + $0x1e0] sm:$0xff]
        %v622 = vld [vmem:[#allocation3 + $0x1e8] sm:$0xff]
        %v623 = vld [vmem:[#allocation3 + $0x1f0] sm:$0xff]
        %v624 = vld [vmem:[#allocation3 + $0x1f8] sm:$0xff]
        %v625 = vld [vmem:[#allocation3 + $0x200] sm:$0xff]
        %v626 = vld [vmem:[#allocation3 + $0x208] sm:$0xff]
        %v627 = vld [vmem:[#allocation3 + $0x210] sm:$0xff]
        %v628 = vld [vmem:[#allocation3 + $0x218] sm:$0xff]
        %v629 = vld [vmem:[#allocation3 + $0x220] sm:$0xff]
        %v630 = vld [vmem:[#allocation3 + $0x228] sm:$0xff]
        %v631 = vld [vmem:[#allocation3 + $0x230] sm:$0xff]
        %v632 = vld [vmem:[#allocation3 + $0x238] sm:$0xff]
        %v633 = vld [vmem:[#allocation3 + $0x240] sm:$0xff]
        %v634 = vld [vmem:[#allocation3 + $0x248] sm:$0xff]
        %v635 = vld [vmem:[#allocation3 + $0x250] sm:$0xff]
        %v636 = vld [vmem:[#allocation3 + $0x258] sm:$0xff]
        %v637 = vld [vmem:[#allocation3 + $0x260] sm:$0xff]
        %v638 = vld [vmem:[#allocation3 + $0x268] sm:$0xff]
        %v639 = vld [vmem:[#allocation3 + $0x270] sm:$0xff]
        %v640 = vld [vmem:[#allocation3 + $0x278] sm:$0xff]
        %v641 = vld [vmem:[#allocation3 + $0x280] sm:$0xff]
        %v642 = vld [vmem:[#allocation3 + $0x288] sm:$0xff]
        %v643 = vld [vmem:[#allocation3 + $0x290] sm:$0xff]
        %v644 = vld [vmem:[#allocation3 + $0x298] sm:$0xff]
        %v645 = vld [vmem:[#allocation3 + $0x2a0] sm:$0xff]
        %v646 = vld [vmem:[#allocation3 + $0x2a8] sm:$0xff]
        %v647 = vld [vmem:[#allocation3 + $0x2b0] sm:$0xff]
        %v648 = vld [vmem:[#allocation3 + $0x2b8] sm:$0xff]
        %v649 = vld [vmem:[#allocation3 + $0x2c0] sm:$0xff]
        %v650 = vld [vmem:[#allocation3 + $0x2c8] sm:$0xff]
        %v651 = vld [vmem:[#allocation3 + $0x2d0] sm:$0xff]
        %v652 = vld [vmem:[#allocation3 + $0x2d8] sm:$0xff]
        %v653 = vld [vmem:[#allocation3 + $0x2e0] sm:$0xff]
        %v654 = vld [vmem:[#allocation3 + $0x2e8] sm:$0xff]
        %v655 = vld [vmem:[#allocation3 + $0x2f0] sm:$0xff]
        %v656 = vld [vmem:[#allocation3 + $0x2f8] sm:$0xff]
        %v657 = vld [vmem:[#allocation3 + $0x300] sm:$0xff]
        %v658 = vld [vmem:[#allocation3 + $0x308] sm:$0xff]
        %v659 = vld [vmem:[#allocation3 + $0x310] sm:$0xff]
        %v660 = vld [vmem:[#allocation3 + $0x318] sm:$0xff]
        %v661 = vld [vmem:[#allocation3 + $0x320] sm:$0xff]
        %v662 = vld [vmem:[#allocation3 + $0x328] sm:$0xff]
        %v663 = vld [vmem:[#allocation3 + $0x330] sm:$0xff]
        %v664 = vld [vmem:[#allocation3 + $0x338] sm:$0xff]
        %v665 = vld [vmem:[#allocation3 + $0x340] sm:$0xff]
        %v666 = vld [vmem:[#allocation3 + $0x348] sm:$0xff]
        %v667 = vld [vmem:[#allocation3 + $0x350] sm:$0xff]
        %v668 = vld [vmem:[#allocation3 + $0x358] sm:$0xff]
        %v669 = vld [vmem:[#allocation3 + $0x360] sm:$0xff]
        %v670 = vld [vmem:[#allocation3 + $0x368] sm:$0xff]
        %v671 = vld [vmem:[#allocation3 + $0x370] sm:$0xff]
        %v672 = vld [vmem:[#allocation3 + $0x378] sm:$0xff]
        %v673 = vld [vmem:[#allocation3 + $0x380] sm:$0xff]
        %v674 = vld [vmem:[#allocation3 + $0x388] sm:$0xff]
        %v675 = vld [vmem:[#allocation3 + $0x390] sm:$0xff]
        %v676 = vld [vmem:[#allocation3 + $0x398] sm:$0xff]
        %v677 = vld [vmem:[#allocation3 + $0x3a0] sm:$0xff]
        %v678 = vld [vmem:[#allocation3 + $0x3a8] sm:$0xff]
        %v679 = vld [vmem:[#allocation3 + $0x3b0] sm:$0xff]
        %v680 = vld [vmem:[#allocation3 + $0x3b8] sm:$0xff]
        %v681 = vld [vmem:[#allocation3 + $0x3c0] sm:$0xff]
        %v682 = vld [vmem:[#allocation3 + $0x3c8] sm:$0xff]
        %v683 = vld [vmem:[#allocation3 + $0x3d0] sm:$0xff]
        %v684 = vld [vmem:[#allocation3 + $0x3d8] sm:$0xff]
        %v685 = vld [vmem:[#allocation3 + $0x3e0] sm:$0xff]
        %v686 = vld [vmem:[#allocation3 + $0x3e8] sm:$0xff]
        %v687 = vld [vmem:[#allocation3 + $0x3f0] sm:$0xff]
        %v688 = vld [vmem:[#allocation3 + $0x3f8] sm:$0xff]
        %v689 = vld [vmem:[#allocation3 + $0x400] sm:$0xff]
        %v690 = vld [vmem:[#allocation3 + $0x408] sm:$0xff]
        %v691 = vld [vmem:[#allocation3 + $0x410] sm:$0xff]
        %v692 = vld [vmem:[#allocation3 + $0x418] sm:$0xff]
        %v693 = vld [vmem:[#allocation3 + $0x420] sm:$0xff]
        %v694 = vld [vmem:[#allocation3 + $0x428] sm:$0xff]
        %v695 = vld [vmem:[#allocation3 + $0x430] sm:$0xff]
        %v696 = vld [vmem:[#allocation3 + $0x438] sm:$0xff]
        %v697 = vld [vmem:[#allocation3 + $0x440] sm:$0xff]
        %v698 = vld [vmem:[#allocation3 + $0x448] sm:$0xff]
        %v699 = vld [vmem:[#allocation3 + $0x450] sm:$0xff]
        %v700 = vld [vmem:[#allocation3 + $0x458] sm:$0xff]
        %v701 = vld [vmem:[#allocation3 + $0x460] sm:$0xff]
        %v702 = vld [vmem:[#allocation3 + $0x468] sm:$0xff]
        %v703 = vld [vmem:[#allocation3 + $0x470] sm:$0xff]
        %v704 = vld [vmem:[#allocation3 + $0x478] sm:$0xff]
        %v705 = vld [vmem:[#allocation3 + $0x480] sm:$0xff]
        %v706 = vld [vmem:[#allocation3 + $0x488] sm:$0xff]
        %v707 = vld [vmem:[#allocation3 + $0x490] sm:$0xff]
        %v708 = vld [vmem:[#allocation3 + $0x498] sm:$0xff]
        %v709 = vld [vmem:[#allocation3 + $0x4a0] sm:$0xff]
        %v710 = vld [vmem:[#allocation3 + $0x4a8] sm:$0xff]
        %v711 = vld [vmem:[#allocation3 + $0x4b0] sm:$0xff]
        %v712 = vld [vmem:[#allocation3 + $0x4b8] sm:$0xff]
        %v713 = vld [vmem:[#allocation3 + $0x4c0] sm:$0xff]
        %v714 = vld [vmem:[#allocation3 + $0x4c8] sm:$0xff]
        %v715 = vld [vmem:[#allocation3 + $0x4d0] sm:$0xff]
        %v716 = vld [vmem:[#allocation3 + $0x4d8] sm:$0xff]
        %v717 = vld [vmem:[#allocation3 + $0x4e0] sm:$0xff]
        %v718 = vld [vmem:[#allocation3 + $0x4e8] sm:$0xff]
        %v719 = vld [vmem:[#allocation3 + $0x4f0] sm:$0xff]
        %v720 = vld [vmem:[#allocation3 + $0x4f8] sm:$0xff]
        %v731 = vunpack.c.l.b16 %v551
        %v732 = vunpack.c.h.b16 %v551
        %v733 = vunpack.c.l.b16 %v552
        %v734 = vunpack.c.h.b16 %v552
        %v735 = vunpack.c.l.b16 %v553
        %v736 = vunpack.c.h.b16 %v553
        %v737 = vunpack.c.l.b16 %v554
        %v738 = vunpack.c.h.b16 %v554
        %v739 = vunpack.c.l.b16 %v555
        %v740 = vunpack.c.h.b16 %v555
        %v741 = vunpack.c.l.b16 %v556
        %v742 = vunpack.c.h.b16 %v556
        %v743 = vunpack.c.l.b16 %v557
        %v744 = vunpack.c.h.b16 %v557
        %v745 = vunpack.c.l.b16 %v558
        %v746 = vunpack.c.h.b16 %v558
        %v747 = vunpack.c.l.b16 %v559
        %v748 = vunpack.c.h.b16 %v559
        %v749 = vunpack.c.l.b16 %v560
        %v750 = vunpack.c.h.b16 %v560
        %v751 = vpack.c.b16 %v741, %v731
        %v752 = vpack.c.b16 %v742, %v732
        %v753 = vpack.c.b16 %v743, %v733
        %v754 = vpack.c.b16 %v744, %v734
        %v755 = vpack.c.b16 %v745, %v735
        %v756 = vpack.c.b16 %v746, %v736
        %v757 = vpack.c.b16 %v747, %v737
        %v758 = vpack.c.b16 %v748, %v738
        %v759 = vpack.c.b16 %v749, %v739
        %v760 = vpack.c.b16 %v750, %v740
        %v931 = vunpack.c.l.b16 %v561
        %v932 = vunpack.c.h.b16 %v561
        %v933 = vunpack.c.l.b16 %v562
        %v934 = vunpack.c.h.b16 %v562
        %v935 = vunpack.c.l.b16 %v563
        %v936 = vunpack.c.h.b16 %v563
        %v937 = vunpack.c.l.b16 %v564
        %v938 = vunpack.c.h.b16 %v564
        %v939 = vunpack.c.l.b16 %v565
        %v940 = vunpack.c.h.b16 %v565
        %v941 = vunpack.c.l.b16 %v566
        %v942 = vunpack.c.h.b16 %v566
        %v943 = vunpack.c.l.b16 %v567
        %v944 = vunpack.c.h.b16 %v567
        %v945 = vunpack.c.l.b16 %v568
        %v946 = vunpack.c.h.b16 %v568
        %v947 = vunpack.c.l.b16 %v569
        %v948 = vunpack.c.h.b16 %v569
        %v949 = vunpack.c.l.b16 %v570
        %v950 = vunpack.c.h.b16 %v570
        %v951 = vunpack.c.l.b16 %v571
        %v952 = vunpack.c.h.b16 %v571
        %v953 = vunpack.c.l.b16 %v572
        %v954 = vunpack.c.h.b16 %v572
        %v955 = vunpack.c.l.b16 %v573
        %v956 = vunpack.c.h.b16 %v573
        %v957 = vunpack.c.l.b16 %v574
        %v958 = vunpack.c.h.b16 %v574
        %v959 = vunpack.c.l.b16 %v575
        %v960 = vunpack.c.h.b16 %v575
        %v961 = vunpack.c.l.b16 %v576
        %v962 = vunpack.c.h.b16 %v576
        %v963 = vunpack.c.l.b16 %v577
        %v964 = vunpack.c.h.b16 %v577
        %v965 = vunpack.c.l.b16 %v578
        %v966 = vunpack.c.h.b16 %v578
        %v967 = vunpack.c.l.b16 %v579
        %v968 = vunpack.c.h.b16 %v579
        %v969 = vunpack.c.l.b16 %v580
        %v970 = vunpack.c.h.b16 %v580
        %v971 = vunpack.c.l.b16 %v581
        %v972 = vunpack.c.h.b16 %v581
        %v973 = vunpack.c.l.b16 %v582
        %v974 = vunpack.c.h.b16 %v582
        %v975 = vunpack.c.l.b16 %v583
        %v976 = vunpack.c.h.b16 %v583
        %v977 = vunpack.c.l.b16 %v584
        %v978 = vunpack.c.h.b16 %v584
        %v979 = vunpack.c.l.b16 %v585
        %v980 = vunpack.c.h.b16 %v585
        %v981 = vunpack.c.l.b16 %v586
        %v982 = vunpack.c.h.b16 %v586
        %v983 = vunpack.c.l.b16 %v587
        %v984 = vunpack.c.h.b16 %v587
        %v985 = vunpack.c.l.b16 %v588
        %v986 = vunpack.c.h.b16 %v588
        %v987 = vunpack.c.l.b16 %v589
        %v988 = vunpack.c.h.b16 %v589
        %v989 = vunpack.c.l.b16 %v590
        %v990 = vunpack.c.h.b16 %v590
        %v991 = vunpack.c.l.b16 %v591
        %v992 = vunpack.c.h.b16 %v591
        %v993 = vunpack.c.l.b16 %v592
        %v994 = vunpack.c.h.b16 %v592
        %v995 = vunpack.c.l.b16 %v593
        %v996 = vunpack.c.h.b16 %v593
        %v997 = vunpack.c.l.b16 %v594
        %v998 = vunpack.c.h.b16 %v594
        %v999 = vunpack.c.l.b16 %v595
        %v1000 = vunpack.c.h.b16 %v595
        %v1001 = vunpack.c.l.b16 %v596
        %v1002 = vunpack.c.h.b16 %v596
        %v1003 = vunpack.c.l.b16 %v597
        %v1004 = vunpack.c.h.b16 %v597
        %v1005 = vunpack.c.l.b16 %v598
        %v1006 = vunpack.c.h.b16 %v598
        %v1007 = vunpack.c.l.b16 %v599
        %v1008 = vunpack.c.h.b16 %v599
        %v1009 = vunpack.c.l.b16 %v600
        %v1010 = vunpack.c.h.b16 %v600
        %v1011 = vunpack.c.l.b16 %v601
        %v1012 = vunpack.c.h.b16 %v601
        %v1013 = vunpack.c.l.b16 %v602
        %v1014 = vunpack.c.h.b16 %v602
        %v1015 = vunpack.c.l.b16 %v603
        %v1016 = vunpack.c.h.b16 %v603
        %v1017 = vunpack.c.l.b16 %v604
        %v1018 = vunpack.c.h.b16 %v604
        %v1019 = vunpack.c.l.b16 %v605
        %v1020 = vunpack.c.h.b16 %v605
        %v1021 = vunpack.c.l.b16 %v606
        %v1022 = vunpack.c.h.b16 %v606
        %v1023 = vunpack.c.l.b16 %v607
        %v1024 = vunpack.c.h.b16 %v607
        %v1025 = vunpack.c.l.b16 %v608
        %v1026 = vunpack.c.h.b16 %v608
        %v1027 = vunpack.c.l.b16 %v609
        %v1028 = vunpack.c.h.b16 %v609
        %v1029 = vunpack.c.l.b16 %v610
        %v1030 = vunpack.c.h.b16 %v610
        %v1031 = vunpack.c.l.b16 %v611
        %v1032 = vunpack.c.h.b16 %v611
        %v1033 = vunpack.c.l.b16 %v612
        %v1034 = vunpack.c.h.b16 %v612
        %v1035 = vunpack.c.l.b16 %v613
        %v1036 = vunpack.c.h.b16 %v613
        %v1037 = vunpack.c.l.b16 %v614
        %v1038 = vunpack.c.h.b16 %v614
        %v1039 = vunpack.c.l.b16 %v615
        %v1040 = vunpack.c.h.b16 %v615
        %v1041 = vunpack.c.l.b16 %v616
        %v1042 = vunpack.c.h.b16 %v616
        %v1043 = vunpack.c.l.b16 %v617
        %v1044 = vunpack.c.h.b16 %v617
        %v1045 = vunpack.c.l.b16 %v618
        %v1046 = vunpack.c.h.b16 %v618
        %v1047 = vunpack.c.l.b16 %v619
        %v1048 = vunpack.c.h.b16 %v619
        %v1049 = vunpack.c.l.b16 %v620
        %v1050 = vunpack.c.h.b16 %v620
        %v1051 = vunpack.c.l.b16 %v621
        %v1052 = vunpack.c.h.b16 %v621
        %v1053 = vunpack.c.l.b16 %v622
        %v1054 = vunpack.c.h.b16 %v622
        %v1055 = vunpack.c.l.b16 %v623
        %v1056 = vunpack.c.h.b16 %v623
        %v1057 = vunpack.c.l.b16 %v624
        %v1058 = vunpack.c.h.b16 %v624
        %v1059 = vunpack.c.l.b16 %v625
        %v1060 = vunpack.c.h.b16 %v625
        %v1061 = vunpack.c.l.b16 %v626
        %v1062 = vunpack.c.h.b16 %v626
        %v1063 = vunpack.c.l.b16 %v627
        %v1064 = vunpack.c.h.b16 %v627
        %v1065 = vunpack.c.l.b16 %v628
        %v1066 = vunpack.c.h.b16 %v628
        %v1067 = vunpack.c.l.b16 %v629
        %v1068 = vunpack.c.h.b16 %v629
        %v1069 = vunpack.c.l.b16 %v630
        %v1070 = vunpack.c.h.b16 %v630
        %v1071 = vunpack.c.l.b16 %v631
        %v1072 = vunpack.c.h.b16 %v631
        %v1073 = vunpack.c.l.b16 %v632
        %v1074 = vunpack.c.h.b16 %v632
        %v1075 = vunpack.c.l.b16 %v633
        %v1076 = vunpack.c.h.b16 %v633
        %v1077 = vunpack.c.l.b16 %v634
        %v1078 = vunpack.c.h.b16 %v634
        %v1079 = vunpack.c.l.b16 %v635
        %v1080 = vunpack.c.h.b16 %v635
        %v1081 = vunpack.c.l.b16 %v636
        %v1082 = vunpack.c.h.b16 %v636
        %v1083 = vunpack.c.l.b16 %v637
        %v1084 = vunpack.c.h.b16 %v637
        %v1085 = vunpack.c.l.b16 %v638
        %v1086 = vunpack.c.h.b16 %v638
        %v1087 = vunpack.c.l.b16 %v639
        %v1088 = vunpack.c.h.b16 %v639
        %v1089 = vunpack.c.l.b16 %v640
        %v1090 = vunpack.c.h.b16 %v640
        %v1091 = vunpack.c.l.b16 %v641
        %v1092 = vunpack.c.h.b16 %v641
        %v1093 = vunpack.c.l.b16 %v642
        %v1094 = vunpack.c.h.b16 %v642
        %v1095 = vunpack.c.l.b16 %v643
        %v1096 = vunpack.c.h.b16 %v643
        %v1097 = vunpack.c.l.b16 %v644
        %v1098 = vunpack.c.h.b16 %v644
        %v1099 = vunpack.c.l.b16 %v645
        %v1100 = vunpack.c.h.b16 %v645
        %v1101 = vunpack.c.l.b16 %v646
        %v1102 = vunpack.c.h.b16 %v646
        %v1103 = vunpack.c.l.b16 %v647
        %v1104 = vunpack.c.h.b16 %v647
        %v1105 = vunpack.c.l.b16 %v648
        %v1106 = vunpack.c.h.b16 %v648
        %v1107 = vunpack.c.l.b16 %v649
        %v1108 = vunpack.c.h.b16 %v649
        %v1109 = vunpack.c.l.b16 %v650
        %v1110 = vunpack.c.h.b16 %v650
        %v1111 = vunpack.c.l.b16 %v651
        %v1112 = vunpack.c.h.b16 %v651
        %v1113 = vunpack.c.l.b16 %v652
        %v1114 = vunpack.c.h.b16 %v652
        %v1115 = vunpack.c.l.b16 %v653
        %v1116 = vunpack.c.h.b16 %v653
        %v1117 = vunpack.c.l.b16 %v654
        %v1118 = vunpack.c.h.b16 %v654
        %v1119 = vunpack.c.l.b16 %v655
        %v1120 = vunpack.c.h.b16 %v655
        %v1121 = vunpack.c.l.b16 %v656
        %v1122 = vunpack.c.h.b16 %v656
        %v1123 = vunpack.c.l.b16 %v657
        %v1124 = vunpack.c.h.b16 %v657
        %v1125 = vunpack.c.l.b16 %v658
        %v1126 = vunpack.c.h.b16 %v658
        %v1127 = vunpack.c.l.b16 %v659
        %v1128 = vunpack.c.h.b16 %v659
        %v1129 = vunpack.c.l.b16 %v660
        %v1130 = vunpack.c.h.b16 %v660
        %v1131 = vunpack.c.l.b16 %v661
        %v1132 = vunpack.c.h.b16 %v661
        %v1133 = vunpack.c.l.b16 %v662
        %v1134 = vunpack.c.h.b16 %v662
        %v1135 = vunpack.c.l.b16 %v663
        %v1136 = vunpack.c.h.b16 %v663
        %v1137 = vunpack.c.l.b16 %v664
        %v1138 = vunpack.c.h.b16 %v664
        %v1139 = vunpack.c.l.b16 %v665
        %v1140 = vunpack.c.h.b16 %v665
        %v1141 = vunpack.c.l.b16 %v666
        %v1142 = vunpack.c.h.b16 %v666
        %v1143 = vunpack.c.l.b16 %v667
        %v1144 = vunpack.c.h.b16 %v667
        %v1145 = vunpack.c.l.b16 %v668
        %v1146 = vunpack.c.h.b16 %v668
        %v1147 = vunpack.c.l.b16 %v669
        %v1148 = vunpack.c.h.b16 %v669
        %v1149 = vunpack.c.l.b16 %v670
        %v1150 = vunpack.c.h.b16 %v670
        %v1151 = vunpack.c.l.b16 %v671
        %v1152 = vunpack.c.h.b16 %v671
        %v1153 = vunpack.c.l.b16 %v672
        %v1154 = vunpack.c.h.b16 %v672
        %v1155 = vunpack.c.l.b16 %v673
        %v1156 = vunpack.c.h.b16 %v673
        %v1157 = vunpack.c.l.b16 %v674
        %v1158 = vunpack.c.h.b16 %v674
        %v1159 = vunpack.c.l.b16 %v675
        %v1160 = vunpack.c.h.b16 %v675
        %v1161 = vunpack.c.l.b16 %v676
        %v1162 = vunpack.c.h.b16 %v676
        %v1163 = vunpack.c.l.b16 %v677
        %v1164 = vunpack.c.h.b16 %v677
        %v1165 = vunpack.c.l.b16 %v678
        %v1166 = vunpack.c.h.b16 %v678
        %v1167 = vunpack.c.l.b16 %v679
        %v1168 = vunpack.c.h.b16 %v679
        %v1169 = vunpack.c.l.b16 %v680
        %v1170 = vunpack.c.h.b16 %v680
        %v1171 = vunpack.c.l.b16 %v681
        %v1172 = vunpack.c.h.b16 %v681
        %v1173 = vunpack.c.l.b16 %v682
        %v1174 = vunpack.c.h.b16 %v682
        %v1175 = vunpack.c.l.b16 %v683
        %v1176 = vunpack.c.h.b16 %v683
        %v1177 = vunpack.c.l.b16 %v684
        %v1178 = vunpack.c.h.b16 %v684
        %v1179 = vunpack.c.l.b16 %v685
        %v1180 = vunpack.c.h.b16 %v685
        %v1181 = vunpack.c.l.b16 %v686
        %v1182 = vunpack.c.h.b16 %v686
        %v1183 = vunpack.c.l.b16 %v687
        %v1184 = vunpack.c.h.b16 %v687
        %v1185 = vunpack.c.l.b16 %v688
        %v1186 = vunpack.c.h.b16 %v688
        %v1187 = vunpack.c.l.b16 %v689
        %v1188 = vunpack.c.h.b16 %v689
        %v1189 = vunpack.c.l.b16 %v690
        %v1190 = vunpack.c.h.b16 %v690
        %v1191 = vunpack.c.l.b16 %v691
        %v1192 = vunpack.c.h.b16 %v691
        %v1193 = vunpack.c.l.b16 %v692
        %v1194 = vunpack.c.h.b16 %v692
        %v1195 = vunpack.c.l.b16 %v693
        %v1196 = vunpack.c.h.b16 %v693
        %v1197 = vunpack.c.l.b16 %v694
        %v1198 = vunpack.c.h.b16 %v694
        %v1199 = vunpack.c.l.b16 %v695
        %v1200 = vunpack.c.h.b16 %v695
        %v1201 = vunpack.c.l.b16 %v696
        %v1202 = vunpack.c.h.b16 %v696
        %v1203 = vunpack.c.l.b16 %v697
        %v1204 = vunpack.c.h.b16 %v697
        %v1205 = vunpack.c.l.b16 %v698
        %v1206 = vunpack.c.h.b16 %v698
        %v1207 = vunpack.c.l.b16 %v699
        %v1208 = vunpack.c.h.b16 %v699
        %v1209 = vunpack.c.l.b16 %v700
        %v1210 = vunpack.c.h.b16 %v700
        %v1211 = vunpack.c.l.b16 %v701
        %v1212 = vunpack.c.h.b16 %v701
        %v1213 = vunpack.c.l.b16 %v702
        %v1214 = vunpack.c.h.b16 %v702
        %v1215 = vunpack.c.l.b16 %v703
        %v1216 = vunpack.c.h.b16 %v703
        %v1217 = vunpack.c.l.b16 %v704
        %v1218 = vunpack.c.h.b16 %v704
        %v1219 = vunpack.c.l.b16 %v705
        %v1220 = vunpack.c.h.b16 %v705
        %v1221 = vunpack.c.l.b16 %v706
        %v1222 = vunpack.c.h.b16 %v706
        %v1223 = vunpack.c.l.b16 %v707
        %v1224 = vunpack.c.h.b16 %v707
        %v1225 = vunpack.c.l.b16 %v708
        %v1226 = vunpack.c.h.b16 %v708
        %v1227 = vunpack.c.l.b16 %v709
        %v1228 = vunpack.c.h.b16 %v709
        %v1229 = vunpack.c.l.b16 %v710
        %v1230 = vunpack.c.h.b16 %v710
        %v1231 = vunpack.c.l.b16 %v711
        %v1232 = vunpack.c.h.b16 %v711
        %v1233 = vunpack.c.l.b16 %v712
        %v1234 = vunpack.c.h.b16 %v712
        %v1235 = vunpack.c.l.b16 %v713
        %v1236 = vunpack.c.h.b16 %v713
        %v1237 = vunpack.c.l.b16 %v714
        %v1238 = vunpack.c.h.b16 %v714
        %v1239 = vunpack.c.l.b16 %v715
        %v1240 = vunpack.c.h.b16 %v715
        %v1241 = vunpack.c.l.b16 %v716
        %v1242 = vunpack.c.h.b16 %v716
        %v1243 = vunpack.c.l.b16 %v717
        %v1244 = vunpack.c.h.b16 %v717
        %v1245 = vunpack.c.l.b16 %v718
        %v1246 = vunpack.c.h.b16 %v718
        %v1247 = vunpack.c.l.b16 %v719
        %v1248 = vunpack.c.h.b16 %v719
        %v1249 = vunpack.c.l.b16 %v720
        %v1250 = vunpack.c.h.b16 %v720
        %v1251 = vpack.c.b16 %v933, %v931
        %v1252 = vpack.c.b16 %v934, %v932
        %v1253 = vpack.c.b16 %v937, %v935
        %v1254 = vpack.c.b16 %v938, %v936
        %v1255 = vpack.c.b16 %v941, %v939
        %v1256 = vpack.c.b16 %v942, %v940
        %v1257 = vpack.c.b16 %v945, %v943
        %v1258 = vpack.c.b16 %v946, %v944
        %v1259 = vpack.c.b16 %v949, %v947
        %v1260 = vpack.c.b16 %v950, %v948
        %v1261 = vpack.c.b16 %v953, %v951
        %v1262 = vpack.c.b16 %v954, %v952
        %v1263 = vpack.c.b16 %v957, %v955
        %v1264 = vpack.c.b16 %v958, %v956
        %v1265 = vpack.c.b16 %v961, %v959
        %v1266 = vpack.c.b16 %v962, %v960
        %v1267 = vpack.c.b16 %v965, %v963
        %v1268 = vpack.c.b16 %v966, %v964
        %v1269 = vpack.c.b16 %v969, %v967
        %v1270 = vpack.c.b16 %v970, %v968
        %v1271 = vpack.c.b16 %v973, %v971
        %v1272 = vpack.c.b16 %v974, %v972
        %v1273 = vpack.c.b16 %v977, %v975
        %v1274 = vpack.c.b16 %v978, %v976
        %v1275 = vpack.c.b16 %v981, %v979
        %v1276 = vpack.c.b16 %v982, %v980
        %v1277 = vpack.c.b16 %v985, %v983
        %v1278 = vpack.c.b16 %v986, %v984
        %v1279 = vpack.c.b16 %v989, %v987
        %v1280 = vpack.c.b16 %v990, %v988
        %v1281 = vpack.c.b16 %v993, %v991
        %v1282 = vpack.c.b16 %v994, %v992
        %v1283 = vpack.c.b16 %v997, %v995
        %v1284 = vpack.c.b16 %v998, %v996
        %v1285 = vpack.c.b16 %v1001, %v999
        %v1286 = vpack.c.b16 %v1002, %v1000
        %v1287 = vpack.c.b16 %v1005, %v1003
        %v1288 = vpack.c.b16 %v1006, %v1004
        %v1289 = vpack.c.b16 %v1009, %v1007
        %v1290 = vpack.c.b16 %v1010, %v1008
        %v1291 = vpack.c.b16 %v1013, %v1011
        %v1292 = vpack.c.b16 %v1014, %v1012
        %v1293 = vpack.c.b16 %v1017, %v1015
        %v1294 = vpack.c.b16 %v1018, %v1016
        %v1295 = vpack.c.b16 %v1021, %v1019
        %v1296 = vpack.c.b16 %v1022, %v1020
        %v1297 = vpack.c.b16 %v1025, %v1023
        %v1298 = vpack.c.b16 %v1026, %v1024
        %v1299 = vpack.c.b16 %v1029, %v1027
        %v1300 = vpack.c.b16 %v1030, %v1028
        %v1301 = vpack.c.b16 %v1033, %v1031
        %v1302 = vpack.c.b16 %v1034, %v1032
        %v1303 = vpack.c.b16 %v1037, %v1035
        %v1304 = vpack.c.b16 %v1038, %v1036
        %v1305 = vpack.c.b16 %v1041, %v1039
        %v1306 = vpack.c.b16 %v1042, %v1040
        %v1307 = vpack.c.b16 %v1045, %v1043
        %v1308 = vpack.c.b16 %v1046, %v1044
        %v1309 = vpack.c.b16 %v1049, %v1047
        %v1310 = vpack.c.b16 %v1050, %v1048
        %v1311 = vpack.c.b16 %v1053, %v1051
        %v1312 = vpack.c.b16 %v1054, %v1052
        %v1313 = vpack.c.b16 %v1057, %v1055
        %v1314 = vpack.c.b16 %v1058, %v1056
        %v1315 = vpack.c.b16 %v1061, %v1059
        %v1316 = vpack.c.b16 %v1062, %v1060
        %v1317 = vpack.c.b16 %v1065, %v1063
        %v1318 = vpack.c.b16 %v1066, %v1064
        %v1319 = vpack.c.b16 %v1069, %v1067
        %v1320 = vpack.c.b16 %v1070, %v1068
        %v1321 = vpack.c.b16 %v1073, %v1071
        %v1322 = vpack.c.b16 %v1074, %v1072
        %v1323 = vpack.c.b16 %v1077, %v1075
        %v1324 = vpack.c.b16 %v1078, %v1076
        %v1325 = vpack.c.b16 %v1081, %v1079
        %v1326 = vpack.c.b16 %v1082, %v1080
        %v1327 = vpack.c.b16 %v1085, %v1083
        %v1328 = vpack.c.b16 %v1086, %v1084
        %v1329 = vpack.c.b16 %v1089, %v1087
        %v1330 = vpack.c.b16 %v1090, %v1088
        %v1331 = vpack.c.b16 %v1093, %v1091
        %v1332 = vpack.c.b16 %v1094, %v1092
        %v1333 = vpack.c.b16 %v1097, %v1095
        %v1334 = vpack.c.b16 %v1098, %v1096
        %v1335 = vpack.c.b16 %v1101, %v1099
        %v1336 = vpack.c.b16 %v1102, %v1100
        %v1337 = vpack.c.b16 %v1105, %v1103
        %v1338 = vpack.c.b16 %v1106, %v1104
        %v1339 = vpack.c.b16 %v1109, %v1107
        %v1340 = vpack.c.b16 %v1110, %v1108
        %v1341 = vpack.c.b16 %v1113, %v1111
        %v1342 = vpack.c.b16 %v1114, %v1112
        %v1343 = vpack.c.b16 %v1117, %v1115
        %v1344 = vpack.c.b16 %v1118, %v1116
        %v1345 = vpack.c.b16 %v1121, %v1119
        %v1346 = vpack.c.b16 %v1122, %v1120
        %v1347 = vpack.c.b16 %v1125, %v1123
        %v1348 = vpack.c.b16 %v1126, %v1124
        %v1349 = vpack.c.b16 %v1129, %v1127
        %v1350 = vpack.c.b16 %v1130, %v1128
        %v1351 = vpack.c.b16 %v1133, %v1131
        %v1352 = vpack.c.b16 %v1134, %v1132
        %v1353 = vpack.c.b16 %v1137, %v1135
        %v1354 = vpack.c.b16 %v1138, %v1136
        %v1355 = vpack.c.b16 %v1141, %v1139
        %v1356 = vpack.c.b16 %v1142, %v1140
        %v1357 = vpack.c.b16 %v1145, %v1143
        %v1358 = vpack.c.b16 %v1146, %v1144
        %v1359 = vpack.c.b16 %v1149, %v1147
        %v1360 = vpack.c.b16 %v1150, %v1148
        %v1361 = vpack.c.b16 %v1153, %v1151
        %v1362 = vpack.c.b16 %v1154, %v1152
        %v1363 = vpack.c.b16 %v1157, %v1155
        %v1364 = vpack.c.b16 %v1158, %v1156
        %v1365 = vpack.c.b16 %v1161, %v1159
        %v1366 = vpack.c.b16 %v1162, %v1160
        %v1367 = vpack.c.b16 %v1165, %v1163
        %v1368 = vpack.c.b16 %v1166, %v1164
        %v1369 = vpack.c.b16 %v1169, %v1167
        %v1370 = vpack.c.b16 %v1170, %v1168
        %v1371 = vpack.c.b16 %v1173, %v1171
        %v1372 = vpack.c.b16 %v1174, %v1172
        %v1373 = vpack.c.b16 %v1177, %v1175
        %v1374 = vpack.c.b16 %v1178, %v1176
        %v1375 = vpack.c.b16 %v1181, %v1179
        %v1376 = vpack.c.b16 %v1182, %v1180
        %v1377 = vpack.c.b16 %v1185, %v1183
        %v1378 = vpack.c.b16 %v1186, %v1184
        %v1379 = vpack.c.b16 %v1189, %v1187
        %v1380 = vpack.c.b16 %v1190, %v1188
        %v1381 = vpack.c.b16 %v1193, %v1191
        %v1382 = vpack.c.b16 %v1194, %v1192
        %v1383 = vpack.c.b16 %v1197, %v1195
        %v1384 = vpack.c.b16 %v1198, %v1196
        %v1385 = vpack.c.b16 %v1201, %v1199
        %v1386 = vpack.c.b16 %v1202, %v1200
        %v1387 = vpack.c.b16 %v1205, %v1203
        %v1388 = vpack.c.b16 %v1206, %v1204
        %v1389 = vpack.c.b16 %v1209, %v1207
        %v1390 = vpack.c.b16 %v1210, %v1208
        %v1391 = vpack.c.b16 %v1213, %v1211
        %v1392 = vpack.c.b16 %v1214, %v1212
        %v1393 = vpack.c.b16 %v1217, %v1215
        %v1394 = vpack.c.b16 %v1218, %v1216
        %v1395 = vpack.c.b16 %v1221, %v1219
        %v1396 = vpack.c.b16 %v1222, %v1220
        %v1397 = vpack.c.b16 %v1225, %v1223
        %v1398 = vpack.c.b16 %v1226, %v1224
        %v1399 = vpack.c.b16 %v1229, %v1227
        %v1400 = vpack.c.b16 %v1230, %v1228
        %v1401 = vpack.c.b16 %v1233, %v1231
        %v1402 = vpack.c.b16 %v1234, %v1232
        %v1403 = vpack.c.b16 %v1237, %v1235
        %v1404 = vpack.c.b16 %v1238, %v1236
        %v1405 = vpack.c.b16 %v1241, %v1239
        %v1406 = vpack.c.b16 %v1242, %v1240
        %v1407 = vpack.c.b16 %v1245, %v1243
        %v1408 = vpack.c.b16 %v1246, %v1244
        %v1409 = vpack.c.b16 %v1249, %v1247
        %v1410 = vpack.c.b16 %v1250, %v1248
        %1571 = vmatpush.bf16.msra.mxu0 %v1265
        %1572 = vmatpush.bf16.msra.mxu0 %v1263
        %1573 = vmatpush.bf16.msra.mxu0 %v1261
        %1574 = vmatpush.bf16.msra.mxu0 %v1259
        %1575 = vmatpush.bf16.msra.mxu0 %v1257
        %1576 = vmatpush.bf16.msra.mxu0 %v1255
        %1577 = vmatpush.bf16.msra.mxu0 %v1253
        %1578 = vmatpush.bf16.msra.mxu0 %v1251
        %1579 = vmatmul.bf16.gmra.mxu0 %v751
        %v1580 = vpop.f32.mrf.mxu0
        %v1581 = vadd.f32 0.0, %v1580
        %v1582 = vpop.f32.mrf.mxu0
        %v1583 = vadd.f32 0.0, %v1582
        %1584 = vdwg.mxu0
        %1585 = vmatpush.bf16.msra.mxu0 %v1281
        %1586 = vmatpush.bf16.msra.mxu0 %v1279
        %1587 = vmatpush.bf16.msra.mxu0 %v1277
        %1588 = vmatpush.bf16.msra.mxu0 %v1275
        %1589 = vmatpush.bf16.msra.mxu0 %v1273
        %1590 = vmatpush.bf16.msra.mxu0 %v1271
        %1591 = vmatpush.bf16.msra.mxu0 %v1269
        %1592 = vmatpush.bf16.msra.mxu0 %v1267
        %1593 = vmatmul.bf16.gmra.mxu0 %v752
        %v1594 = vpop.f32.mrf.mxu0
        %v1595 = vadd.f32 %v1581, %v1594
        %v1596 = vpop.f32.mrf.mxu0
        %v1597 = vadd.f32 %v1583, %v1596
        %1598 = vdwg.mxu0
        %1599 = vmatpush.bf16.msra.mxu0 %v1297
        %1600 = vmatpush.bf16.msra.mxu0 %v1295
        %1601 = vmatpush.bf16.msra.mxu0 %v1293
        %1602 = vmatpush.bf16.msra.mxu0 %v1291
        %1603 = vmatpush.bf16.msra.mxu0 %v1289
        %1604 = vmatpush.bf16.msra.mxu0 %v1287
        %1605 = vmatpush.bf16.msra.mxu0 %v1285
        %1606 = vmatpush.bf16.msra.mxu0 %v1283
        %1607 = vmatmul.bf16.gmra.mxu0 %v753
        %v1608 = vpop.f32.mrf.mxu0
        %v1609 = vadd.f32 %v1595, %v1608
        %v1610 = vpop.f32.mrf.mxu0
        %v1611 = vadd.f32 %v1597, %v1610
        %1612 = vdwg.mxu0
        %1613 = vmatpush.bf16.msra.mxu0 %v1313
        %1614 = vmatpush.bf16.msra.mxu0 %v1311
        %1615 = vmatpush.bf16.msra.mxu0 %v1309
        %1616 = vmatpush.bf16.msra.mxu0 %v1307
        %1617 = vmatpush.bf16.msra.mxu0 %v1305
        %1618 = vmatpush.bf16.msra.mxu0 %v1303
        %1619 = vmatpush.bf16.msra.mxu0 %v1301
        %1620 = vmatpush.bf16.msra.mxu0 %v1299
        %1621 = vmatmul.bf16.gmra.mxu0 %v754
        %v1622 = vpop.f32.mrf.mxu0
        %v1623 = vadd.f32 %v1609, %v1622
        %v1624 = vpop.f32.mrf.mxu0
        %v1625 = vadd.f32 %v1611, %v1624
        %1626 = vdwg.mxu0
        %1627 = vmatpush.bf16.msra.mxu0 %v1329
        %1628 = vmatpush.bf16.msra.mxu0 %v1327
        %1629 = vmatpush.bf16.msra.mxu0 %v1325
        %1630 = vmatpush.bf16.msra.mxu0 %v1323
        %1631 = vmatpush.bf16.msra.mxu0 %v1321
        %1632 = vmatpush.bf16.msra.mxu0 %v1319
        %1633 = vmatpush.bf16.msra.mxu0 %v1317
        %1634 = vmatpush.bf16.msra.mxu0 %v1315
        %1635 = vmatmul.bf16.gmra.mxu0 %v755
        %v1636 = vpop.f32.mrf.mxu0
        %v1637 = vadd.f32 %v1623, %v1636
        %v1638 = vpop.f32.mrf.mxu0
        %v1639 = vadd.f32 %v1625, %v1638
        %1640 = vdwg.mxu0
        %1641 = vmatpush.bf16.msra.mxu0 %v1345
        %1642 = vmatpush.bf16.msra.mxu0 %v1343
        %1643 = vmatpush.bf16.msra.mxu0 %v1341
        %1644 = vmatpush.bf16.msra.mxu0 %v1339
        %1645 = vmatpush.bf16.msra.mxu0 %v1337
        %1646 = vmatpush.bf16.msra.mxu0 %v1335
        %1647 = vmatpush.bf16.msra.mxu0 %v1333
        %1648 = vmatpush.bf16.msra.mxu0 %v1331
        %1649 = vmatmul.bf16.gmra.mxu0 %v756
        %v1650 = vpop.f32.mrf.mxu0
        %v1651 = vadd.f32 %v1637, %v1650
        %v1652 = vpop.f32.mrf.mxu0
        %v1653 = vadd.f32 %v1639, %v1652
        %1654 = vdwg.mxu0
        %1655 = vmatpush.bf16.msra.mxu0 %v1361
        %1656 = vmatpush.bf16.msra.mxu0 %v1359
        %1657 = vmatpush.bf16.msra.mxu0 %v1357
        %1658 = vmatpush.bf16.msra.mxu0 %v1355
        %1659 = vmatpush.bf16.msra.mxu0 %v1353
        %1660 = vmatpush.bf16.msra.mxu0 %v1351
        %1661 = vmatpush.bf16.msra.mxu0 %v1349
        %1662 = vmatpush.bf16.msra.mxu0 %v1347
        %1663 = vmatmul.bf16.gmra.mxu0 %v757
        %v1664 = vpop.f32.mrf.mxu0
        %v1665 = vadd.f32 %v1651, %v1664
        %v1666 = vpop.f32.mrf.mxu0
        %v1667 = vadd.f32 %v1653, %v1666
        %1668 = vdwg.mxu0
        %1669 = vmatpush.bf16.msra.mxu0 %v1377
        %1670 = vmatpush.bf16.msra.mxu0 %v1375
        %1671 = vmatpush.bf16.msra.mxu0 %v1373
        %1672 = vmatpush.bf16.msra.mxu0 %v1371
        %1673 = vmatpush.bf16.msra.mxu0 %v1369
        %1674 = vmatpush.bf16.msra.mxu0 %v1367
        %1675 = vmatpush.bf16.msra.mxu0 %v1365
        %1676 = vmatpush.bf16.msra.mxu0 %v1363
        %1677 = vmatmul.bf16.gmra.mxu0 %v758
        %v1678 = vpop.f32.mrf.mxu0
        %v1679 = vadd.f32 %v1665, %v1678
        %v1680 = vpop.f32.mrf.mxu0
        %v1681 = vadd.f32 %v1667, %v1680
        %1682 = vdwg.mxu0
        %1683 = vmatpush.bf16.msra.mxu0 %v1393
        %1684 = vmatpush.bf16.msra.mxu0 %v1391
        %1685 = vmatpush.bf16.msra.mxu0 %v1389
        %1686 = vmatpush.bf16.msra.mxu0 %v1387
        %1687 = vmatpush.bf16.msra.mxu0 %v1385
        %1688 = vmatpush.bf16.msra.mxu0 %v1383
        %1689 = vmatpush.bf16.msra.mxu0 %v1381
        %1690 = vmatpush.bf16.msra.mxu0 %v1379
        %1691 = vmatmul.bf16.gmra.mxu0 %v759
        %v1692 = vpop.f32.mrf.mxu0
        %v1693 = vadd.f32 %v1679, %v1692
        %v1694 = vpop.f32.mrf.mxu0
        %v1695 = vadd.f32 %v1681, %v1694
        %1696 = vdwg.mxu0
        %1697 = vmatpush.bf16.msra.mxu0 %v1409
        %1698 = vmatpush.bf16.msra.mxu0 %v1407
        %1699 = vmatpush.bf16.msra.mxu0 %v1405
        %1700 = vmatpush.bf16.msra.mxu0 %v1403
        %1701 = vmatpush.bf16.msra.mxu0 %v1401
        %1702 = vmatpush.bf16.msra.mxu0 %v1399
        %1703 = vmatpush.bf16.msra.mxu0 %v1397
        %1704 = vmatpush.bf16.msra.mxu0 %v1395
        %1705 = vmatmul.bf16.gmra.mxu0 %v760
        %v1706 = vpop.f32.mrf.mxu0
        %v1707 = vadd.f32 %v1693, %v1706
        %v1708 = vpop.f32.mrf.mxu0
        %v1709 = vadd.f32 %v1695, %v1708
        %1710 = vdwg.mxu0
        %1711 = vmatpush.bf16.msra.mxu0 %v1266
        %1712 = vmatpush.bf16.msra.mxu0 %v1264
        %1713 = vmatpush.bf16.msra.mxu0 %v1262
        %1714 = vmatpush.bf16.msra.mxu0 %v1260
        %1715 = vmatpush.bf16.msra.mxu0 %v1258
        %1716 = vmatpush.bf16.msra.mxu0 %v1256
        %1717 = vmatpush.bf16.msra.mxu0 %v1254
        %1718 = vmatpush.bf16.msra.mxu0 %v1252
        %1719 = vmatmul.bf16.gmra.mxu0 %v751
        %v1720 = vpop.f32.mrf.mxu0
        %v1721 = vadd.f32 0.0, %v1720
        %v1722 = vpop.f32.mrf.mxu0
        %v1723 = vadd.f32 0.0, %v1722
        %1724 = vdwg.mxu0
        %1725 = vmatpush.bf16.msra.mxu0 %v1282
        %1726 = vmatpush.bf16.msra.mxu0 %v1280
        %1727 = vmatpush.bf16.msra.mxu0 %v1278
        %1728 = vmatpush.bf16.msra.mxu0 %v1276
        %1729 = vmatpush.bf16.msra.mxu0 %v1274
        %1730 = vmatpush.bf16.msra.mxu0 %v1272
        %1731 = vmatpush.bf16.msra.mxu0 %v1270
        %1732 = vmatpush.bf16.msra.mxu0 %v1268
        %1733 = vmatmul.bf16.gmra.mxu0 %v752
        %v1734 = vpop.f32.mrf.mxu0
        %v1735 = vadd.f32 %v1721, %v1734
        %v1736 = vpop.f32.mrf.mxu0
        %v1737 = vadd.f32 %v1723, %v1736
        %1738 = vdwg.mxu0
        %1739 = vmatpush.bf16.msra.mxu0 %v1298
        %1740 = vmatpush.bf16.msra.mxu0 %v1296
        %1741 = vmatpush.bf16.msra.mxu0 %v1294
        %1742 = vmatpush.bf16.msra.mxu0 %v1292
        %1743 = vmatpush.bf16.msra.mxu0 %v1290
        %1744 = vmatpush.bf16.msra.mxu0 %v1288
        %1745 = vmatpush.bf16.msra.mxu0 %v1286
        %1746 = vmatpush.bf16.msra.mxu0 %v1284
        %1747 = vmatmul.bf16.gmra.mxu0 %v753
        %v1748 = vpop.f32.mrf.mxu0
        %v1749 = vadd.f32 %v1735, %v1748
        %v1750 = vpop.f32.mrf.mxu0
        %v1751 = vadd.f32 %v1737, %v1750
        %1752 = vdwg.mxu0
        %1753 = vmatpush.bf16.msra.mxu0 %v1314
        %1754 = vmatpush.bf16.msra.mxu0 %v1312
        %1755 = vmatpush.bf16.msra.mxu0 %v1310
        %1756 = vmatpush.bf16.msra.mxu0 %v1308
        %1757 = vmatpush.bf16.msra.mxu0 %v1306
        %1758 = vmatpush.bf16.msra.mxu0 %v1304
        %1759 = vmatpush.bf16.msra.mxu0 %v1302
        %1760 = vmatpush.bf16.msra.mxu0 %v1300
        %1761 = vmatmul.bf16.gmra.mxu0 %v754
        %v1762 = vpop.f32.mrf.mxu0
        %v1763 = vadd.f32 %v1749, %v1762
        %v1764 = vpop.f32.mrf.mxu0
        %v1765 = vadd.f32 %v1751, %v1764
        %1766 = vdwg.mxu0
        %1767 = vmatpush.bf16.msra.mxu0 %v1330
        %1768 = vmatpush.bf16.msra.mxu0 %v1328
        %1769 = vmatpush.bf16.msra.mxu0 %v1326
        %1770 = vmatpush.bf16.msra.mxu0 %v1324
        %1771 = vmatpush.bf16.msra.mxu0 %v1322
        %1772 = vmatpush.bf16.msra.mxu0 %v1320
        %1773 = vmatpush.bf16.msra.mxu0 %v1318
        %1774 = vmatpush.bf16.msra.mxu0 %v1316
        %1775 = vmatmul.bf16.gmra.mxu0 %v755
        %v1776 = vpop.f32.mrf.mxu0
        %v1777 = vadd.f32 %v1763, %v1776
        %v1778 = vpop.f32.mrf.mxu0
        %v1779 = vadd.f32 %v1765, %v1778
        %1780 = vdwg.mxu0
        %1781 = vmatpush.bf16.msra.mxu0 %v1346
        %1782 = vmatpush.bf16.msra.mxu0 %v1344
        %1783 = vmatpush.bf16.msra.mxu0 %v1342
        %1784 = vmatpush.bf16.msra.mxu0 %v1340
        %1785 = vmatpush.bf16.msra.mxu0 %v1338
        %1786 = vmatpush.bf16.msra.mxu0 %v1336
        %1787 = vmatpush.bf16.msra.mxu0 %v1334
        %1788 = vmatpush.bf16.msra.mxu0 %v1332
        %1789 = vmatmul.bf16.gmra.mxu0 %v756
        %v1790 = vpop.f32.mrf.mxu0
        %v1791 = vadd.f32 %v1777, %v1790
        %v1792 = vpop.f32.mrf.mxu0
        %v1793 = vadd.f32 %v1779, %v1792
        %1794 = vdwg.mxu0
        %1795 = vmatpush.bf16.msra.mxu0 %v1362
        %1796 = vmatpush.bf16.msra.mxu0 %v1360
        %1797 = vmatpush.bf16.msra.mxu0 %v1358
        %1798 = vmatpush.bf16.msra.mxu0 %v1356
        %1799 = vmatpush.bf16.msra.mxu0 %v1354
        %1800 = vmatpush.bf16.msra.mxu0 %v1352
        %1801 = vmatpush.bf16.msra.mxu0 %v1350
        %1802 = vmatpush.bf16.msra.mxu0 %v1348
        %1803 = vmatmul.bf16.gmra.mxu0 %v757
        %v1804 = vpop.f32.mrf.mxu0
        %v1805 = vadd.f32 %v1791, %v1804
        %v1806 = vpop.f32.mrf.mxu0
        %v1807 = vadd.f32 %v1793, %v1806
        %1808 = vdwg.mxu0
        %1809 = vmatpush.bf16.msra.mxu0 %v1378
        %1810 = vmatpush.bf16.msra.mxu0 %v1376
        %1811 = vmatpush.bf16.msra.mxu0 %v1374
        %1812 = vmatpush.bf16.msra.mxu0 %v1372
        %1813 = vmatpush.bf16.msra.mxu0 %v1370
        %1814 = vmatpush.bf16.msra.mxu0 %v1368
        %1815 = vmatpush.bf16.msra.mxu0 %v1366
        %1816 = vmatpush.bf16.msra.mxu0 %v1364
        %1817 = vmatmul.bf16.gmra.mxu0 %v758
        %v1818 = vpop.f32.mrf.mxu0
        %v1819 = vadd.f32 %v1805, %v1818
        %v1820 = vpop.f32.mrf.mxu0
        %v1821 = vadd.f32 %v1807, %v1820
        %1822 = vdwg.mxu0
        %1823 = vmatpush.bf16.msra.mxu0 %v1394
        %1824 = vmatpush.bf16.msra.mxu0 %v1392
        %1825 = vmatpush.bf16.msra.mxu0 %v1390
        %1826 = vmatpush.bf16.msra.mxu0 %v1388
        %1827 = vmatpush.bf16.msra.mxu0 %v1386
        %1828 = vmatpush.bf16.msra.mxu0 %v1384
        %1829 = vmatpush.bf16.msra.mxu0 %v1382
        %1830 = vmatpush.bf16.msra.mxu0 %v1380
        %1831 = vmatmul.bf16.gmra.mxu0 %v759
        %v1832 = vpop.f32.mrf.mxu0
        %v1833 = vadd.f32 %v1819, %v1832
        %v1834 = vpop.f32.mrf.mxu0
        %v1835 = vadd.f32 %v1821, %v1834
        %1836 = vdwg.mxu0
        %1837 = vmatpush.bf16.msra.mxu0 %v1410
        %1838 = vmatpush.bf16.msra.mxu0 %v1408
        %1839 = vmatpush.bf16.msra.mxu0 %v1406
        %1840 = vmatpush.bf16.msra.mxu0 %v1404
        %1841 = vmatpush.bf16.msra.mxu0 %v1402
        %1842 = vmatpush.bf16.msra.mxu0 %v1400
        %1843 = vmatpush.bf16.msra.mxu0 %v1398
        %1844 = vmatpush.bf16.msra.mxu0 %v1396
        %1845 = vmatmul.bf16.gmra.mxu0 %v760
        %v1846 = vpop.f32.mrf.mxu0
        %v1847 = vadd.f32 %v1833, %v1846
        %v1848 = vpop.f32.mrf.mxu0
        %v1849 = vadd.f32 %v1835, %v1848
        %1850 = vdwg.mxu0
        %v1851 = vadd.f32 %v547, %v1707
        %v1852 = vadd.f32 %v548, %v1847
        %v1853 = vadd.f32 %v547, %v1709
        %v1854 = vadd.f32 %v548, %v1849
        %v1855 = vld [vmem:[#allocation2] sm:$0xff]
        %v1856 = vld [vmem:[#allocation2 + $0x8] sm:$0xff]
        %v1857 = vld [vmem:[#allocation2 + $0x10] sm:$0xff]
        %v1858 = vld [vmem:[#allocation2 + $0x18] sm:$0xff]
        %v1859 = vld [vmem:[#allocation2 + $0x20] sm:$0xff]
        %v1860 = vld [vmem:[#allocation2 + $0x28] sm:$0xff]
        %v1861 = vld [vmem:[#allocation2 + $0x30] sm:$0xff]
        %v1862 = vld [vmem:[#allocation2 + $0x38] sm:$0xff]
        %v1863 = vld [vmem:[#allocation2 + $0x40] sm:$0xff]
        %v1864 = vld [vmem:[#allocation2 + $0x48] sm:$0xff]
        %v1865 = vld [vmem:[#allocation2 + $0x50] sm:$0x11]
        %v1866 = vld [vmem:[#allocation2 + $0x58] sm:$0x11]
        %v1867 = vld [vmem:[#allocation2 + $0x60] sm:$0x11]
        %v1868 = vld [vmem:[#allocation2 + $0x68] sm:$0x11]
        %v1869 = vld [vmem:[#allocation2 + $0x70] sm:$0x11]
        %s1870 = scalar_lea.vmem [#allocation3], 1280
        %v1871 = vld [vmem:[%s1870] sm:$0xff]
        %v1872 = vld [vmem:[%s1870 + $0x8] sm:$0xff]
        %v1873 = vld [vmem:[%s1870 + $0x10] sm:$0xff]
        %v1874 = vld [vmem:[%s1870 + $0x18] sm:$0xff]
        %v1875 = vld [vmem:[%s1870 + $0x20] sm:$0xff]
        %v1876 = vld [vmem:[%s1870 + $0x28] sm:$0xff]
        %v1877 = vld [vmem:[%s1870 + $0x30] sm:$0xff]
        %v1878 = vld [vmem:[%s1870 + $0x38] sm:$0xff]
        %v1879 = vld [vmem:[%s1870 + $0x40] sm:$0xff]
        %v1880 = vld [vmem:[%s1870 + $0x48] sm:$0xff]
        %v1881 = vld [vmem:[%s1870 + $0x50] sm:$0xff]
        %v1882 = vld [vmem:[%s1870 + $0x58] sm:$0xff]
        %v1883 = vld [vmem:[%s1870 + $0x60] sm:$0xff]
        %v1884 = vld [vmem:[%s1870 + $0x68] sm:$0xff]
        %v1885 = vld [vmem:[%s1870 + $0x70] sm:$0xff]
        %v1886 = vld [vmem:[%s1870 + $0x78] sm:$0xff]
        %v1887 = vld [vmem:[%s1870 + $0x80] sm:$0xff]
        %v1888 = vld [vmem:[%s1870 + $0x88] sm:$0xff]
        %v1889 = vld [vmem:[%s1870 + $0x90] sm:$0xff]
        %v1890 = vld [vmem:[%s1870 + $0x98] sm:$0xff]
        %v1891 = vld [vmem:[%s1870 + $0xa0] sm:$0xff]
        %v1892 = vld [vmem:[%s1870 + $0xa8] sm:$0xff]
        %v1893 = vld [vmem:[%s1870 + $0xb0] sm:$0xff]
        %v1894 = vld [vmem:[%s1870 + $0xb8] sm:$0xff]
        %v1895 = vld [vmem:[%s1870 + $0xc0] sm:$0xff]
        %v1896 = vld [vmem:[%s1870 + $0xc8] sm:$0xff]
        %v1897 = vld [vmem:[%s1870 + $0xd0] sm:$0xff]
        %v1898 = vld [vmem:[%s1870 + $0xd8] sm:$0xff]
        %v1899 = vld [vmem:[%s1870 + $0xe0] sm:$0xff]
        %v1900 = vld [vmem:[%s1870 + $0xe8] sm:$0xff]
        %v1901 = vld [vmem:[%s1870 + $0xf0] sm:$0xff]
        %v1902 = vld [vmem:[%s1870 + $0xf8] sm:$0xff]
        %v1903 = vld [vmem:[%s1870 + $0x100] sm:$0xff]
        %v1904 = vld [vmem:[%s1870 + $0x108] sm:$0xff]
        %v1905 = vld [vmem:[%s1870 + $0x110] sm:$0xff]
        %v1906 = vld [vmem:[%s1870 + $0x118] sm:$0xff]
        %v1907 = vld [vmem:[%s1870 + $0x120] sm:$0xff]
        %v1908 = vld [vmem:[%s1870 + $0x128] sm:$0xff]
        %v1909 = vld [vmem:[%s1870 + $0x130] sm:$0xff]
        %v1910 = vld [vmem:[%s1870 + $0x138] sm:$0xff]
        %v1911 = vld [vmem:[%s1870 + $0x140] sm:$0xff]
        %v1912 = vld [vmem:[%s1870 + $0x148] sm:$0xff]
        %v1913 = vld [vmem:[%s1870 + $0x150] sm:$0xff]
        %v1914 = vld [vmem:[%s1870 + $0x158] sm:$0xff]
        %v1915 = vld [vmem:[%s1870 + $0x160] sm:$0xff]
        %v1916 = vld [vmem:[%s1870 + $0x168] sm:$0xff]
        %v1917 = vld [vmem:[%s1870 + $0x170] sm:$0xff]
        %v1918 = vld [vmem:[%s1870 + $0x178] sm:$0xff]
        %v1919 = vld [vmem:[%s1870 + $0x180] sm:$0xff]
        %v1920 = vld [vmem:[%s1870 + $0x188] sm:$0xff]
        %v1921 = vld [vmem:[%s1870 + $0x190] sm:$0xff]
        %v1922 = vld [vmem:[%s1870 + $0x198] sm:$0xff]
        %v1923 = vld [vmem:[%s1870 + $0x1a0] sm:$0xff]
        %v1924 = vld [vmem:[%s1870 + $0x1a8] sm:$0xff]
        %v1925 = vld [vmem:[%s1870 + $0x1b0] sm:$0xff]
        %v1926 = vld [vmem:[%s1870 + $0x1b8] sm:$0xff]
        %v1927 = vld [vmem:[%s1870 + $0x1c0] sm:$0xff]
        %v1928 = vld [vmem:[%s1870 + $0x1c8] sm:$0xff]
        %v1929 = vld [vmem:[%s1870 + $0x1d0] sm:$0xff]
        %v1930 = vld [vmem:[%s1870 + $0x1d8] sm:$0xff]
        %v1931 = vld [vmem:[%s1870 + $0x1e0] sm:$0xff]
        %v1932 = vld [vmem:[%s1870 + $0x1e8] sm:$0xff]
        %v1933 = vld [vmem:[%s1870 + $0x1f0] sm:$0xff]
        %v1934 = vld [vmem:[%s1870 + $0x1f8] sm:$0xff]
        %v1935 = vld [vmem:[%s1870 + $0x200] sm:$0xff]
        %v1936 = vld [vmem:[%s1870 + $0x208] sm:$0xff]
        %v1937 = vld [vmem:[%s1870 + $0x210] sm:$0xff]
        %v1938 = vld [vmem:[%s1870 + $0x218] sm:$0xff]
        %v1939 = vld [vmem:[%s1870 + $0x220] sm:$0xff]
        %v1940 = vld [vmem:[%s1870 + $0x228] sm:$0xff]
        %v1941 = vld [vmem:[%s1870 + $0x230] sm:$0xff]
        %v1942 = vld [vmem:[%s1870 + $0x238] sm:$0xff]
        %v1943 = vld [vmem:[%s1870 + $0x240] sm:$0xff]
        %v1944 = vld [vmem:[%s1870 + $0x248] sm:$0xff]
        %v1945 = vld [vmem:[%s1870 + $0x250] sm:$0xff]
        %v1946 = vld [vmem:[%s1870 + $0x258] sm:$0xff]
        %v1947 = vld [vmem:[%s1870 + $0x260] sm:$0xff]
        %v1948 = vld [vmem:[%s1870 + $0x268] sm:$0xff]
        %v1949 = vld [vmem:[%s1870 + $0x270] sm:$0xff]
        %v1950 = vld [vmem:[%s1870 + $0x278] sm:$0xff]
        %v1951 = vld [vmem:[%s1870 + $0x280] sm:$0xff]
        %v1952 = vld [vmem:[%s1870 + $0x288] sm:$0xff]
        %v1953 = vld [vmem:[%s1870 + $0x290] sm:$0xff]
        %v1954 = vld [vmem:[%s1870 + $0x298] sm:$0xff]
        %v1955 = vld [vmem:[%s1870 + $0x2a0] sm:$0xff]
        %v1956 = vld [vmem:[%s1870 + $0x2a8] sm:$0xff]
        %v1957 = vld [vmem:[%s1870 + $0x2b0] sm:$0xff]
        %v1958 = vld [vmem:[%s1870 + $0x2b8] sm:$0xff]
        %v1959 = vld [vmem:[%s1870 + $0x2c0] sm:$0xff]
        %v1960 = vld [vmem:[%s1870 + $0x2c8] sm:$0xff]
        %v1961 = vld [vmem:[%s1870 + $0x2d0] sm:$0xff]
        %v1962 = vld [vmem:[%s1870 + $0x2d8] sm:$0xff]
        %v1963 = vld [vmem:[%s1870 + $0x2e0] sm:$0xff]
        %v1964 = vld [vmem:[%s1870 + $0x2e8] sm:$0xff]
        %v1965 = vld [vmem:[%s1870 + $0x2f0] sm:$0xff]
        %v1966 = vld [vmem:[%s1870 + $0x2f8] sm:$0xff]
        %v1967 = vld [vmem:[%s1870 + $0x300] sm:$0xff]
        %v1968 = vld [vmem:[%s1870 + $0x308] sm:$0xff]
        %v1969 = vld [vmem:[%s1870 + $0x310] sm:$0xff]
        %v1970 = vld [vmem:[%s1870 + $0x318] sm:$0xff]
        %v1971 = vld [vmem:[%s1870 + $0x320] sm:$0xff]
        %v1972 = vld [vmem:[%s1870 + $0x328] sm:$0xff]
        %v1973 = vld [vmem:[%s1870 + $0x330] sm:$0xff]
        %v1974 = vld [vmem:[%s1870 + $0x338] sm:$0xff]
        %v1975 = vld [vmem:[%s1870 + $0x340] sm:$0xff]
        %v1976 = vld [vmem:[%s1870 + $0x348] sm:$0xff]
        %v1977 = vld [vmem:[%s1870 + $0x350] sm:$0xff]
        %v1978 = vld [vmem:[%s1870 + $0x358] sm:$0xff]
        %v1979 = vld [vmem:[%s1870 + $0x360] sm:$0xff]
        %v1980 = vld [vmem:[%s1870 + $0x368] sm:$0xff]
        %v1981 = vld [vmem:[%s1870 + $0x370] sm:$0xff]
        %v1982 = vld [vmem:[%s1870 + $0x378] sm:$0xff]
        %v1983 = vld [vmem:[%s1870 + $0x380] sm:$0xff]
        %v1984 = vld [vmem:[%s1870 + $0x388] sm:$0xff]
        %v1985 = vld [vmem:[%s1870 + $0x390] sm:$0xff]
        %v1986 = vld [vmem:[%s1870 + $0x398] sm:$0xff]
        %v1987 = vld [vmem:[%s1870 + $0x3a0] sm:$0xff]
        %v1988 = vld [vmem:[%s1870 + $0x3a8] sm:$0xff]
        %v1989 = vld [vmem:[%s1870 + $0x3b0] sm:$0xff]
        %v1990 = vld [vmem:[%s1870 + $0x3b8] sm:$0xff]
        %v1991 = vld [vmem:[%s1870 + $0x3c0] sm:$0xff]
        %v1992 = vld [vmem:[%s1870 + $0x3c8] sm:$0xff]
        %v1993 = vld [vmem:[%s1870 + $0x3d0] sm:$0xff]
        %v1994 = vld [vmem:[%s1870 + $0x3d8] sm:$0xff]
        %v1995 = vld [vmem:[%s1870 + $0x3e0] sm:$0xff]
        %v1996 = vld [vmem:[%s1870 + $0x3e8] sm:$0xff]
        %v1997 = vld [vmem:[%s1870 + $0x3f0] sm:$0xff]
        %v1998 = vld [vmem:[%s1870 + $0x3f8] sm:$0xff]
        %v1999 = vld [vmem:[%s1870 + $0x400] sm:$0xff]
        %v2000 = vld [vmem:[%s1870 + $0x408] sm:$0xff]
        %v2001 = vld [vmem:[%s1870 + $0x410] sm:$0xff]
        %v2002 = vld [vmem:[%s1870 + $0x418] sm:$0xff]
        %v2003 = vld [vmem:[%s1870 + $0x420] sm:$0xff]
        %v2004 = vld [vmem:[%s1870 + $0x428] sm:$0xff]
        %v2005 = vld [vmem:[%s1870 + $0x430] sm:$0xff]
        %v2006 = vld [vmem:[%s1870 + $0x438] sm:$0xff]
        %v2007 = vld [vmem:[%s1870 + $0x440] sm:$0xff]
        %v2008 = vld [vmem:[%s1870 + $0x448] sm:$0xff]
        %v2009 = vld [vmem:[%s1870 + $0x450] sm:$0xff]
        %v2010 = vld [vmem:[%s1870 + $0x458] sm:$0xff]
        %v2011 = vld [vmem:[%s1870 + $0x460] sm:$0xff]
        %v2012 = vld [vmem:[%s1870 + $0x468] sm:$0xff]
        %v2013 = vld [vmem:[%s1870 + $0x470] sm:$0xff]
        %v2014 = vld [vmem:[%s1870 + $0x478] sm:$0xff]
        %v2015 = vld [vmem:[%s1870 + $0x480] sm:$0xff]
        %v2016 = vld [vmem:[%s1870 + $0x488] sm:$0xff]
        %v2017 = vld [vmem:[%s1870 + $0x490] sm:$0xff]
        %v2018 = vld [vmem:[%s1870 + $0x498] sm:$0xff]
        %v2019 = vld [vmem:[%s1870 + $0x4a0] sm:$0xff]
        %v2020 = vld [vmem:[%s1870 + $0x4a8] sm:$0xff]
        %v2021 = vld [vmem:[%s1870 + $0x4b0] sm:$0xff]
        %v2022 = vld [vmem:[%s1870 + $0x4b8] sm:$0xff]
        %v2023 = vld [vmem:[%s1870 + $0x4c0] sm:$0xff]
        %v2024 = vld [vmem:[%s1870 + $0x4c8] sm:$0xff]
        %v2025 = vld [vmem:[%s1870 + $0x4d0] sm:$0xff]
        %v2026 = vld [vmem:[%s1870 + $0x4d8] sm:$0xff]
        %v2027 = vld [vmem:[%s1870 + $0x4e0] sm:$0xff]
        %v2028 = vld [vmem:[%s1870 + $0x4e8] sm:$0xff]
        %v2029 = vld [vmem:[%s1870 + $0x4f0] sm:$0xff]
        %v2030 = vld [vmem:[%s1870 + $0x4f8] sm:$0xff]
        %v2046 = vunpack.c.l.b16 %v1855
        %v2047 = vunpack.c.h.b16 %v1855
        %v2048 = vunpack.c.l.b16 %v1856
        %v2049 = vunpack.c.h.b16 %v1856
        %v2050 = vunpack.c.l.b16 %v1857
        %v2051 = vunpack.c.h.b16 %v1857
        %v2052 = vunpack.c.l.b16 %v1858
        %v2053 = vunpack.c.h.b16 %v1858
        %v2054 = vunpack.c.l.b16 %v1859
        %v2055 = vunpack.c.h.b16 %v1859
        %v2056 = vunpack.c.l.b16 %v1860
        %v2057 = vunpack.c.h.b16 %v1860
        %v2058 = vunpack.c.l.b16 %v1861
        %v2059 = vunpack.c.h.b16 %v1861
        %v2060 = vunpack.c.l.b16 %v1862
        %v2061 = vunpack.c.h.b16 %v1862
        %v2062 = vunpack.c.l.b16 %v1863
        %v2063 = vunpack.c.h.b16 %v1863
        %v2064 = vunpack.c.l.b16 %v1864
        %v2065 = vunpack.c.h.b16 %v1864
        %v2066 = vunpack.c.l.b16 %v1865
        %v2067 = vunpack.c.h.b16 %v1865
        %v2068 = vunpack.c.l.b16 %v1866
        %v2069 = vunpack.c.h.b16 %v1866
        %v2070 = vunpack.c.l.b16 %v1867
        %v2071 = vunpack.c.h.b16 %v1867
        %v2072 = vunpack.c.l.b16 %v1868
        %v2073 = vunpack.c.h.b16 %v1868
        %v2074 = vunpack.c.l.b16 %v1869
        %v2075 = vunpack.c.h.b16 %v1869
        %v2076 = vpack.c.b16 %v2056, %v2046
        %v2077 = vpack.c.b16 %v2057, %v2047
        %v2078 = vpack.c.b16 %v2058, %v2048
        %v2079 = vpack.c.b16 %v2059, %v2049
        %v2080 = vpack.c.b16 %v2060, %v2050
        %v2081 = vpack.c.b16 %v2061, %v2051
        %v2082 = vpack.c.b16 %v2062, %v2052
        %v2083 = vpack.c.b16 %v2063, %v2053
        %v2084 = vpack.c.b16 %v2064, %v2054
        %v2085 = vpack.c.b16 %v2065, %v2055
        %v2086 = vpack.c.b16 %v2066, %v2066
        %v2087 = vpack.c.b16 %v2067, %v2067
        %v2088 = vpack.c.b16 %v2068, %v2068
        %v2089 = vpack.c.b16 %v2069, %v2069
        %v2090 = vpack.c.b16 %v2070, %v2070
        %v2091 = vpack.c.b16 %v2071, %v2071
        %v2092 = vpack.c.b16 %v2072, %v2072
        %v2093 = vpack.c.b16 %v2073, %v2073
        %v2094 = vpack.c.b16 %v2074, %v2074
        %v2095 = vpack.c.b16 %v2075, %v2075
        %vm2096 = vsmask.f32 7424
        %v2098 = vshrl.u32 %v2076, 16
        %v2100 = vshll.u32 %v2076, 16
        %v2102 = vrot.slane %v2100, 1
        %v2103 = vor.u32 %v2098, %v2102
        %v2105 = vshll.u32 %v2086, 16
        %v2107 = vrot.slane %v2105, 1
        %v2108 = vsel %vm2096, %v2103, %v2107
        %v2110 = vshrl.u32 %v2077, 16
        %v2112 = vshll.u32 %v2077, 16
        %v2114 = vrot.slane %v2112, 1
        %v2115 = vor.u32 %v2110, %v2114
        %v2117 = vshll.u32 %v2087, 16
        %v2119 = vrot.slane %v2117, 1
        %v2120 = vsel %vm2096, %v2115, %v2119
        %v2122 = vshrl.u32 %v2078, 16
        %v2124 = vshll.u32 %v2078, 16
        %v2126 = vrot.slane %v2124, 1
        %v2127 = vor.u32 %v2122, %v2126
        %v2129 = vshll.u32 %v2088, 16
        %v2131 = vrot.slane %v2129, 1
        %v2132 = vsel %vm2096, %v2127, %v2131
        %v2134 = vshrl.u32 %v2079, 16
        %v2136 = vshll.u32 %v2079, 16
        %v2138 = vrot.slane %v2136, 1
        %v2139 = vor.u32 %v2134, %v2138
        %v2141 = vshll.u32 %v2089, 16
        %v2143 = vrot.slane %v2141, 1
        %v2144 = vsel %vm2096, %v2139, %v2143
        %v2146 = vshrl.u32 %v2080, 16
        %v2148 = vshll.u32 %v2080, 16
        %v2150 = vrot.slane %v2148, 1
        %v2151 = vor.u32 %v2146, %v2150
        %v2153 = vshll.u32 %v2090, 16
        %v2155 = vrot.slane %v2153, 1
        %v2156 = vsel %vm2096, %v2151, %v2155
        %v2158 = vshrl.u32 %v2081, 16
        %v2160 = vshll.u32 %v2081, 16
        %v2162 = vrot.slane %v2160, 1
        %v2163 = vor.u32 %v2158, %v2162
        %v2165 = vshll.u32 %v2091, 16
        %v2167 = vrot.slane %v2165, 1
        %v2168 = vsel %vm2096, %v2163, %v2167
        %v2170 = vshrl.u32 %v2082, 16
        %v2172 = vshll.u32 %v2082, 16
        %v2174 = vrot.slane %v2172, 1
        %v2175 = vor.u32 %v2170, %v2174
        %v2177 = vshll.u32 %v2092, 16
        %v2179 = vrot.slane %v2177, 1
        %v2180 = vsel %vm2096, %v2175, %v2179
        %v2182 = vshrl.u32 %v2083, 16
        %v2184 = vshll.u32 %v2083, 16
        %v2186 = vrot.slane %v2184, 1
        %v2187 = vor.u32 %v2182, %v2186
        %v2189 = vshll.u32 %v2093, 16
        %v2191 = vrot.slane %v2189, 1
        %v2192 = vsel %vm2096, %v2187, %v2191
        %v2194 = vshrl.u32 %v2084, 16
        %v2196 = vshll.u32 %v2084, 16
        %v2198 = vrot.slane %v2196, 1
        %v2199 = vor.u32 %v2194, %v2198
        %v2201 = vshll.u32 %v2094, 16
        %v2203 = vrot.slane %v2201, 1
        %v2204 = vsel %vm2096, %v2199, %v2203
        %v2206 = vshrl.u32 %v2085, 16
        %v2208 = vshll.u32 %v2085, 16
        %v2210 = vrot.slane %v2208, 1
        %v2211 = vor.u32 %v2206, %v2210
        %v2213 = vshll.u32 %v2095, 16
        %v2215 = vrot.slane %v2213, 1
        %v2216 = vsel %vm2096, %v2211, %v2215
        %v2387 = vunpack.c.l.b16 %v1871
        %v2388 = vunpack.c.h.b16 %v1871
        %v2389 = vunpack.c.l.b16 %v1872
        %v2390 = vunpack.c.h.b16 %v1872
        %v2391 = vunpack.c.l.b16 %v1873
        %v2392 = vunpack.c.h.b16 %v1873
        %v2393 = vunpack.c.l.b16 %v1874
        %v2394 = vunpack.c.h.b16 %v1874
        %v2395 = vunpack.c.l.b16 %v1875
        %v2396 = vunpack.c.h.b16 %v1875
        %v2397 = vunpack.c.l.b16 %v1876
        %v2398 = vunpack.c.h.b16 %v1876
        %v2399 = vunpack.c.l.b16 %v1877
        %v2400 = vunpack.c.h.b16 %v1877
        %v2401 = vunpack.c.l.b16 %v1878
        %v2402 = vunpack.c.h.b16 %v1878
        %v2403 = vunpack.c.l.b16 %v1879
        %v2404 = vunpack.c.h.b16 %v1879
        %v2405 = vunpack.c.l.b16 %v1880
        %v2406 = vunpack.c.h.b16 %v1880
        %v2407 = vunpack.c.l.b16 %v1881
        %v2408 = vunpack.c.h.b16 %v1881
        %v2409 = vunpack.c.l.b16 %v1882
        %v2410 = vunpack.c.h.b16 %v1882
        %v2411 = vunpack.c.l.b16 %v1883
        %v2412 = vunpack.c.h.b16 %v1883
        %v2413 = vunpack.c.l.b16 %v1884
        %v2414 = vunpack.c.h.b16 %v1884
        %v2415 = vunpack.c.l.b16 %v1885
        %v2416 = vunpack.c.h.b16 %v1885
        %v2417 = vunpack.c.l.b16 %v1886
        %v2418 = vunpack.c.h.b16 %v1886
        %v2419 = vunpack.c.l.b16 %v1887
        %v2420 = vunpack.c.h.b16 %v1887
        %v2421 = vunpack.c.l.b16 %v1888
        %v2422 = vunpack.c.h.b16 %v1888
        %v2423 = vunpack.c.l.b16 %v1889
        %v2424 = vunpack.c.h.b16 %v1889
        %v2425 = vunpack.c.l.b16 %v1890
        %v2426 = vunpack.c.h.b16 %v1890
        %v2427 = vunpack.c.l.b16 %v1891
        %v2428 = vunpack.c.h.b16 %v1891
        %v2429 = vunpack.c.l.b16 %v1892
        %v2430 = vunpack.c.h.b16 %v1892
        %v2431 = vunpack.c.l.b16 %v1893
        %v2432 = vunpack.c.h.b16 %v1893
        %v2433 = vunpack.c.l.b16 %v1894
        %v2434 = vunpack.c.h.b16 %v1894
        %v2435 = vunpack.c.l.b16 %v1895
        %v2436 = vunpack.c.h.b16 %v1895
        %v2437 = vunpack.c.l.b16 %v1896
        %v2438 = vunpack.c.h.b16 %v1896
        %v2439 = vunpack.c.l.b16 %v1897
        %v2440 = vunpack.c.h.b16 %v1897
        %v2441 = vunpack.c.l.b16 %v1898
        %v2442 = vunpack.c.h.b16 %v1898
        %v2443 = vunpack.c.l.b16 %v1899
        %v2444 = vunpack.c.h.b16 %v1899
        %v2445 = vunpack.c.l.b16 %v1900
        %v2446 = vunpack.c.h.b16 %v1900
        %v2447 = vunpack.c.l.b16 %v1901
        %v2448 = vunpack.c.h.b16 %v1901
        %v2449 = vunpack.c.l.b16 %v1902
        %v2450 = vunpack.c.h.b16 %v1902
        %v2451 = vunpack.c.l.b16 %v1903
        %v2452 = vunpack.c.h.b16 %v1903
        %v2453 = vunpack.c.l.b16 %v1904
        %v2454 = vunpack.c.h.b16 %v1904
        %v2455 = vunpack.c.l.b16 %v1905
        %v2456 = vunpack.c.h.b16 %v1905
        %v2457 = vunpack.c.l.b16 %v1906
        %v2458 = vunpack.c.h.b16 %v1906
        %v2459 = vunpack.c.l.b16 %v1907
        %v2460 = vunpack.c.h.b16 %v1907
        %v2461 = vunpack.c.l.b16 %v1908
        %v2462 = vunpack.c.h.b16 %v1908
        %v2463 = vunpack.c.l.b16 %v1909
        %v2464 = vunpack.c.h.b16 %v1909
        %v2465 = vunpack.c.l.b16 %v1910
        %v2466 = vunpack.c.h.b16 %v1910
        %v2467 = vunpack.c.l.b16 %v1911
        %v2468 = vunpack.c.h.b16 %v1911
        %v2469 = vunpack.c.l.b16 %v1912
        %v2470 = vunpack.c.h.b16 %v1912
        %v2471 = vunpack.c.l.b16 %v1913
        %v2472 = vunpack.c.h.b16 %v1913
        %v2473 = vunpack.c.l.b16 %v1914
        %v2474 = vunpack.c.h.b16 %v1914
        %v2475 = vunpack.c.l.b16 %v1915
        %v2476 = vunpack.c.h.b16 %v1915
        %v2477 = vunpack.c.l.b16 %v1916
        %v2478 = vunpack.c.h.b16 %v1916
        %v2479 = vunpack.c.l.b16 %v1917
        %v2480 = vunpack.c.h.b16 %v1917
        %v2481 = vunpack.c.l.b16 %v1918
        %v2482 = vunpack.c.h.b16 %v1918
        %v2483 = vunpack.c.l.b16 %v1919
        %v2484 = vunpack.c.h.b16 %v1919
        %v2485 = vunpack.c.l.b16 %v1920
        %v2486 = vunpack.c.h.b16 %v1920
        %v2487 = vunpack.c.l.b16 %v1921
        %v2488 = vunpack.c.h.b16 %v1921
        %v2489 = vunpack.c.l.b16 %v1922
        %v2490 = vunpack.c.h.b16 %v1922
        %v2491 = vunpack.c.l.b16 %v1923
        %v2492 = vunpack.c.h.b16 %v1923
        %v2493 = vunpack.c.l.b16 %v1924
        %v2494 = vunpack.c.h.b16 %v1924
        %v2495 = vunpack.c.l.b16 %v1925
        %v2496 = vunpack.c.h.b16 %v1925
        %v2497 = vunpack.c.l.b16 %v1926
        %v2498 = vunpack.c.h.b16 %v1926
        %v2499 = vunpack.c.l.b16 %v1927
        %v2500 = vunpack.c.h.b16 %v1927
        %v2501 = vunpack.c.l.b16 %v1928
        %v2502 = vunpack.c.h.b16 %v1928
        %v2503 = vunpack.c.l.b16 %v1929
        %v2504 = vunpack.c.h.b16 %v1929
        %v2505 = vunpack.c.l.b16 %v1930
        %v2506 = vunpack.c.h.b16 %v1930
        %v2507 = vunpack.c.l.b16 %v1931
        %v2508 = vunpack.c.h.b16 %v1931
        %v2509 = vunpack.c.l.b16 %v1932
        %v2510 = vunpack.c.h.b16 %v1932
        %v2511 = vunpack.c.l.b16 %v1933
        %v2512 = vunpack.c.h.b16 %v1933
        %v2513 = vunpack.c.l.b16 %v1934
        %v2514 = vunpack.c.h.b16 %v1934
        %v2515 = vunpack.c.l.b16 %v1935
        %v2516 = vunpack.c.h.b16 %v1935
        %v2517 = vunpack.c.l.b16 %v1936
        %v2518 = vunpack.c.h.b16 %v1936
        %v2519 = vunpack.c.l.b16 %v1937
        %v2520 = vunpack.c.h.b16 %v1937
        %v2521 = vunpack.c.l.b16 %v1938
        %v2522 = vunpack.c.h.b16 %v1938
        %v2523 = vunpack.c.l.b16 %v1939
        %v2524 = vunpack.c.h.b16 %v1939
        %v2525 = vunpack.c.l.b16 %v1940
        %v2526 = vunpack.c.h.b16 %v1940
        %v2527 = vunpack.c.l.b16 %v1941
        %v2528 = vunpack.c.h.b16 %v1941
        %v2529 = vunpack.c.l.b16 %v1942
        %v2530 = vunpack.c.h.b16 %v1942
        %v2531 = vunpack.c.l.b16 %v1943
        %v2532 = vunpack.c.h.b16 %v1943
        %v2533 = vunpack.c.l.b16 %v1944
        %v2534 = vunpack.c.h.b16 %v1944
        %v2535 = vunpack.c.l.b16 %v1945
        %v2536 = vunpack.c.h.b16 %v1945
        %v2537 = vunpack.c.l.b16 %v1946
        %v2538 = vunpack.c.h.b16 %v1946
        %v2539 = vunpack.c.l.b16 %v1947
        %v2540 = vunpack.c.h.b16 %v1947
        %v2541 = vunpack.c.l.b16 %v1948
        %v2542 = vunpack.c.h.b16 %v1948
        %v2543 = vunpack.c.l.b16 %v1949
        %v2544 = vunpack.c.h.b16 %v1949
        %v2545 = vunpack.c.l.b16 %v1950
        %v2546 = vunpack.c.h.b16 %v1950
        %v2547 = vunpack.c.l.b16 %v1951
        %v2548 = vunpack.c.h.b16 %v1951
        %v2549 = vunpack.c.l.b16 %v1952
        %v2550 = vunpack.c.h.b16 %v1952
        %v2551 = vunpack.c.l.b16 %v1953
        %v2552 = vunpack.c.h.b16 %v1953
        %v2553 = vunpack.c.l.b16 %v1954
        %v2554 = vunpack.c.h.b16 %v1954
        %v2555 = vunpack.c.l.b16 %v1955
        %v2556 = vunpack.c.h.b16 %v1955
        %v2557 = vunpack.c.l.b16 %v1956
        %v2558 = vunpack.c.h.b16 %v1956
        %v2559 = vunpack.c.l.b16 %v1957
        %v2560 = vunpack.c.h.b16 %v1957
        %v2561 = vunpack.c.l.b16 %v1958
        %v2562 = vunpack.c.h.b16 %v1958
        %v2563 = vunpack.c.l.b16 %v1959
        %v2564 = vunpack.c.h.b16 %v1959
        %v2565 = vunpack.c.l.b16 %v1960
        %v2566 = vunpack.c.h.b16 %v1960
        %v2567 = vunpack.c.l.b16 %v1961
        %v2568 = vunpack.c.h.b16 %v1961
        %v2569 = vunpack.c.l.b16 %v1962
        %v2570 = vunpack.c.h.b16 %v1962
        %v2571 = vunpack.c.l.b16 %v1963
        %v2572 = vunpack.c.h.b16 %v1963
        %v2573 = vunpack.c.l.b16 %v1964
        %v2574 = vunpack.c.h.b16 %v1964
        %v2575 = vunpack.c.l.b16 %v1965
        %v2576 = vunpack.c.h.b16 %v1965
        %v2577 = vunpack.c.l.b16 %v1966
        %v2578 = vunpack.c.h.b16 %v1966
        %v2579 = vunpack.c.l.b16 %v1967
        %v2580 = vunpack.c.h.b16 %v1967
        %v2581 = vunpack.c.l.b16 %v1968
        %v2582 = vunpack.c.h.b16 %v1968
        %v2583 = vunpack.c.l.b16 %v1969
        %v2584 = vunpack.c.h.b16 %v1969
        %v2585 = vunpack.c.l.b16 %v1970
        %v2586 = vunpack.c.h.b16 %v1970
        %v2587 = vunpack.c.l.b16 %v1971
        %v2588 = vunpack.c.h.b16 %v1971
        %v2589 = vunpack.c.l.b16 %v1972
        %v2590 = vunpack.c.h.b16 %v1972
        %v2591 = vunpack.c.l.b16 %v1973
        %v2592 = vunpack.c.h.b16 %v1973
        %v2593 = vunpack.c.l.b16 %v1974
        %v2594 = vunpack.c.h.b16 %v1974
        %v2595 = vunpack.c.l.b16 %v1975
        %v2596 = vunpack.c.h.b16 %v1975
        %v2597 = vunpack.c.l.b16 %v1976
        %v2598 = vunpack.c.h.b16 %v1976
        %v2599 = vunpack.c.l.b16 %v1977
        %v2600 = vunpack.c.h.b16 %v1977
        %v2601 = vunpack.c.l.b16 %v1978
        %v2602 = vunpack.c.h.b16 %v1978
        %v2603 = vunpack.c.l.b16 %v1979
        %v2604 = vunpack.c.h.b16 %v1979
        %v2605 = vunpack.c.l.b16 %v1980
        %v2606 = vunpack.c.h.b16 %v1980
        %v2607 = vunpack.c.l.b16 %v1981
        %v2608 = vunpack.c.h.b16 %v1981
        %v2609 = vunpack.c.l.b16 %v1982
        %v2610 = vunpack.c.h.b16 %v1982
        %v2611 = vunpack.c.l.b16 %v1983
        %v2612 = vunpack.c.h.b16 %v1983
        %v2613 = vunpack.c.l.b16 %v1984
        %v2614 = vunpack.c.h.b16 %v1984
        %v2615 = vunpack.c.l.b16 %v1985
        %v2616 = vunpack.c.h.b16 %v1985
        %v2617 = vunpack.c.l.b16 %v1986
        %v2618 = vunpack.c.h.b16 %v1986
        %v2619 = vunpack.c.l.b16 %v1987
        %v2620 = vunpack.c.h.b16 %v1987
        %v2621 = vunpack.c.l.b16 %v1988
        %v2622 = vunpack.c.h.b16 %v1988
        %v2623 = vunpack.c.l.b16 %v1989
        %v2624 = vunpack.c.h.b16 %v1989
        %v2625 = vunpack.c.l.b16 %v1990
        %v2626 = vunpack.c.h.b16 %v1990
        %v2627 = vunpack.c.l.b16 %v1991
        %v2628 = vunpack.c.h.b16 %v1991
        %v2629 = vunpack.c.l.b16 %v1992
        %v2630 = vunpack.c.h.b16 %v1992
        %v2631 = vunpack.c.l.b16 %v1993
        %v2632 = vunpack.c.h.b16 %v1993
        %v2633 = vunpack.c.l.b16 %v1994
        %v2634 = vunpack.c.h.b16 %v1994
        %v2635 = vunpack.c.l.b16 %v1995
        %v2636 = vunpack.c.h.b16 %v1995
        %v2637 = vunpack.c.l.b16 %v1996
        %v2638 = vunpack.c.h.b16 %v1996
        %v2639 = vunpack.c.l.b16 %v1997
        %v2640 = vunpack.c.h.b16 %v1997
        %v2641 = vunpack.c.l.b16 %v1998
        %v2642 = vunpack.c.h.b16 %v1998
        %v2643 = vunpack.c.l.b16 %v1999
        %v2644 = vunpack.c.h.b16 %v1999
        %v2645 = vunpack.c.l.b16 %v2000
        %v2646 = vunpack.c.h.b16 %v2000
        %v2647 = vunpack.c.l.b16 %v2001
        %v2648 = vunpack.c.h.b16 %v2001
        %v2649 = vunpack.c.l.b16 %v2002
        %v2650 = vunpack.c.h.b16 %v2002
        %v2651 = vunpack.c.l.b16 %v2003
        %v2652 = vunpack.c.h.b16 %v2003
        %v2653 = vunpack.c.l.b16 %v2004
        %v2654 = vunpack.c.h.b16 %v2004
        %v2655 = vunpack.c.l.b16 %v2005
        %v2656 = vunpack.c.h.b16 %v2005
        %v2657 = vunpack.c.l.b16 %v2006
        %v2658 = vunpack.c.h.b16 %v2006
        %v2659 = vunpack.c.l.b16 %v2007
        %v2660 = vunpack.c.h.b16 %v2007
        %v2661 = vunpack.c.l.b16 %v2008
        %v2662 = vunpack.c.h.b16 %v2008
        %v2663 = vunpack.c.l.b16 %v2009
        %v2664 = vunpack.c.h.b16 %v2009
        %v2665 = vunpack.c.l.b16 %v2010
        %v2666 = vunpack.c.h.b16 %v2010
        %v2667 = vunpack.c.l.b16 %v2011
        %v2668 = vunpack.c.h.b16 %v2011
        %v2669 = vunpack.c.l.b16 %v2012
        %v2670 = vunpack.c.h.b16 %v2012
        %v2671 = vunpack.c.l.b16 %v2013
        %v2672 = vunpack.c.h.b16 %v2013
        %v2673 = vunpack.c.l.b16 %v2014
        %v2674 = vunpack.c.h.b16 %v2014
        %v2675 = vunpack.c.l.b16 %v2015
        %v2676 = vunpack.c.h.b16 %v2015
        %v2677 = vunpack.c.l.b16 %v2016
        %v2678 = vunpack.c.h.b16 %v2016
        %v2679 = vunpack.c.l.b16 %v2017
        %v2680 = vunpack.c.h.b16 %v2017
        %v2681 = vunpack.c.l.b16 %v2018
        %v2682 = vunpack.c.h.b16 %v2018
        %v2683 = vunpack.c.l.b16 %v2019
        %v2684 = vunpack.c.h.b16 %v2019
        %v2685 = vunpack.c.l.b16 %v2020
        %v2686 = vunpack.c.h.b16 %v2020
        %v2687 = vunpack.c.l.b16 %v2021
        %v2688 = vunpack.c.h.b16 %v2021
        %v2689 = vunpack.c.l.b16 %v2022
        %v2690 = vunpack.c.h.b16 %v2022
        %v2691 = vunpack.c.l.b16 %v2023
        %v2692 = vunpack.c.h.b16 %v2023
        %v2693 = vunpack.c.l.b16 %v2024
        %v2694 = vunpack.c.h.b16 %v2024
        %v2695 = vunpack.c.l.b16 %v2025
        %v2696 = vunpack.c.h.b16 %v2025
        %v2697 = vunpack.c.l.b16 %v2026
        %v2698 = vunpack.c.h.b16 %v2026
        %v2699 = vunpack.c.l.b16 %v2027
        %v2700 = vunpack.c.h.b16 %v2027
        %v2701 = vunpack.c.l.b16 %v2028
        %v2702 = vunpack.c.h.b16 %v2028
        %v2703 = vunpack.c.l.b16 %v2029
        %v2704 = vunpack.c.h.b16 %v2029
        %v2705 = vunpack.c.l.b16 %v2030
        %v2706 = vunpack.c.h.b16 %v2030
        %v2707 = vpack.c.b16 %v2389, %v2387
        %v2708 = vpack.c.b16 %v2390, %v2388
        %v2709 = vpack.c.b16 %v2393, %v2391
        %v2710 = vpack.c.b16 %v2394, %v2392
        %v2711 = vpack.c.b16 %v2397, %v2395
        %v2712 = vpack.c.b16 %v2398, %v2396
        %v2713 = vpack.c.b16 %v2401, %v2399
        %v2714 = vpack.c.b16 %v2402, %v2400
        %v2715 = vpack.c.b16 %v2405, %v2403
        %v2716 = vpack.c.b16 %v2406, %v2404
        %v2717 = vpack.c.b16 %v2409, %v2407
        %v2718 = vpack.c.b16 %v2410, %v2408
        %v2719 = vpack.c.b16 %v2413, %v2411
        %v2720 = vpack.c.b16 %v2414, %v2412
        %v2721 = vpack.c.b16 %v2417, %v2415
        %v2722 = vpack.c.b16 %v2418, %v2416
        %v2723 = vpack.c.b16 %v2421, %v2419
        %v2724 = vpack.c.b16 %v2422, %v2420
        %v2725 = vpack.c.b16 %v2425, %v2423
        %v2726 = vpack.c.b16 %v2426, %v2424
        %v2727 = vpack.c.b16 %v2429, %v2427
        %v2728 = vpack.c.b16 %v2430, %v2428
        %v2729 = vpack.c.b16 %v2433, %v2431
        %v2730 = vpack.c.b16 %v2434, %v2432
        %v2731 = vpack.c.b16 %v2437, %v2435
        %v2732 = vpack.c.b16 %v2438, %v2436
        %v2733 = vpack.c.b16 %v2441, %v2439
        %v2734 = vpack.c.b16 %v2442, %v2440
        %v2735 = vpack.c.b16 %v2445, %v2443
        %v2736 = vpack.c.b16 %v2446, %v2444
        %v2737 = vpack.c.b16 %v2449, %v2447
        %v2738 = vpack.c.b16 %v2450, %v2448
        %v2739 = vpack.c.b16 %v2453, %v2451
        %v2740 = vpack.c.b16 %v2454, %v2452
        %v2741 = vpack.c.b16 %v2457, %v2455
        %v2742 = vpack.c.b16 %v2458, %v2456
        %v2743 = vpack.c.b16 %v2461, %v2459
        %v2744 = vpack.c.b16 %v2462, %v2460
        %v2745 = vpack.c.b16 %v2465, %v2463
        %v2746 = vpack.c.b16 %v2466, %v2464
        %v2747 = vpack.c.b16 %v2469, %v2467
        %v2748 = vpack.c.b16 %v2470, %v2468
        %v2749 = vpack.c.b16 %v2473, %v2471
        %v2750 = vpack.c.b16 %v2474, %v2472
        %v2751 = vpack.c.b16 %v2477, %v2475
        %v2752 = vpack.c.b16 %v2478, %v2476
        %v2753 = vpack.c.b16 %v2481, %v2479
        %v2754 = vpack.c.b16 %v2482, %v2480
        %v2755 = vpack.c.b16 %v2485, %v2483
        %v2756 = vpack.c.b16 %v2486, %v2484
        %v2757 = vpack.c.b16 %v2489, %v2487
        %v2758 = vpack.c.b16 %v2490, %v2488
        %v2759 = vpack.c.b16 %v2493, %v2491
        %v2760 = vpack.c.b16 %v2494, %v2492
        %v2761 = vpack.c.b16 %v2497, %v2495
        %v2762 = vpack.c.b16 %v2498, %v2496
        %v2763 = vpack.c.b16 %v2501, %v2499
        %v2764 = vpack.c.b16 %v2502, %v2500
        %v2765 = vpack.c.b16 %v2505, %v2503
        %v2766 = vpack.c.b16 %v2506, %v2504
        %v2767 = vpack.c.b16 %v2509, %v2507
        %v2768 = vpack.c.b16 %v2510, %v2508
        %v2769 = vpack.c.b16 %v2513, %v2511
        %v2770 = vpack.c.b16 %v2514, %v2512
        %v2771 = vpack.c.b16 %v2517, %v2515
        %v2772 = vpack.c.b16 %v2518, %v2516
        %v2773 = vpack.c.b16 %v2521, %v2519
        %v2774 = vpack.c.b16 %v2522, %v2520
        %v2775 = vpack.c.b16 %v2525, %v2523
        %v2776 = vpack.c.b16 %v2526, %v2524
        %v2777 = vpack.c.b16 %v2529, %v2527
        %v2778 = vpack.c.b16 %v2530, %v2528
        %v2779 = vpack.c.b16 %v2533, %v2531
        %v2780 = vpack.c.b16 %v2534, %v2532
        %v2781 = vpack.c.b16 %v2537, %v2535
        %v2782 = vpack.c.b16 %v2538, %v2536
        %v2783 = vpack.c.b16 %v2541, %v2539
        %v2784 = vpack.c.b16 %v2542, %v2540
        %v2785 = vpack.c.b16 %v2545, %v2543
        %v2786 = vpack.c.b16 %v2546, %v2544
        %v2787 = vpack.c.b16 %v2549, %v2547
        %v2788 = vpack.c.b16 %v2550, %v2548
        %v2789 = vpack.c.b16 %v2553, %v2551
        %v2790 = vpack.c.b16 %v2554, %v2552
        %v2791 = vpack.c.b16 %v2557, %v2555
        %v2792 = vpack.c.b16 %v2558, %v2556
        %v2793 = vpack.c.b16 %v2561, %v2559
        %v2794 = vpack.c.b16 %v2562, %v2560
        %v2795 = vpack.c.b16 %v2565, %v2563
        %v2796 = vpack.c.b16 %v2566, %v2564
        %v2797 = vpack.c.b16 %v2569, %v2567
        %v2798 = vpack.c.b16 %v2570, %v2568
        %v2799 = vpack.c.b16 %v2573, %v2571
        %v2800 = vpack.c.b16 %v2574, %v2572
        %v2801 = vpack.c.b16 %v2577, %v2575
        %v2802 = vpack.c.b16 %v2578, %v2576
        %v2803 = vpack.c.b16 %v2581, %v2579
        %v2804 = vpack.c.b16 %v2582, %v2580
        %v2805 = vpack.c.b16 %v2585, %v2583
        %v2806 = vpack.c.b16 %v2586, %v2584
        %v2807 = vpack.c.b16 %v2589, %v2587
        %v2808 = vpack.c.b16 %v2590, %v2588
        %v2809 = vpack.c.b16 %v2593, %v2591
        %v2810 = vpack.c.b16 %v2594, %v2592
        %v2811 = vpack.c.b16 %v2597, %v2595
        %v2812 = vpack.c.b16 %v2598, %v2596
        %v2813 = vpack.c.b16 %v2601, %v2599
        %v2814 = vpack.c.b16 %v2602, %v2600
        %v2815 = vpack.c.b16 %v2605, %v2603
        %v2816 = vpack.c.b16 %v2606, %v2604
        %v2817 = vpack.c.b16 %v2609, %v2607
        %v2818 = vpack.c.b16 %v2610, %v2608
        %v2819 = vpack.c.b16 %v2613, %v2611
        %v2820 = vpack.c.b16 %v2614, %v2612
        %v2821 = vpack.c.b16 %v2617, %v2615
        %v2822 = vpack.c.b16 %v2618, %v2616
        %v2823 = vpack.c.b16 %v2621, %v2619
        %v2824 = vpack.c.b16 %v2622, %v2620
        %v2825 = vpack.c.b16 %v2625, %v2623
        %v2826 = vpack.c.b16 %v2626, %v2624
        %v2827 = vpack.c.b16 %v2629, %v2627
        %v2828 = vpack.c.b16 %v2630, %v2628
        %v2829 = vpack.c.b16 %v2633, %v2631
        %v2830 = vpack.c.b16 %v2634, %v2632
        %v2831 = vpack.c.b16 %v2637, %v2635
        %v2832 = vpack.c.b16 %v2638, %v2636
        %v2833 = vpack.c.b16 %v2641, %v2639
        %v2834 = vpack.c.b16 %v2642, %v2640
        %v2835 = vpack.c.b16 %v2645, %v2643
        %v2836 = vpack.c.b16 %v2646, %v2644
        %v2837 = vpack.c.b16 %v2649, %v2647
        %v2838 = vpack.c.b16 %v2650, %v2648
        %v2839 = vpack.c.b16 %v2653, %v2651
        %v2840 = vpack.c.b16 %v2654, %v2652
        %v2841 = vpack.c.b16 %v2657, %v2655
        %v2842 = vpack.c.b16 %v2658, %v2656
        %v2843 = vpack.c.b16 %v2661, %v2659
        %v2844 = vpack.c.b16 %v2662, %v2660
        %v2845 = vpack.c.b16 %v2665, %v2663
        %v2846 = vpack.c.b16 %v2666, %v2664
        %v2847 = vpack.c.b16 %v2669, %v2667
        %v2848 = vpack.c.b16 %v2670, %v2668
        %v2849 = vpack.c.b16 %v2673, %v2671
        %v2850 = vpack.c.b16 %v2674, %v2672
        %v2851 = vpack.c.b16 %v2677, %v2675
        %v2852 = vpack.c.b16 %v2678, %v2676
        %v2853 = vpack.c.b16 %v2681, %v2679
        %v2854 = vpack.c.b16 %v2682, %v2680
        %v2855 = vpack.c.b16 %v2685, %v2683
        %v2856 = vpack.c.b16 %v2686, %v2684
        %v2857 = vpack.c.b16 %v2689, %v2687
        %v2858 = vpack.c.b16 %v2690, %v2688
        %v2859 = vpack.c.b16 %v2693, %v2691
        %v2860 = vpack.c.b16 %v2694, %v2692
        %v2861 = vpack.c.b16 %v2697, %v2695
        %v2862 = vpack.c.b16 %v2698, %v2696
        %v2863 = vpack.c.b16 %v2701, %v2699
        %v2864 = vpack.c.b16 %v2702, %v2700
        %v2865 = vpack.c.b16 %v2705, %v2703
        %v2866 = vpack.c.b16 %v2706, %v2704
        %3027 = vmatpush.bf16.msra.mxu0 %v2721
        %3028 = vmatpush.bf16.msra.mxu0 %v2719
        %3029 = vmatpush.bf16.msra.mxu0 %v2717
        %3030 = vmatpush.bf16.msra.mxu0 %v2715
        %3031 = vmatpush.bf16.msra.mxu0 %v2713
        %3032 = vmatpush.bf16.msra.mxu0 %v2711
        %3033 = vmatpush.bf16.msra.mxu0 %v2709
        %3034 = vmatpush.bf16.msra.mxu0 %v2707
        %3035 = vmatmul.bf16.gmra.mxu0 %v2108
        %v3036 = vpop.f32.mrf.mxu0
        %v3037 = vadd.f32 0.0, %v3036
        %v3038 = vpop.f32.mrf.mxu0
        %v3039 = vadd.f32 0.0, %v3038
        %3040 = vdwg.mxu0
        %3041 = vmatpush.bf16.msra.mxu0 %v2737
        %3042 = vmatpush.bf16.msra.mxu0 %v2735
        %3043 = vmatpush.bf16.msra.mxu0 %v2733
        %3044 = vmatpush.bf16.msra.mxu0 %v2731
        %3045 = vmatpush.bf16.msra.mxu0 %v2729
        %3046 = vmatpush.bf16.msra.mxu0 %v2727
        %3047 = vmatpush.bf16.msra.mxu0 %v2725
        %3048 = vmatpush.bf16.msra.mxu0 %v2723
        %3049 = vmatmul.bf16.gmra.mxu0 %v2120
        %v3050 = vpop.f32.mrf.mxu0
        %v3051 = vadd.f32 %v3037, %v3050
        %v3052 = vpop.f32.mrf.mxu0
        %v3053 = vadd.f32 %v3039, %v3052
        %3054 = vdwg.mxu0
        %3055 = vmatpush.bf16.msra.mxu0 %v2753
        %3056 = vmatpush.bf16.msra.mxu0 %v2751
        %3057 = vmatpush.bf16.msra.mxu0 %v2749
        %3058 = vmatpush.bf16.msra.mxu0 %v2747
        %3059 = vmatpush.bf16.msra.mxu0 %v2745
        %3060 = vmatpush.bf16.msra.mxu0 %v2743
        %3061 = vmatpush.bf16.msra.mxu0 %v2741
        %3062 = vmatpush.bf16.msra.mxu0 %v2739
        %3063 = vmatmul.bf16.gmra.mxu0 %v2132
        %v3064 = vpop.f32.mrf.mxu0
        %v3065 = vadd.f32 %v3051, %v3064
        %v3066 = vpop.f32.mrf.mxu0
        %v3067 = vadd.f32 %v3053, %v3066
        %3068 = vdwg.mxu0
        %3069 = vmatpush.bf16.msra.mxu0 %v2769
        %3070 = vmatpush.bf16.msra.mxu0 %v2767
        %3071 = vmatpush.bf16.msra.mxu0 %v2765
        %3072 = vmatpush.bf16.msra.mxu0 %v2763
        %3073 = vmatpush.bf16.msra.mxu0 %v2761
        %3074 = vmatpush.bf16.msra.mxu0 %v2759
        %3075 = vmatpush.bf16.msra.mxu0 %v2757
        %3076 = vmatpush.bf16.msra.mxu0 %v2755
        %3077 = vmatmul.bf16.gmra.mxu0 %v2144
        %v3078 = vpop.f32.mrf.mxu0
        %v3079 = vadd.f32 %v3065, %v3078
        %v3080 = vpop.f32.mrf.mxu0
        %v3081 = vadd.f32 %v3067, %v3080
        %3082 = vdwg.mxu0
        %3083 = vmatpush.bf16.msra.mxu0 %v2785
        %3084 = vmatpush.bf16.msra.mxu0 %v2783
        %3085 = vmatpush.bf16.msra.mxu0 %v2781
        %3086 = vmatpush.bf16.msra.mxu0 %v2779
        %3087 = vmatpush.bf16.msra.mxu0 %v2777
        %3088 = vmatpush.bf16.msra.mxu0 %v2775
        %3089 = vmatpush.bf16.msra.mxu0 %v2773
        %3090 = vmatpush.bf16.msra.mxu0 %v2771
        %3091 = vmatmul.bf16.gmra.mxu0 %v2156
        %v3092 = vpop.f32.mrf.mxu0
        %v3093 = vadd.f32 %v3079, %v3092
        %v3094 = vpop.f32.mrf.mxu0
        %v3095 = vadd.f32 %v3081, %v3094
        %3096 = vdwg.mxu0
        %3097 = vmatpush.bf16.msra.mxu0 %v2801
        %3098 = vmatpush.bf16.msra.mxu0 %v2799
        %3099 = vmatpush.bf16.msra.mxu0 %v2797
        %3100 = vmatpush.bf16.msra.mxu0 %v2795
        %3101 = vmatpush.bf16.msra.mxu0 %v2793
        %3102 = vmatpush.bf16.msra.mxu0 %v2791
        %3103 = vmatpush.bf16.msra.mxu0 %v2789
        %3104 = vmatpush.bf16.msra.mxu0 %v2787
        %3105 = vmatmul.bf16.gmra.mxu0 %v2168
        %v3106 = vpop.f32.mrf.mxu0
        %v3107 = vadd.f32 %v3093, %v3106
        %v3108 = vpop.f32.mrf.mxu0
        %v3109 = vadd.f32 %v3095, %v3108
        %3110 = vdwg.mxu0
        %3111 = vmatpush.bf16.msra.mxu0 %v2817
        %3112 = vmatpush.bf16.msra.mxu0 %v2815
        %3113 = vmatpush.bf16.msra.mxu0 %v2813
        %3114 = vmatpush.bf16.msra.mxu0 %v2811
        %3115 = vmatpush.bf16.msra.mxu0 %v2809
        %3116 = vmatpush.bf16.msra.mxu0 %v2807
        %3117 = vmatpush.bf16.msra.mxu0 %v2805
        %3118 = vmatpush.bf16.msra.mxu0 %v2803
        %3119 = vmatmul.bf16.gmra.mxu0 %v2180
        %v3120 = vpop.f32.mrf.mxu0
        %v3121 = vadd.f32 %v3107, %v3120
        %v3122 = vpop.f32.mrf.mxu0
        %v3123 = vadd.f32 %v3109, %v3122
        %3124 = vdwg.mxu0
        %3125 = vmatpush.bf16.msra.mxu0 %v2833
        %3126 = vmatpush.bf16.msra.mxu0 %v2831
        %3127 = vmatpush.bf16.msra.mxu0 %v2829
        %3128 = vmatpush.bf16.msra.mxu0 %v2827
        %3129 = vmatpush.bf16.msra.mxu0 %v2825
        %3130 = vmatpush.bf16.msra.mxu0 %v2823
        %3131 = vmatpush.bf16.msra.mxu0 %v2821
        %3132 = vmatpush.bf16.msra.mxu0 %v2819
        %3133 = vmatmul.bf16.gmra.mxu0 %v2192
        %v3134 = vpop.f32.mrf.mxu0
        %v3135 = vadd.f32 %v3121, %v3134
        %v3136 = vpop.f32.mrf.mxu0
        %v3137 = vadd.f32 %v3123, %v3136
        %3138 = vdwg.mxu0
        %3139 = vmatpush.bf16.msra.mxu0 %v2849
        %3140 = vmatpush.bf16.msra.mxu0 %v2847
        %3141 = vmatpush.bf16.msra.mxu0 %v2845
        %3142 = vmatpush.bf16.msra.mxu0 %v2843
        %3143 = vmatpush.bf16.msra.mxu0 %v2841
        %3144 = vmatpush.bf16.msra.mxu0 %v2839
        %3145 = vmatpush.bf16.msra.mxu0 %v2837
        %3146 = vmatpush.bf16.msra.mxu0 %v2835
        %3147 = vmatmul.bf16.gmra.mxu0 %v2204
        %v3148 = vpop.f32.mrf.mxu0
        %v3149 = vadd.f32 %v3135, %v3148
        %v3150 = vpop.f32.mrf.mxu0
        %v3151 = vadd.f32 %v3137, %v3150
        %3152 = vdwg.mxu0
        %3153 = vmatpush.bf16.msra.mxu0 %v2865
        %3154 = vmatpush.bf16.msra.mxu0 %v2863
        %3155 = vmatpush.bf16.msra.mxu0 %v2861
        %3156 = vmatpush.bf16.msra.mxu0 %v2859
        %3157 = vmatpush.bf16.msra.mxu0 %v2857
        %3158 = vmatpush.bf16.msra.mxu0 %v2855
        %3159 = vmatpush.bf16.msra.mxu0 %v2853
        %3160 = vmatpush.bf16.msra.mxu0 %v2851
        %3161 = vmatmul.bf16.gmra.mxu0 %v2216
        %v3162 = vpop.f32.mrf.mxu0
        %v3163 = vadd.f32 %v3149, %v3162
        %v3164 = vpop.f32.mrf.mxu0
        %v3165 = vadd.f32 %v3151, %v3164
        %3166 = vdwg.mxu0
        %3167 = vmatpush.bf16.msra.mxu0 %v2722
        %3168 = vmatpush.bf16.msra.mxu0 %v2720
        %3169 = vmatpush.bf16.msra.mxu0 %v2718
        %3170 = vmatpush.bf16.msra.mxu0 %v2716
        %3171 = vmatpush.bf16.msra.mxu0 %v2714
        %3172 = vmatpush.bf16.msra.mxu0 %v2712
        %3173 = vmatpush.bf16.msra.mxu0 %v2710
        %3174 = vmatpush.bf16.msra.mxu0 %v2708
        %3175 = vmatmul.bf16.gmra.mxu0 %v2108
        %v3176 = vpop.f32.mrf.mxu0
        %v3177 = vadd.f32 0.0, %v3176
        %v3178 = vpop.f32.mrf.mxu0
        %v3179 = vadd.f32 0.0, %v3178
        %3180 = vdwg.mxu0
        %3181 = vmatpush.bf16.msra.mxu0 %v2738
        %3182 = vmatpush.bf16.msra.mxu0 %v2736
        %3183 = vmatpush.bf16.msra.mxu0 %v2734
        %3184 = vmatpush.bf16.msra.mxu0 %v2732
        %3185 = vmatpush.bf16.msra.mxu0 %v2730
        %3186 = vmatpush.bf16.msra.mxu0 %v2728
        %3187 = vmatpush.bf16.msra.mxu0 %v2726
        %3188 = vmatpush.bf16.msra.mxu0 %v2724
        %3189 = vmatmul.bf16.gmra.mxu0 %v2120
        %v3190 = vpop.f32.mrf.mxu0
        %v3191 = vadd.f32 %v3177, %v3190
        %v3192 = vpop.f32.mrf.mxu0
        %v3193 = vadd.f32 %v3179, %v3192
        %3194 = vdwg.mxu0
        %3195 = vmatpush.bf16.msra.mxu0 %v2754
        %3196 = vmatpush.bf16.msra.mxu0 %v2752
        %3197 = vmatpush.bf16.msra.mxu0 %v2750
        %3198 = vmatpush.bf16.msra.mxu0 %v2748
        %3199 = vmatpush.bf16.msra.mxu0 %v2746
        %3200 = vmatpush.bf16.msra.mxu0 %v2744
        %3201 = vmatpush.bf16.msra.mxu0 %v2742
        %3202 = vmatpush.bf16.msra.mxu0 %v2740
        %3203 = vmatmul.bf16.gmra.mxu0 %v2132
        %v3204 = vpop.f32.mrf.mxu0
        %v3205 = vadd.f32 %v3191, %v3204
        %v3206 = vpop.f32.mrf.mxu0
        %v3207 = vadd.f32 %v3193, %v3206
        %3208 = vdwg.mxu0
        %3209 = vmatpush.bf16.msra.mxu0 %v2770
        %3210 = vmatpush.bf16.msra.mxu0 %v2768
        %3211 = vmatpush.bf16.msra.mxu0 %v2766
        %3212 = vmatpush.bf16.msra.mxu0 %v2764
        %3213 = vmatpush.bf16.msra.mxu0 %v2762
        %3214 = vmatpush.bf16.msra.mxu0 %v2760
        %3215 = vmatpush.bf16.msra.mxu0 %v2758
        %3216 = vmatpush.bf16.msra.mxu0 %v2756
        %3217 = vmatmul.bf16.gmra.mxu0 %v2144
        %v3218 = vpop.f32.mrf.mxu0
        %v3219 = vadd.f32 %v3205, %v3218
        %v3220 = vpop.f32.mrf.mxu0
        %v3221 = vadd.f32 %v3207, %v3220
        %3222 = vdwg.mxu0
        %3223 = vmatpush.bf16.msra.mxu0 %v2786
        %3224 = vmatpush.bf16.msra.mxu0 %v2784
        %3225 = vmatpush.bf16.msra.mxu0 %v2782
        %3226 = vmatpush.bf16.msra.mxu0 %v2780
        %3227 = vmatpush.bf16.msra.mxu0 %v2778
        %3228 = vmatpush.bf16.msra.mxu0 %v2776
        %3229 = vmatpush.bf16.msra.mxu0 %v2774
        %3230 = vmatpush.bf16.msra.mxu0 %v2772
        %3231 = vmatmul.bf16.gmra.mxu0 %v2156
        %v3232 = vpop.f32.mrf.mxu0
        %v3233 = vadd.f32 %v3219, %v3232
        %v3234 = vpop.f32.mrf.mxu0
        %v3235 = vadd.f32 %v3221, %v3234
        %3236 = vdwg.mxu0
        %3237 = vmatpush.bf16.msra.mxu0 %v2802
        %3238 = vmatpush.bf16.msra.mxu0 %v2800
        %3239 = vmatpush.bf16.msra.mxu0 %v2798
        %3240 = vmatpush.bf16.msra.mxu0 %v2796
        %3241 = vmatpush.bf16.msra.mxu0 %v2794
        %3242 = vmatpush.bf16.msra.mxu0 %v2792
        %3243 = vmatpush.bf16.msra.mxu0 %v2790
        %3244 = vmatpush.bf16.msra.mxu0 %v2788
        %3245 = vmatmul.bf16.gmra.mxu0 %v2168
        %v3246 = vpop.f32.mrf.mxu0
        %v3247 = vadd.f32 %v3233, %v3246
        %v3248 = vpop.f32.mrf.mxu0
        %v3249 = vadd.f32 %v3235, %v3248
        %3250 = vdwg.mxu0
        %3251 = vmatpush.bf16.msra.mxu0 %v2818
        %3252 = vmatpush.bf16.msra.mxu0 %v2816
        %3253 = vmatpush.bf16.msra.mxu0 %v2814
        %3254 = vmatpush.bf16.msra.mxu0 %v2812
        %3255 = vmatpush.bf16.msra.mxu0 %v2810
        %3256 = vmatpush.bf16.msra.mxu0 %v2808
        %3257 = vmatpush.bf16.msra.mxu0 %v2806
        %3258 = vmatpush.bf16.msra.mxu0 %v2804
        %3259 = vmatmul.bf16.gmra.mxu0 %v2180
        %v3260 = vpop.f32.mrf.mxu0
        %v3261 = vadd.f32 %v3247, %v3260
        %v3262 = vpop.f32.mrf.mxu0
        %v3263 = vadd.f32 %v3249, %v3262
        %3264 = vdwg.mxu0
        %3265 = vmatpush.bf16.msra.mxu0 %v2834
        %3266 = vmatpush.bf16.msra.mxu0 %v2832
        %3267 = vmatpush.bf16.msra.mxu0 %v2830
        %3268 = vmatpush.bf16.msra.mxu0 %v2828
        %3269 = vmatpush.bf16.msra.mxu0 %v2826
        %3270 = vmatpush.bf16.msra.mxu0 %v2824
        %3271 = vmatpush.bf16.msra.mxu0 %v2822
        %3272 = vmatpush.bf16.msra.mxu0 %v2820
        %3273 = vmatmul.bf16.gmra.mxu0 %v2192
        %v3274 = vpop.f32.mrf.mxu0
        %v3275 = vadd.f32 %v3261, %v3274
        %v3276 = vpop.f32.mrf.mxu0
        %v3277 = vadd.f32 %v3263, %v3276
        %3278 = vdwg.mxu0
        %3279 = vmatpush.bf16.msra.mxu0 %v2850
        %3280 = vmatpush.bf16.msra.mxu0 %v2848
        %3281 = vmatpush.bf16.msra.mxu0 %v2846
        %3282 = vmatpush.bf16.msra.mxu0 %v2844
        %3283 = vmatpush.bf16.msra.mxu0 %v2842
        %3284 = vmatpush.bf16.msra.mxu0 %v2840
        %3285 = vmatpush.bf16.msra.mxu0 %v2838
        %3286 = vmatpush.bf16.msra.mxu0 %v2836
        %3287 = vmatmul.bf16.gmra.mxu0 %v2204
        %v3288 = vpop.f32.mrf.mxu0
        %v3289 = vadd.f32 %v3275, %v3288
        %v3290 = vpop.f32.mrf.mxu0
        %v3291 = vadd.f32 %v3277, %v3290
        %3292 = vdwg.mxu0
        %3293 = vmatpush.bf16.msra.mxu0 %v2866
        %3294 = vmatpush.bf16.msra.mxu0 %v2864
        %3295 = vmatpush.bf16.msra.mxu0 %v2862
        %3296 = vmatpush.bf16.msra.mxu0 %v2860
        %3297 = vmatpush.bf16.msra.mxu0 %v2858
        %3298 = vmatpush.bf16.msra.mxu0 %v2856
        %3299 = vmatpush.bf16.msra.mxu0 %v2854
        %3300 = vmatpush.bf16.msra.mxu0 %v2852
        %3301 = vmatmul.bf16.gmra.mxu0 %v2216
        %v3302 = vpop.f32.mrf.mxu0
        %v3303 = vadd.f32 %v3289, %v3302
        %v3304 = vpop.f32.mrf.mxu0
        %v3305 = vadd.f32 %v3291, %v3304
        %3306 = vdwg.mxu0
        %v3307 = vadd.f32 %v1851, %v3163
        %v3308 = vadd.f32 %v1852, %v3303
        %v3309 = vadd.f32 %v1853, %v3165
        %v3310 = vadd.f32 %v1854, %v3305
        %v3311 = vld [vmem:[#allocation2] sm:$0xee]
        %v3312 = vld [vmem:[#allocation2 + $0x8] sm:$0xee]
        %v3313 = vld [vmem:[#allocation2 + $0x10] sm:$0xee]
        %v3314 = vld [vmem:[#allocation2 + $0x18] sm:$0xee]
        %v3315 = vld [vmem:[#allocation2 + $0x20] sm:$0xee]
        %s3316 = scalar_lea.vmem [#allocation3], 2560
        %v3317 = vld [vmem:[%s3316] sm:$0xff]
        %v3318 = vld [vmem:[%s3316 + $0x8] sm:$0xff]
        %v3319 = vld [vmem:[%s3316 + $0x10] sm:$0xff]
        %v3320 = vld [vmem:[%s3316 + $0x18] sm:$0xff]
        %v3321 = vld [vmem:[%s3316 + $0x20] sm:$0xff]
        %v3322 = vld [vmem:[%s3316 + $0x28] sm:$0xff]
        %v3323 = vld [vmem:[%s3316 + $0x30] sm:$0xff]
        %v3324 = vld [vmem:[%s3316 + $0x38] sm:$0xff]
        %v3325 = vld [vmem:[%s3316 + $0x40] sm:$0xff]
        %v3326 = vld [vmem:[%s3316 + $0x48] sm:$0xff]
        %v3327 = vld [vmem:[%s3316 + $0x50] sm:$0xff]
        %v3328 = vld [vmem:[%s3316 + $0x58] sm:$0xff]
        %v3329 = vld [vmem:[%s3316 + $0x60] sm:$0xff]
        %v3330 = vld [vmem:[%s3316 + $0x68] sm:$0xff]
        %v3331 = vld [vmem:[%s3316 + $0x70] sm:$0xff]
        %v3332 = vld [vmem:[%s3316 + $0x78] sm:$0xff]
        %v3333 = vld [vmem:[%s3316 + $0x80] sm:$0xff]
        %v3334 = vld [vmem:[%s3316 + $0x88] sm:$0xff]
        %v3335 = vld [vmem:[%s3316 + $0x90] sm:$0xff]
        %v3336 = vld [vmem:[%s3316 + $0x98] sm:$0xff]
        %v3337 = vld [vmem:[%s3316 + $0xa0] sm:$0xff]
        %v3338 = vld [vmem:[%s3316 + $0xa8] sm:$0xff]
        %v3339 = vld [vmem:[%s3316 + $0xb0] sm:$0xff]
        %v3340 = vld [vmem:[%s3316 + $0xb8] sm:$0xff]
        %v3341 = vld [vmem:[%s3316 + $0xc0] sm:$0xff]
        %v3342 = vld [vmem:[%s3316 + $0xc8] sm:$0xff]
        %v3343 = vld [vmem:[%s3316 + $0xd0] sm:$0xff]
        %v3344 = vld [vmem:[%s3316 + $0xd8] sm:$0xff]
        %v3345 = vld [vmem:[%s3316 + $0xe0] sm:$0xff]
        %v3346 = vld [vmem:[%s3316 + $0xe8] sm:$0xff]
        %v3347 = vld [vmem:[%s3316 + $0xf0] sm:$0xff]
        %v3348 = vld [vmem:[%s3316 + $0xf8] sm:$0xff]
        %v3349 = vld [vmem:[%s3316 + $0x100] sm:$0xff]
        %v3350 = vld [vmem:[%s3316 + $0x108] sm:$0xff]
        %v3351 = vld [vmem:[%s3316 + $0x110] sm:$0xff]
        %v3352 = vld [vmem:[%s3316 + $0x118] sm:$0xff]
        %v3353 = vld [vmem:[%s3316 + $0x120] sm:$0xff]
        %v3354 = vld [vmem:[%s3316 + $0x128] sm:$0xff]
        %v3355 = vld [vmem:[%s3316 + $0x130] sm:$0xff]
        %v3356 = vld [vmem:[%s3316 + $0x138] sm:$0xff]
        %v3357 = vld [vmem:[%s3316 + $0x140] sm:$0xff]
        %v3358 = vld [vmem:[%s3316 + $0x148] sm:$0xff]
        %v3359 = vld [vmem:[%s3316 + $0x150] sm:$0xff]
        %v3360 = vld [vmem:[%s3316 + $0x158] sm:$0xff]
        %v3361 = vld [vmem:[%s3316 + $0x160] sm:$0xff]
        %v3362 = vld [vmem:[%s3316 + $0x168] sm:$0xff]
        %v3363 = vld [vmem:[%s3316 + $0x170] sm:$0xff]
        %v3364 = vld [vmem:[%s3316 + $0x178] sm:$0xff]
        %v3365 = vld [vmem:[%s3316 + $0x180] sm:$0xff]
        %v3366 = vld [vmem:[%s3316 + $0x188] sm:$0xff]
        %v3367 = vld [vmem:[%s3316 + $0x190] sm:$0xff]
        %v3368 = vld [vmem:[%s3316 + $0x198] sm:$0xff]
        %v3369 = vld [vmem:[%s3316 + $0x1a0] sm:$0xff]
        %v3370 = vld [vmem:[%s3316 + $0x1a8] sm:$0xff]
        %v3371 = vld [vmem:[%s3316 + $0x1b0] sm:$0xff]
        %v3372 = vld [vmem:[%s3316 + $0x1b8] sm:$0xff]
        %v3373 = vld [vmem:[%s3316 + $0x1c0] sm:$0xff]
        %v3374 = vld [vmem:[%s3316 + $0x1c8] sm:$0xff]
        %v3375 = vld [vmem:[%s3316 + $0x1d0] sm:$0xff]
        %v3376 = vld [vmem:[%s3316 + $0x1d8] sm:$0xff]
        %v3377 = vld [vmem:[%s3316 + $0x1e0] sm:$0xff]
        %v3378 = vld [vmem:[%s3316 + $0x1e8] sm:$0xff]
        %v3379 = vld [vmem:[%s3316 + $0x1f0] sm:$0xff]
        %v3380 = vld [vmem:[%s3316 + $0x1f8] sm:$0xff]
        %v3381 = vld [vmem:[%s3316 + $0x200] sm:$0xff]
        %v3382 = vld [vmem:[%s3316 + $0x208] sm:$0xff]
        %v3383 = vld [vmem:[%s3316 + $0x210] sm:$0xff]
        %v3384 = vld [vmem:[%s3316 + $0x218] sm:$0xff]
        %v3385 = vld [vmem:[%s3316 + $0x220] sm:$0xff]
        %v3386 = vld [vmem:[%s3316 + $0x228] sm:$0xff]
        %v3387 = vld [vmem:[%s3316 + $0x230] sm:$0xff]
        %v3388 = vld [vmem:[%s3316 + $0x238] sm:$0xff]
        %v3389 = vld [vmem:[%s3316 + $0x240] sm:$0xff]
        %v3390 = vld [vmem:[%s3316 + $0x248] sm:$0xff]
        %v3391 = vld [vmem:[%s3316 + $0x250] sm:$0xff]
        %v3392 = vld [vmem:[%s3316 + $0x258] sm:$0xff]
        %v3393 = vld [vmem:[%s3316 + $0x260] sm:$0xff]
        %v3394 = vld [vmem:[%s3316 + $0x268] sm:$0xff]
        %v3395 = vld [vmem:[%s3316 + $0x270] sm:$0xff]
        %v3396 = vld [vmem:[%s3316 + $0x278] sm:$0xff]
        %v3397 = vld [vmem:[%s3316 + $0x280] sm:$0xff]
        %v3398 = vld [vmem:[%s3316 + $0x288] sm:$0xff]
        %v3399 = vld [vmem:[%s3316 + $0x290] sm:$0xff]
        %v3400 = vld [vmem:[%s3316 + $0x298] sm:$0xff]
        %v3401 = vld [vmem:[%s3316 + $0x2a0] sm:$0xff]
        %v3402 = vld [vmem:[%s3316 + $0x2a8] sm:$0xff]
        %v3403 = vld [vmem:[%s3316 + $0x2b0] sm:$0xff]
        %v3404 = vld [vmem:[%s3316 + $0x2b8] sm:$0xff]
        %v3405 = vld [vmem:[%s3316 + $0x2c0] sm:$0xff]
        %v3406 = vld [vmem:[%s3316 + $0x2c8] sm:$0xff]
        %v3407 = vld [vmem:[%s3316 + $0x2d0] sm:$0xff]
        %v3408 = vld [vmem:[%s3316 + $0x2d8] sm:$0xff]
        %v3409 = vld [vmem:[%s3316 + $0x2e0] sm:$0xff]
        %v3410 = vld [vmem:[%s3316 + $0x2e8] sm:$0xff]
        %v3411 = vld [vmem:[%s3316 + $0x2f0] sm:$0xff]
        %v3412 = vld [vmem:[%s3316 + $0x2f8] sm:$0xff]
        %v3413 = vld [vmem:[%s3316 + $0x300] sm:$0xff]
        %v3414 = vld [vmem:[%s3316 + $0x308] sm:$0xff]
        %v3415 = vld [vmem:[%s3316 + $0x310] sm:$0xff]
        %v3416 = vld [vmem:[%s3316 + $0x318] sm:$0xff]
        %v3417 = vld [vmem:[%s3316 + $0x320] sm:$0xff]
        %v3418 = vld [vmem:[%s3316 + $0x328] sm:$0xff]
        %v3419 = vld [vmem:[%s3316 + $0x330] sm:$0xff]
        %v3420 = vld [vmem:[%s3316 + $0x338] sm:$0xff]
        %v3421 = vld [vmem:[%s3316 + $0x340] sm:$0xff]
        %v3422 = vld [vmem:[%s3316 + $0x348] sm:$0xff]
        %v3423 = vld [vmem:[%s3316 + $0x350] sm:$0xff]
        %v3424 = vld [vmem:[%s3316 + $0x358] sm:$0xff]
        %v3425 = vld [vmem:[%s3316 + $0x360] sm:$0xff]
        %v3426 = vld [vmem:[%s3316 + $0x368] sm:$0xff]
        %v3427 = vld [vmem:[%s3316 + $0x370] sm:$0xff]
        %v3428 = vld [vmem:[%s3316 + $0x378] sm:$0xff]
        %v3429 = vld [vmem:[%s3316 + $0x380] sm:$0xff]
        %v3430 = vld [vmem:[%s3316 + $0x388] sm:$0xff]
        %v3431 = vld [vmem:[%s3316 + $0x390] sm:$0xff]
        %v3432 = vld [vmem:[%s3316 + $0x398] sm:$0xff]
        %v3433 = vld [vmem:[%s3316 + $0x3a0] sm:$0xff]
        %v3434 = vld [vmem:[%s3316 + $0x3a8] sm:$0xff]
        %v3435 = vld [vmem:[%s3316 + $0x3b0] sm:$0xff]
        %v3436 = vld [vmem:[%s3316 + $0x3b8] sm:$0xff]
        %v3437 = vld [vmem:[%s3316 + $0x3c0] sm:$0xff]
        %v3438 = vld [vmem:[%s3316 + $0x3c8] sm:$0xff]
        %v3439 = vld [vmem:[%s3316 + $0x3d0] sm:$0xff]
        %v3440 = vld [vmem:[%s3316 + $0x3d8] sm:$0xff]
        %v3441 = vld [vmem:[%s3316 + $0x3e0] sm:$0xff]
        %v3442 = vld [vmem:[%s3316 + $0x3e8] sm:$0xff]
        %v3443 = vld [vmem:[%s3316 + $0x3f0] sm:$0xff]
        %v3444 = vld [vmem:[%s3316 + $0x3f8] sm:$0xff]
        %v3445 = vld [vmem:[%s3316 + $0x400] sm:$0xff]
        %v3446 = vld [vmem:[%s3316 + $0x408] sm:$0xff]
        %v3447 = vld [vmem:[%s3316 + $0x410] sm:$0xff]
        %v3448 = vld [vmem:[%s3316 + $0x418] sm:$0xff]
        %v3449 = vld [vmem:[%s3316 + $0x420] sm:$0xff]
        %v3450 = vld [vmem:[%s3316 + $0x428] sm:$0xff]
        %v3451 = vld [vmem:[%s3316 + $0x430] sm:$0xff]
        %v3452 = vld [vmem:[%s3316 + $0x438] sm:$0xff]
        %v3453 = vld [vmem:[%s3316 + $0x440] sm:$0xff]
        %v3454 = vld [vmem:[%s3316 + $0x448] sm:$0xff]
        %v3455 = vld [vmem:[%s3316 + $0x450] sm:$0xff]
        %v3456 = vld [vmem:[%s3316 + $0x458] sm:$0xff]
        %v3457 = vld [vmem:[%s3316 + $0x460] sm:$0xff]
        %v3458 = vld [vmem:[%s3316 + $0x468] sm:$0xff]
        %v3459 = vld [vmem:[%s3316 + $0x470] sm:$0xff]
        %v3460 = vld [vmem:[%s3316 + $0x478] sm:$0xff]
        %v3461 = vld [vmem:[%s3316 + $0x480] sm:$0xff]
        %v3462 = vld [vmem:[%s3316 + $0x488] sm:$0xff]
        %v3463 = vld [vmem:[%s3316 + $0x490] sm:$0xff]
        %v3464 = vld [vmem:[%s3316 + $0x498] sm:$0xff]
        %v3465 = vld [vmem:[%s3316 + $0x4a0] sm:$0xff]
        %v3466 = vld [vmem:[%s3316 + $0x4a8] sm:$0xff]
        %v3467 = vld [vmem:[%s3316 + $0x4b0] sm:$0xff]
        %v3468 = vld [vmem:[%s3316 + $0x4b8] sm:$0xff]
        %v3469 = vld [vmem:[%s3316 + $0x4c0] sm:$0xff]
        %v3470 = vld [vmem:[%s3316 + $0x4c8] sm:$0xff]
        %v3471 = vld [vmem:[%s3316 + $0x4d0] sm:$0xff]
        %v3472 = vld [vmem:[%s3316 + $0x4d8] sm:$0xff]
        %v3473 = vld [vmem:[%s3316 + $0x4e0] sm:$0xff]
        %v3474 = vld [vmem:[%s3316 + $0x4e8] sm:$0xff]
        %v3475 = vld [vmem:[%s3316 + $0x4f0] sm:$0xff]
        %v3476 = vld [vmem:[%s3316 + $0x4f8] sm:$0xff]
        %v3482 = vunpack.c.l.b16 %v3311
        %v3483 = vunpack.c.h.b16 %v3311
        %v3484 = vunpack.c.l.b16 %v3312
        %v3485 = vunpack.c.h.b16 %v3312
        %v3486 = vunpack.c.l.b16 %v3313
        %v3487 = vunpack.c.h.b16 %v3313
        %v3488 = vunpack.c.l.b16 %v3314
        %v3489 = vunpack.c.h.b16 %v3314
        %v3490 = vunpack.c.l.b16 %v3315
        %v3491 = vunpack.c.h.b16 %v3315
        %v3492 = vpack.c.b16 %v2056, %v3482
        %v3493 = vpack.c.b16 %v2057, %v3483
        %v3494 = vpack.c.b16 %v2058, %v3484
        %v3495 = vpack.c.b16 %v2059, %v3485
        %v3496 = vpack.c.b16 %v2060, %v3486
        %v3497 = vpack.c.b16 %v2061, %v3487
        %v3498 = vpack.c.b16 %v2062, %v3488
        %v3499 = vpack.c.b16 %v2063, %v3489
        %v3500 = vpack.c.b16 %v2064, %v3490
        %v3501 = vpack.c.b16 %v2065, %v3491
        %vm3502 = vcmask 1046528
        %v3503 = vrot.slane %v3492, 1
        %v3504 = vrot.slane %v2086, 1
        %v3505 = vsel %vm3502, %v3503, %v3504
        %v3506 = vrot.slane %v3493, 1
        %v3507 = vrot.slane %v2087, 1
        %v3508 = vsel %vm3502, %v3506, %v3507
        %v3509 = vrot.slane %v3494, 1
        %v3510 = vrot.slane %v2088, 1
        %v3511 = vsel %vm3502, %v3509, %v3510
        %v3512 = vrot.slane %v3495, 1
        %v3513 = vrot.slane %v2089, 1
        %v3514 = vsel %vm3502, %v3512, %v3513
        %v3515 = vrot.slane %v3496, 1
        %v3516 = vrot.slane %v2090, 1
        %v3517 = vsel %vm3502, %v3515, %v3516
        %v3518 = vrot.slane %v3497, 1
        %v3519 = vrot.slane %v2091, 1
        %v3520 = vsel %vm3502, %v3518, %v3519
        %v3521 = vrot.slane %v3498, 1
        %v3522 = vrot.slane %v2092, 1
        %v3523 = vsel %vm3502, %v3521, %v3522
        %v3524 = vrot.slane %v3499, 1
        %v3525 = vrot.slane %v2093, 1
        %v3526 = vsel %vm3502, %v3524, %v3525
        %v3527 = vrot.slane %v3500, 1
        %v3528 = vrot.slane %v2094, 1
        %v3529 = vsel %vm3502, %v3527, %v3528
        %v3530 = vrot.slane %v3501, 1
        %v3531 = vrot.slane %v2095, 1
        %v3532 = vsel %vm3502, %v3530, %v3531
        %v3703 = vunpack.c.l.b16 %v3317
        %v3704 = vunpack.c.h.b16 %v3317
        %v3705 = vunpack.c.l.b16 %v3318
        %v3706 = vunpack.c.h.b16 %v3318
        %v3707 = vunpack.c.l.b16 %v3319
        %v3708 = vunpack.c.h.b16 %v3319
        %v3709 = vunpack.c.l.b16 %v3320
        %v3710 = vunpack.c.h.b16 %v3320
        %v3711 = vunpack.c.l.b16 %v3321
        %v3712 = vunpack.c.h.b16 %v3321
        %v3713 = vunpack.c.l.b16 %v3322
        %v3714 = vunpack.c.h.b16 %v3322
        %v3715 = vunpack.c.l.b16 %v3323
        %v3716 = vunpack.c.h.b16 %v3323
        %v3717 = vunpack.c.l.b16 %v3324
        %v3718 = vunpack.c.h.b16 %v3324
        %v3719 = vunpack.c.l.b16 %v3325
        %v3720 = vunpack.c.h.b16 %v3325
        %v3721 = vunpack.c.l.b16 %v3326
        %v3722 = vunpack.c.h.b16 %v3326
        %v3723 = vunpack.c.l.b16 %v3327
        %v3724 = vunpack.c.h.b16 %v3327
        %v3725 = vunpack.c.l.b16 %v3328
        %v3726 = vunpack.c.h.b16 %v3328
        %v3727 = vunpack.c.l.b16 %v3329
        %v3728 = vunpack.c.h.b16 %v3329
        %v3729 = vunpack.c.l.b16 %v3330
        %v3730 = vunpack.c.h.b16 %v3330
        %v3731 = vunpack.c.l.b16 %v3331
        %v3732 = vunpack.c.h.b16 %v3331
        %v3733 = vunpack.c.l.b16 %v3332
        %v3734 = vunpack.c.h.b16 %v3332
        %v3735 = vunpack.c.l.b16 %v3333
        %v3736 = vunpack.c.h.b16 %v3333
        %v3737 = vunpack.c.l.b16 %v3334
        %v3738 = vunpack.c.h.b16 %v3334
        %v3739 = vunpack.c.l.b16 %v3335
        %v3740 = vunpack.c.h.b16 %v3335
        %v3741 = vunpack.c.l.b16 %v3336
        %v3742 = vunpack.c.h.b16 %v3336
        %v3743 = vunpack.c.l.b16 %v3337
        %v3744 = vunpack.c.h.b16 %v3337
        %v3745 = vunpack.c.l.b16 %v3338
        %v3746 = vunpack.c.h.b16 %v3338
        %v3747 = vunpack.c.l.b16 %v3339
        %v3748 = vunpack.c.h.b16 %v3339
        %v3749 = vunpack.c.l.b16 %v3340
        %v3750 = vunpack.c.h.b16 %v3340
        %v3751 = vunpack.c.l.b16 %v3341
        %v3752 = vunpack.c.h.b16 %v3341
        %v3753 = vunpack.c.l.b16 %v3342
        %v3754 = vunpack.c.h.b16 %v3342
        %v3755 = vunpack.c.l.b16 %v3343
        %v3756 = vunpack.c.h.b16 %v3343
        %v3757 = vunpack.c.l.b16 %v3344
        %v3758 = vunpack.c.h.b16 %v3344
        %v3759 = vunpack.c.l.b16 %v3345
        %v3760 = vunpack.c.h.b16 %v3345
        %v3761 = vunpack.c.l.b16 %v3346
        %v3762 = vunpack.c.h.b16 %v3346
        %v3763 = vunpack.c.l.b16 %v3347
        %v3764 = vunpack.c.h.b16 %v3347
        %v3765 = vunpack.c.l.b16 %v3348
        %v3766 = vunpack.c.h.b16 %v3348
        %v3767 = vunpack.c.l.b16 %v3349
        %v3768 = vunpack.c.h.b16 %v3349
        %v3769 = vunpack.c.l.b16 %v3350
        %v3770 = vunpack.c.h.b16 %v3350
        %v3771 = vunpack.c.l.b16 %v3351
        %v3772 = vunpack.c.h.b16 %v3351
        %v3773 = vunpack.c.l.b16 %v3352
        %v3774 = vunpack.c.h.b16 %v3352
        %v3775 = vunpack.c.l.b16 %v3353
        %v3776 = vunpack.c.h.b16 %v3353
        %v3777 = vunpack.c.l.b16 %v3354
        %v3778 = vunpack.c.h.b16 %v3354
        %v3779 = vunpack.c.l.b16 %v3355
        %v3780 = vunpack.c.h.b16 %v3355
        %v3781 = vunpack.c.l.b16 %v3356
        %v3782 = vunpack.c.h.b16 %v3356
        %v3783 = vunpack.c.l.b16 %v3357
        %v3784 = vunpack.c.h.b16 %v3357
        %v3785 = vunpack.c.l.b16 %v3358
        %v3786 = vunpack.c.h.b16 %v3358
        %v3787 = vunpack.c.l.b16 %v3359
        %v3788 = vunpack.c.h.b16 %v3359
        %v3789 = vunpack.c.l.b16 %v3360
        %v3790 = vunpack.c.h.b16 %v3360
        %v3791 = vunpack.c.l.b16 %v3361
        %v3792 = vunpack.c.h.b16 %v3361
        %v3793 = vunpack.c.l.b16 %v3362
        %v3794 = vunpack.c.h.b16 %v3362
        %v3795 = vunpack.c.l.b16 %v3363
        %v3796 = vunpack.c.h.b16 %v3363
        %v3797 = vunpack.c.l.b16 %v3364
        %v3798 = vunpack.c.h.b16 %v3364
        %v3799 = vunpack.c.l.b16 %v3365
        %v3800 = vunpack.c.h.b16 %v3365
        %v3801 = vunpack.c.l.b16 %v3366
        %v3802 = vunpack.c.h.b16 %v3366
        %v3803 = vunpack.c.l.b16 %v3367
        %v3804 = vunpack.c.h.b16 %v3367
        %v3805 = vunpack.c.l.b16 %v3368
        %v3806 = vunpack.c.h.b16 %v3368
        %v3807 = vunpack.c.l.b16 %v3369
        %v3808 = vunpack.c.h.b16 %v3369
        %v3809 = vunpack.c.l.b16 %v3370
        %v3810 = vunpack.c.h.b16 %v3370
        %v3811 = vunpack.c.l.b16 %v3371
        %v3812 = vunpack.c.h.b16 %v3371
        %v3813 = vunpack.c.l.b16 %v3372
        %v3814 = vunpack.c.h.b16 %v3372
        %v3815 = vunpack.c.l.b16 %v3373
        %v3816 = vunpack.c.h.b16 %v3373
        %v3817 = vunpack.c.l.b16 %v3374
        %v3818 = vunpack.c.h.b16 %v3374
        %v3819 = vunpack.c.l.b16 %v3375
        %v3820 = vunpack.c.h.b16 %v3375
        %v3821 = vunpack.c.l.b16 %v3376
        %v3822 = vunpack.c.h.b16 %v3376
        %v3823 = vunpack.c.l.b16 %v3377
        %v3824 = vunpack.c.h.b16 %v3377
        %v3825 = vunpack.c.l.b16 %v3378
        %v3826 = vunpack.c.h.b16 %v3378
        %v3827 = vunpack.c.l.b16 %v3379
        %v3828 = vunpack.c.h.b16 %v3379
        %v3829 = vunpack.c.l.b16 %v3380
        %v3830 = vunpack.c.h.b16 %v3380
        %v3831 = vunpack.c.l.b16 %v3381
        %v3832 = vunpack.c.h.b16 %v3381
        %v3833 = vunpack.c.l.b16 %v3382
        %v3834 = vunpack.c.h.b16 %v3382
        %v3835 = vunpack.c.l.b16 %v3383
        %v3836 = vunpack.c.h.b16 %v3383
        %v3837 = vunpack.c.l.b16 %v3384
        %v3838 = vunpack.c.h.b16 %v3384
        %v3839 = vunpack.c.l.b16 %v3385
        %v3840 = vunpack.c.h.b16 %v3385
        %v3841 = vunpack.c.l.b16 %v3386
        %v3842 = vunpack.c.h.b16 %v3386
        %v3843 = vunpack.c.l.b16 %v3387
        %v3844 = vunpack.c.h.b16 %v3387
        %v3845 = vunpack.c.l.b16 %v3388
        %v3846 = vunpack.c.h.b16 %v3388
        %v3847 = vunpack.c.l.b16 %v3389
        %v3848 = vunpack.c.h.b16 %v3389
        %v3849 = vunpack.c.l.b16 %v3390
        %v3850 = vunpack.c.h.b16 %v3390
        %v3851 = vunpack.c.l.b16 %v3391
        %v3852 = vunpack.c.h.b16 %v3391
        %v3853 = vunpack.c.l.b16 %v3392
        %v3854 = vunpack.c.h.b16 %v3392
        %v3855 = vunpack.c.l.b16 %v3393
        %v3856 = vunpack.c.h.b16 %v3393
        %v3857 = vunpack.c.l.b16 %v3394
        %v3858 = vunpack.c.h.b16 %v3394
        %v3859 = vunpack.c.l.b16 %v3395
        %v3860 = vunpack.c.h.b16 %v3395
        %v3861 = vunpack.c.l.b16 %v3396
        %v3862 = vunpack.c.h.b16 %v3396
        %v3863 = vunpack.c.l.b16 %v3397
        %v3864 = vunpack.c.h.b16 %v3397
        %v3865 = vunpack.c.l.b16 %v3398
        %v3866 = vunpack.c.h.b16 %v3398
        %v3867 = vunpack.c.l.b16 %v3399
        %v3868 = vunpack.c.h.b16 %v3399
        %v3869 = vunpack.c.l.b16 %v3400
        %v3870 = vunpack.c.h.b16 %v3400
        %v3871 = vunpack.c.l.b16 %v3401
        %v3872 = vunpack.c.h.b16 %v3401
        %v3873 = vunpack.c.l.b16 %v3402
        %v3874 = vunpack.c.h.b16 %v3402
        %v3875 = vunpack.c.l.b16 %v3403
        %v3876 = vunpack.c.h.b16 %v3403
        %v3877 = vunpack.c.l.b16 %v3404
        %v3878 = vunpack.c.h.b16 %v3404
        %v3879 = vunpack.c.l.b16 %v3405
        %v3880 = vunpack.c.h.b16 %v3405
        %v3881 = vunpack.c.l.b16 %v3406
        %v3882 = vunpack.c.h.b16 %v3406
        %v3883 = vunpack.c.l.b16 %v3407
        %v3884 = vunpack.c.h.b16 %v3407
        %v3885 = vunpack.c.l.b16 %v3408
        %v3886 = vunpack.c.h.b16 %v3408
        %v3887 = vunpack.c.l.b16 %v3409
        %v3888 = vunpack.c.h.b16 %v3409
        %v3889 = vunpack.c.l.b16 %v3410
        %v3890 = vunpack.c.h.b16 %v3410
        %v3891 = vunpack.c.l.b16 %v3411
        %v3892 = vunpack.c.h.b16 %v3411
        %v3893 = vunpack.c.l.b16 %v3412
        %v3894 = vunpack.c.h.b16 %v3412
        %v3895 = vunpack.c.l.b16 %v3413
        %v3896 = vunpack.c.h.b16 %v3413
        %v3897 = vunpack.c.l.b16 %v3414
        %v3898 = vunpack.c.h.b16 %v3414
        %v3899 = vunpack.c.l.b16 %v3415
        %v3900 = vunpack.c.h.b16 %v3415
        %v3901 = vunpack.c.l.b16 %v3416
        %v3902 = vunpack.c.h.b16 %v3416
        %v3903 = vunpack.c.l.b16 %v3417
        %v3904 = vunpack.c.h.b16 %v3417
        %v3905 = vunpack.c.l.b16 %v3418
        %v3906 = vunpack.c.h.b16 %v3418
        %v3907 = vunpack.c.l.b16 %v3419
        %v3908 = vunpack.c.h.b16 %v3419
        %v3909 = vunpack.c.l.b16 %v3420
        %v3910 = vunpack.c.h.b16 %v3420
        %v3911 = vunpack.c.l.b16 %v3421
        %v3912 = vunpack.c.h.b16 %v3421
        %v3913 = vunpack.c.l.b16 %v3422
        %v3914 = vunpack.c.h.b16 %v3422
        %v3915 = vunpack.c.l.b16 %v3423
        %v3916 = vunpack.c.h.b16 %v3423
        %v3917 = vunpack.c.l.b16 %v3424
        %v3918 = vunpack.c.h.b16 %v3424
        %v3919 = vunpack.c.l.b16 %v3425
        %v3920 = vunpack.c.h.b16 %v3425
        %v3921 = vunpack.c.l.b16 %v3426
        %v3922 = vunpack.c.h.b16 %v3426
        %v3923 = vunpack.c.l.b16 %v3427
        %v3924 = vunpack.c.h.b16 %v3427
        %v3925 = vunpack.c.l.b16 %v3428
        %v3926 = vunpack.c.h.b16 %v3428
        %v3927 = vunpack.c.l.b16 %v3429
        %v3928 = vunpack.c.h.b16 %v3429
        %v3929 = vunpack.c.l.b16 %v3430
        %v3930 = vunpack.c.h.b16 %v3430
        %v3931 = vunpack.c.l.b16 %v3431
        %v3932 = vunpack.c.h.b16 %v3431
        %v3933 = vunpack.c.l.b16 %v3432
        %v3934 = vunpack.c.h.b16 %v3432
        %v3935 = vunpack.c.l.b16 %v3433
        %v3936 = vunpack.c.h.b16 %v3433
        %v3937 = vunpack.c.l.b16 %v3434
        %v3938 = vunpack.c.h.b16 %v3434
        %v3939 = vunpack.c.l.b16 %v3435
        %v3940 = vunpack.c.h.b16 %v3435
        %v3941 = vunpack.c.l.b16 %v3436
        %v3942 = vunpack.c.h.b16 %v3436
        %v3943 = vunpack.c.l.b16 %v3437
        %v3944 = vunpack.c.h.b16 %v3437
        %v3945 = vunpack.c.l.b16 %v3438
        %v3946 = vunpack.c.h.b16 %v3438
        %v3947 = vunpack.c.l.b16 %v3439
        %v3948 = vunpack.c.h.b16 %v3439
        %v3949 = vunpack.c.l.b16 %v3440
        %v3950 = vunpack.c.h.b16 %v3440
        %v3951 = vunpack.c.l.b16 %v3441
        %v3952 = vunpack.c.h.b16 %v3441
        %v3953 = vunpack.c.l.b16 %v3442
        %v3954 = vunpack.c.h.b16 %v3442
        %v3955 = vunpack.c.l.b16 %v3443
        %v3956 = vunpack.c.h.b16 %v3443
        %v3957 = vunpack.c.l.b16 %v3444
        %v3958 = vunpack.c.h.b16 %v3444
        %v3959 = vunpack.c.l.b16 %v3445
        %v3960 = vunpack.c.h.b16 %v3445
        %v3961 = vunpack.c.l.b16 %v3446
        %v3962 = vunpack.c.h.b16 %v3446
        %v3963 = vunpack.c.l.b16 %v3447
        %v3964 = vunpack.c.h.b16 %v3447
        %v3965 = vunpack.c.l.b16 %v3448
        %v3966 = vunpack.c.h.b16 %v3448
        %v3967 = vunpack.c.l.b16 %v3449
        %v3968 = vunpack.c.h.b16 %v3449
        %v3969 = vunpack.c.l.b16 %v3450
        %v3970 = vunpack.c.h.b16 %v3450
        %v3971 = vunpack.c.l.b16 %v3451
        %v3972 = vunpack.c.h.b16 %v3451
        %v3973 = vunpack.c.l.b16 %v3452
        %v3974 = vunpack.c.h.b16 %v3452
        %v3975 = vunpack.c.l.b16 %v3453
        %v3976 = vunpack.c.h.b16 %v3453
        %v3977 = vunpack.c.l.b16 %v3454
        %v3978 = vunpack.c.h.b16 %v3454
        %v3979 = vunpack.c.l.b16 %v3455
        %v3980 = vunpack.c.h.b16 %v3455
        %v3981 = vunpack.c.l.b16 %v3456
        %v3982 = vunpack.c.h.b16 %v3456
        %v3983 = vunpack.c.l.b16 %v3457
        %v3984 = vunpack.c.h.b16 %v3457
        %v3985 = vunpack.c.l.b16 %v3458
        %v3986 = vunpack.c.h.b16 %v3458
        %v3987 = vunpack.c.l.b16 %v3459
        %v3988 = vunpack.c.h.b16 %v3459
        %v3989 = vunpack.c.l.b16 %v3460
        %v3990 = vunpack.c.h.b16 %v3460
        %v3991 = vunpack.c.l.b16 %v3461
        %v3992 = vunpack.c.h.b16 %v3461
        %v3993 = vunpack.c.l.b16 %v3462
        %v3994 = vunpack.c.h.b16 %v3462
        %v3995 = vunpack.c.l.b16 %v3463
        %v3996 = vunpack.c.h.b16 %v3463
        %v3997 = vunpack.c.l.b16 %v3464
        %v3998 = vunpack.c.h.b16 %v3464
        %v3999 = vunpack.c.l.b16 %v3465
        %v4000 = vunpack.c.h.b16 %v3465
        %v4001 = vunpack.c.l.b16 %v3466
        %v4002 = vunpack.c.h.b16 %v3466
        %v4003 = vunpack.c.l.b16 %v3467
        %v4004 = vunpack.c.h.b16 %v3467
        %v4005 = vunpack.c.l.b16 %v3468
        %v4006 = vunpack.c.h.b16 %v3468
        %v4007 = vunpack.c.l.b16 %v3469
        %v4008 = vunpack.c.h.b16 %v3469
        %v4009 = vunpack.c.l.b16 %v3470
        %v4010 = vunpack.c.h.b16 %v3470
        %v4011 = vunpack.c.l.b16 %v3471
        %v4012 = vunpack.c.h.b16 %v3471
        %v4013 = vunpack.c.l.b16 %v3472
        %v4014 = vunpack.c.h.b16 %v3472
        %v4015 = vunpack.c.l.b16 %v3473
        %v4016 = vunpack.c.h.b16 %v3473
        %v4017 = vunpack.c.l.b16 %v3474
        %v4018 = vunpack.c.h.b16 %v3474
        %v4019 = vunpack.c.l.b16 %v3475
        %v4020 = vunpack.c.h.b16 %v3475
        %v4021 = vunpack.c.l.b16 %v3476
        %v4022 = vunpack.c.h.b16 %v3476
        %v4023 = vpack.c.b16 %v3705, %v3703
        %v4024 = vpack.c.b16 %v3706, %v3704
        %v4025 = vpack.c.b16 %v3709, %v3707
        %v4026 = vpack.c.b16 %v3710, %v3708
        %v4027 = vpack.c.b16 %v3713, %v3711
        %v4028 = vpack.c.b16 %v3714, %v3712
        %v4029 = vpack.c.b16 %v3717, %v3715
        %v4030 = vpack.c.b16 %v3718, %v3716
        %v4031 = vpack.c.b16 %v3721, %v3719
        %v4032 = vpack.c.b16 %v3722, %v3720
        %v4033 = vpack.c.b16 %v3725, %v3723
        %v4034 = vpack.c.b16 %v3726, %v3724
        %v4035 = vpack.c.b16 %v3729, %v3727
        %v4036 = vpack.c.b16 %v3730, %v3728
        %v4037 = vpack.c.b16 %v3733, %v3731
        %v4038 = vpack.c.b16 %v3734, %v3732
        %v4039 = vpack.c.b16 %v3737, %v3735
        %v4040 = vpack.c.b16 %v3738, %v3736
        %v4041 = vpack.c.b16 %v3741, %v3739
        %v4042 = vpack.c.b16 %v3742, %v3740
        %v4043 = vpack.c.b16 %v3745, %v3743
        %v4044 = vpack.c.b16 %v3746, %v3744
        %v4045 = vpack.c.b16 %v3749, %v3747
        %v4046 = vpack.c.b16 %v3750, %v3748
        %v4047 = vpack.c.b16 %v3753, %v3751
        %v4048 = vpack.c.b16 %v3754, %v3752
        %v4049 = vpack.c.b16 %v3757, %v3755
        %v4050 = vpack.c.b16 %v3758, %v3756
        %v4051 = vpack.c.b16 %v3761, %v3759
        %v4052 = vpack.c.b16 %v3762, %v3760
        %v4053 = vpack.c.b16 %v3765, %v3763
        %v4054 = vpack.c.b16 %v3766, %v3764
        %v4055 = vpack.c.b16 %v3769, %v3767
        %v4056 = vpack.c.b16 %v3770, %v3768
        %v4057 = vpack.c.b16 %v3773, %v3771
        %v4058 = vpack.c.b16 %v3774, %v3772
        %v4059 = vpack.c.b16 %v3777, %v3775
        %v4060 = vpack.c.b16 %v3778, %v3776
        %v4061 = vpack.c.b16 %v3781, %v3779
        %v4062 = vpack.c.b16 %v3782, %v3780
        %v4063 = vpack.c.b16 %v3785, %v3783
        %v4064 = vpack.c.b16 %v3786, %v3784
        %v4065 = vpack.c.b16 %v3789, %v3787
        %v4066 = vpack.c.b16 %v3790, %v3788
        %v4067 = vpack.c.b16 %v3793, %v3791
        %v4068 = vpack.c.b16 %v3794, %v3792
        %v4069 = vpack.c.b16 %v3797, %v3795
        %v4070 = vpack.c.b16 %v3798, %v3796
        %v4071 = vpack.c.b16 %v3801, %v3799
        %v4072 = vpack.c.b16 %v3802, %v3800
        %v4073 = vpack.c.b16 %v3805, %v3803
        %v4074 = vpack.c.b16 %v3806, %v3804
        %v4075 = vpack.c.b16 %v3809, %v3807
        %v4076 = vpack.c.b16 %v3810, %v3808
        %v4077 = vpack.c.b16 %v3813, %v3811
        %v4078 = vpack.c.b16 %v3814, %v3812
        %v4079 = vpack.c.b16 %v3817, %v3815
        %v4080 = vpack.c.b16 %v3818, %v3816
        %v4081 = vpack.c.b16 %v3821, %v3819
        %v4082 = vpack.c.b16 %v3822, %v3820
        %v4083 = vpack.c.b16 %v3825, %v3823
        %v4084 = vpack.c.b16 %v3826, %v3824
        %v4085 = vpack.c.b16 %v3829, %v3827
        %v4086 = vpack.c.b16 %v3830, %v3828
        %v4087 = vpack.c.b16 %v3833, %v3831
        %v4088 = vpack.c.b16 %v3834, %v3832
        %v4089 = vpack.c.b16 %v3837, %v3835
        %v4090 = vpack.c.b16 %v3838, %v3836
        %v4091 = vpack.c.b16 %v3841, %v3839
        %v4092 = vpack.c.b16 %v3842, %v3840
        %v4093 = vpack.c.b16 %v3845, %v3843
        %v4094 = vpack.c.b16 %v3846, %v3844
        %v4095 = vpack.c.b16 %v3849, %v3847
        %v4096 = vpack.c.b16 %v3850, %v3848
        %v4097 = vpack.c.b16 %v3853, %v3851
        %v4098 = vpack.c.b16 %v3854, %v3852
        %v4099 = vpack.c.b16 %v3857, %v3855
        %v4100 = vpack.c.b16 %v3858, %v3856
        %v4101 = vpack.c.b16 %v3861, %v3859
        %v4102 = vpack.c.b16 %v3862, %v3860
        %v4103 = vpack.c.b16 %v3865, %v3863
        %v4104 = vpack.c.b16 %v3866, %v3864
        %v4105 = vpack.c.b16 %v3869, %v3867
        %v4106 = vpack.c.b16 %v3870, %v3868
        %v4107 = vpack.c.b16 %v3873, %v3871
        %v4108 = vpack.c.b16 %v3874, %v3872
        %v4109 = vpack.c.b16 %v3877, %v3875
        %v4110 = vpack.c.b16 %v3878, %v3876
        %v4111 = vpack.c.b16 %v3881, %v3879
        %v4112 = vpack.c.b16 %v3882, %v3880
        %v4113 = vpack.c.b16 %v3885, %v3883
        %v4114 = vpack.c.b16 %v3886, %v3884
        %v4115 = vpack.c.b16 %v3889, %v3887
        %v4116 = vpack.c.b16 %v3890, %v3888
        %v4117 = vpack.c.b16 %v3893, %v3891
        %v4118 = vpack.c.b16 %v3894, %v3892
        %v4119 = vpack.c.b16 %v3897, %v3895
        %v4120 = vpack.c.b16 %v3898, %v3896
        %v4121 = vpack.c.b16 %v3901, %v3899
        %v4122 = vpack.c.b16 %v3902, %v3900
        %v4123 = vpack.c.b16 %v3905, %v3903
        %v4124 = vpack.c.b16 %v3906, %v3904
        %v4125 = vpack.c.b16 %v3909, %v3907
        %v4126 = vpack.c.b16 %v3910, %v3908
        %v4127 = vpack.c.b16 %v3913, %v3911
        %v4128 = vpack.c.b16 %v3914, %v3912
        %v4129 = vpack.c.b16 %v3917, %v3915
        %v4130 = vpack.c.b16 %v3918, %v3916
        %v4131 = vpack.c.b16 %v3921, %v3919
        %v4132 = vpack.c.b16 %v3922, %v3920
        %v4133 = vpack.c.b16 %v3925, %v3923
        %v4134 = vpack.c.b16 %v3926, %v3924
        %v4135 = vpack.c.b16 %v3929, %v3927
        %v4136 = vpack.c.b16 %v3930, %v3928
        %v4137 = vpack.c.b16 %v3933, %v3931
        %v4138 = vpack.c.b16 %v3934, %v3932
        %v4139 = vpack.c.b16 %v3937, %v3935
        %v4140 = vpack.c.b16 %v3938, %v3936
        %v4141 = vpack.c.b16 %v3941, %v3939
        %v4142 = vpack.c.b16 %v3942, %v3940
        %v4143 = vpack.c.b16 %v3945, %v3943
        %v4144 = vpack.c.b16 %v3946, %v3944
        %v4145 = vpack.c.b16 %v3949, %v3947
        %v4146 = vpack.c.b16 %v3950, %v3948
        %v4147 = vpack.c.b16 %v3953, %v3951
        %v4148 = vpack.c.b16 %v3954, %v3952
        %v4149 = vpack.c.b16 %v3957, %v3955
        %v4150 = vpack.c.b16 %v3958, %v3956
        %v4151 = vpack.c.b16 %v3961, %v3959
        %v4152 = vpack.c.b16 %v3962, %v3960
        %v4153 = vpack.c.b16 %v3965, %v3963
        %v4154 = vpack.c.b16 %v3966, %v3964
        %v4155 = vpack.c.b16 %v3969, %v3967
        %v4156 = vpack.c.b16 %v3970, %v3968
        %v4157 = vpack.c.b16 %v3973, %v3971
        %v4158 = vpack.c.b16 %v3974, %v3972
        %v4159 = vpack.c.b16 %v3977, %v3975
        %v4160 = vpack.c.b16 %v3978, %v3976
        %v4161 = vpack.c.b16 %v3981, %v3979
        %v4162 = vpack.c.b16 %v3982, %v3980
        %v4163 = vpack.c.b16 %v3985, %v3983
        %v4164 = vpack.c.b16 %v3986, %v3984
        %v4165 = vpack.c.b16 %v3989, %v3987
        %v4166 = vpack.c.b16 %v3990, %v3988
        %v4167 = vpack.c.b16 %v3993, %v3991
        %v4168 = vpack.c.b16 %v3994, %v3992
        %v4169 = vpack.c.b16 %v3997, %v3995
        %v4170 = vpack.c.b16 %v3998, %v3996
        %v4171 = vpack.c.b16 %v4001, %v3999
        %v4172 = vpack.c.b16 %v4002, %v4000
        %v4173 = vpack.c.b16 %v4005, %v4003
        %v4174 = vpack.c.b16 %v4006, %v4004
        %v4175 = vpack.c.b16 %v4009, %v4007
        %v4176 = vpack.c.b16 %v4010, %v4008
        %v4177 = vpack.c.b16 %v4013, %v4011
        %v4178 = vpack.c.b16 %v4014, %v4012
        %v4179 = vpack.c.b16 %v4017, %v4015
        %v4180 = vpack.c.b16 %v4018, %v4016
        %v4181 = vpack.c.b16 %v4021, %v4019
        %v4182 = vpack.c.b16 %v4022, %v4020
        %4343 = vmatpush.bf16.msra.mxu0 %v4037
        %4344 = vmatpush.bf16.msra.mxu0 %v4035
        %4345 = vmatpush.bf16.msra.mxu0 %v4033
        %4346 = vmatpush.bf16.msra.mxu0 %v4031
        %4347 = vmatpush.bf16.msra.mxu0 %v4029
        %4348 = vmatpush.bf16.msra.mxu0 %v4027
        %4349 = vmatpush.bf16.msra.mxu0 %v4025
        %4350 = vmatpush.bf16.msra.mxu0 %v4023
        %4351 = vmatmul.bf16.gmra.mxu0 %v3505
        %v4352 = vpop.f32.mrf.mxu0
        %v4353 = vadd.f32 0.0, %v4352
        %v4354 = vpop.f32.mrf.mxu0
        %v4355 = vadd.f32 0.0, %v4354
        %4356 = vdwg.mxu0
        %4357 = vmatpush.bf16.msra.mxu0 %v4053
        %4358 = vmatpush.bf16.msra.mxu0 %v4051
        %4359 = vmatpush.bf16.msra.mxu0 %v4049
        %4360 = vmatpush.bf16.msra.mxu0 %v4047
        %4361 = vmatpush.bf16.msra.mxu0 %v4045
        %4362 = vmatpush.bf16.msra.mxu0 %v4043
        %4363 = vmatpush.bf16.msra.mxu0 %v4041
        %4364 = vmatpush.bf16.msra.mxu0 %v4039
        %4365 = vmatmul.bf16.gmra.mxu0 %v3508
        %v4366 = vpop.f32.mrf.mxu0
        %v4367 = vadd.f32 %v4353, %v4366
        %v4368 = vpop.f32.mrf.mxu0
        %v4369 = vadd.f32 %v4355, %v4368
        %4370 = vdwg.mxu0
        %4371 = vmatpush.bf16.msra.mxu0 %v4069
        %4372 = vmatpush.bf16.msra.mxu0 %v4067
        %4373 = vmatpush.bf16.msra.mxu0 %v4065
        %4374 = vmatpush.bf16.msra.mxu0 %v4063
        %4375 = vmatpush.bf16.msra.mxu0 %v4061
        %4376 = vmatpush.bf16.msra.mxu0 %v4059
        %4377 = vmatpush.bf16.msra.mxu0 %v4057
        %4378 = vmatpush.bf16.msra.mxu0 %v4055
        %4379 = vmatmul.bf16.gmra.mxu0 %v3511
        %v4380 = vpop.f32.mrf.mxu0
        %v4381 = vadd.f32 %v4367, %v4380
        %v4382 = vpop.f32.mrf.mxu0
        %v4383 = vadd.f32 %v4369, %v4382
        %4384 = vdwg.mxu0
        %4385 = vmatpush.bf16.msra.mxu0 %v4085
        %4386 = vmatpush.bf16.msra.mxu0 %v4083
        %4387 = vmatpush.bf16.msra.mxu0 %v4081
        %4388 = vmatpush.bf16.msra.mxu0 %v4079
        %4389 = vmatpush.bf16.msra.mxu0 %v4077
        %4390 = vmatpush.bf16.msra.mxu0 %v4075
        %4391 = vmatpush.bf16.msra.mxu0 %v4073
        %4392 = vmatpush.bf16.msra.mxu0 %v4071
        %4393 = vmatmul.bf16.gmra.mxu0 %v3514
        %v4394 = vpop.f32.mrf.mxu0
        %v4395 = vadd.f32 %v4381, %v4394
        %v4396 = vpop.f32.mrf.mxu0
        %v4397 = vadd.f32 %v4383, %v4396
        %4398 = vdwg.mxu0
        %4399 = vmatpush.bf16.msra.mxu0 %v4101
        %4400 = vmatpush.bf16.msra.mxu0 %v4099
        %4401 = vmatpush.bf16.msra.mxu0 %v4097
        %4402 = vmatpush.bf16.msra.mxu0 %v4095
        %4403 = vmatpush.bf16.msra.mxu0 %v4093
        %4404 = vmatpush.bf16.msra.mxu0 %v4091
        %4405 = vmatpush.bf16.msra.mxu0 %v4089
        %4406 = vmatpush.bf16.msra.mxu0 %v4087
        %4407 = vmatmul.bf16.gmra.mxu0 %v3517
        %v4408 = vpop.f32.mrf.mxu0
        %v4409 = vadd.f32 %v4395, %v4408
        %v4410 = vpop.f32.mrf.mxu0
        %v4411 = vadd.f32 %v4397, %v4410
        %4412 = vdwg.mxu0
        %4413 = vmatpush.bf16.msra.mxu0 %v4117
        %4414 = vmatpush.bf16.msra.mxu0 %v4115
        %4415 = vmatpush.bf16.msra.mxu0 %v4113
        %4416 = vmatpush.bf16.msra.mxu0 %v4111
        %4417 = vmatpush.bf16.msra.mxu0 %v4109
        %4418 = vmatpush.bf16.msra.mxu0 %v4107
        %4419 = vmatpush.bf16.msra.mxu0 %v4105
        %4420 = vmatpush.bf16.msra.mxu0 %v4103
        %4421 = vmatmul.bf16.gmra.mxu0 %v3520
        %v4422 = vpop.f32.mrf.mxu0
        %v4423 = vadd.f32 %v4409, %v4422
        %v4424 = vpop.f32.mrf.mxu0
        %v4425 = vadd.f32 %v4411, %v4424
        %4426 = vdwg.mxu0
        %4427 = vmatpush.bf16.msra.mxu0 %v4133
        %4428 = vmatpush.bf16.msra.mxu0 %v4131
        %4429 = vmatpush.bf16.msra.mxu0 %v4129
        %4430 = vmatpush.bf16.msra.mxu0 %v4127
        %4431 = vmatpush.bf16.msra.mxu0 %v4125
        %4432 = vmatpush.bf16.msra.mxu0 %v4123
        %4433 = vmatpush.bf16.msra.mxu0 %v4121
        %4434 = vmatpush.bf16.msra.mxu0 %v4119
        %4435 = vmatmul.bf16.gmra.mxu0 %v3523
        %v4436 = vpop.f32.mrf.mxu0
        %v4437 = vadd.f32 %v4423, %v4436
        %v4438 = vpop.f32.mrf.mxu0
        %v4439 = vadd.f32 %v4425, %v4438
        %4440 = vdwg.mxu0
        %4441 = vmatpush.bf16.msra.mxu0 %v4149
        %4442 = vmatpush.bf16.msra.mxu0 %v4147
        %4443 = vmatpush.bf16.msra.mxu0 %v4145
        %4444 = vmatpush.bf16.msra.mxu0 %v4143
        %4445 = vmatpush.bf16.msra.mxu0 %v4141
        %4446 = vmatpush.bf16.msra.mxu0 %v4139
        %4447 = vmatpush.bf16.msra.mxu0 %v4137
        %4448 = vmatpush.bf16.msra.mxu0 %v4135
        %4449 = vmatmul.bf16.gmra.mxu0 %v3526
        %v4450 = vpop.f32.mrf.mxu0
        %v4451 = vadd.f32 %v4437, %v4450
        %v4452 = vpop.f32.mrf.mxu0
        %v4453 = vadd.f32 %v4439, %v4452
        %4454 = vdwg.mxu0
        %4455 = vmatpush.bf16.msra.mxu0 %v4165
        %4456 = vmatpush.bf16.msra.mxu0 %v4163
        %4457 = vmatpush.bf16.msra.mxu0 %v4161
        %4458 = vmatpush.bf16.msra.mxu0 %v4159
        %4459 = vmatpush.bf16.msra.mxu0 %v4157
        %4460 = vmatpush.bf16.msra.mxu0 %v4155
        %4461 = vmatpush.bf16.msra.mxu0 %v4153
        %4462 = vmatpush.bf16.msra.mxu0 %v4151
        %4463 = vmatmul.bf16.gmra.mxu0 %v3529
        %v4464 = vpop.f32.mrf.mxu0
        %v4465 = vadd.f32 %v4451, %v4464
        %v4466 = vpop.f32.mrf.mxu0
        %v4467 = vadd.f32 %v4453, %v4466
        %4468 = vdwg.mxu0
        %4469 = vmatpush.bf16.msra.mxu0 %v4181
        %4470 = vmatpush.bf16.msra.mxu0 %v4179
        %4471 = vmatpush.bf16.msra.mxu0 %v4177
        %4472 = vmatpush.bf16.msra.mxu0 %v4175
        %4473 = vmatpush.bf16.msra.mxu0 %v4173
        %4474 = vmatpush.bf16.msra.mxu0 %v4171
        %4475 = vmatpush.bf16.msra.mxu0 %v4169
        %4476 = vmatpush.bf16.msra.mxu0 %v4167
        %4477 = vmatmul.bf16.gmra.mxu0 %v3532
        %v4478 = vpop.f32.mrf.mxu0
        %v4479 = vadd.f32 %v4465, %v4478
        %v4480 = vpop.f32.mrf.mxu0
        %v4481 = vadd.f32 %v4467, %v4480
        %4482 = vdwg.mxu0
        %4483 = vmatpush.bf16.msra.mxu0 %v4038
        %4484 = vmatpush.bf16.msra.mxu0 %v4036
        %4485 = vmatpush.bf16.msra.mxu0 %v4034
        %4486 = vmatpush.bf16.msra.mxu0 %v4032
        %4487 = vmatpush.bf16.msra.mxu0 %v4030
        %4488 = vmatpush.bf16.msra.mxu0 %v4028
        %4489 = vmatpush.bf16.msra.mxu0 %v4026
        %4490 = vmatpush.bf16.msra.mxu0 %v4024
        %4491 = vmatmul.bf16.gmra.mxu0 %v3505
        %v4492 = vpop.f32.mrf.mxu0
        %v4493 = vadd.f32 0.0, %v4492
        %v4494 = vpop.f32.mrf.mxu0
        %v4495 = vadd.f32 0.0, %v4494
        %4496 = vdwg.mxu0
        %4497 = vmatpush.bf16.msra.mxu0 %v4054
        %4498 = vmatpush.bf16.msra.mxu0 %v4052
        %4499 = vmatpush.bf16.msra.mxu0 %v4050
        %4500 = vmatpush.bf16.msra.mxu0 %v4048
        %4501 = vmatpush.bf16.msra.mxu0 %v4046
        %4502 = vmatpush.bf16.msra.mxu0 %v4044
        %4503 = vmatpush.bf16.msra.mxu0 %v4042
        %4504 = vmatpush.bf16.msra.mxu0 %v4040
        %4505 = vmatmul.bf16.gmra.mxu0 %v3508
        %v4506 = vpop.f32.mrf.mxu0
        %v4507 = vadd.f32 %v4493, %v4506
        %v4508 = vpop.f32.mrf.mxu0
        %v4509 = vadd.f32 %v4495, %v4508
        %4510 = vdwg.mxu0
        %4511 = vmatpush.bf16.msra.mxu0 %v4070
        %4512 = vmatpush.bf16.msra.mxu0 %v4068
        %4513 = vmatpush.bf16.msra.mxu0 %v4066
        %4514 = vmatpush.bf16.msra.mxu0 %v4064
        %4515 = vmatpush.bf16.msra.mxu0 %v4062
        %4516 = vmatpush.bf16.msra.mxu0 %v4060
        %4517 = vmatpush.bf16.msra.mxu0 %v4058
        %4518 = vmatpush.bf16.msra.mxu0 %v4056
        %4519 = vmatmul.bf16.gmra.mxu0 %v3511
        %v4520 = vpop.f32.mrf.mxu0
        %v4521 = vadd.f32 %v4507, %v4520
        %v4522 = vpop.f32.mrf.mxu0
        %v4523 = vadd.f32 %v4509, %v4522
        %4524 = vdwg.mxu0
        %4525 = vmatpush.bf16.msra.mxu0 %v4086
        %4526 = vmatpush.bf16.msra.mxu0 %v4084
        %4527 = vmatpush.bf16.msra.mxu0 %v4082
        %4528 = vmatpush.bf16.msra.mxu0 %v4080
        %4529 = vmatpush.bf16.msra.mxu0 %v4078
        %4530 = vmatpush.bf16.msra.mxu0 %v4076
        %4531 = vmatpush.bf16.msra.mxu0 %v4074
        %4532 = vmatpush.bf16.msra.mxu0 %v4072
        %4533 = vmatmul.bf16.gmra.mxu0 %v3514
        %v4534 = vpop.f32.mrf.mxu0
        %v4535 = vadd.f32 %v4521, %v4534
        %v4536 = vpop.f32.mrf.mxu0
        %v4537 = vadd.f32 %v4523, %v4536
        %4538 = vdwg.mxu0
        %4539 = vmatpush.bf16.msra.mxu0 %v4102
        %4540 = vmatpush.bf16.msra.mxu0 %v4100
        %4541 = vmatpush.bf16.msra.mxu0 %v4098
        %4542 = vmatpush.bf16.msra.mxu0 %v4096
        %4543 = vmatpush.bf16.msra.mxu0 %v4094
        %4544 = vmatpush.bf16.msra.mxu0 %v4092
        %4545 = vmatpush.bf16.msra.mxu0 %v4090
        %4546 = vmatpush.bf16.msra.mxu0 %v4088
        %4547 = vmatmul.bf16.gmra.mxu0 %v3517
        %v4548 = vpop.f32.mrf.mxu0
        %v4549 = vadd.f32 %v4535, %v4548
        %v4550 = vpop.f32.mrf.mxu0
        %v4551 = vadd.f32 %v4537, %v4550
        %4552 = vdwg.mxu0
        %4553 = vmatpush.bf16.msra.mxu0 %v4118
        %4554 = vmatpush.bf16.msra.mxu0 %v4116
        %4555 = vmatpush.bf16.msra.mxu0 %v4114
        %4556 = vmatpush.bf16.msra.mxu0 %v4112
        %4557 = vmatpush.bf16.msra.mxu0 %v4110
        %4558 = vmatpush.bf16.msra.mxu0 %v4108
        %4559 = vmatpush.bf16.msra.mxu0 %v4106
        %4560 = vmatpush.bf16.msra.mxu0 %v4104
        %4561 = vmatmul.bf16.gmra.mxu0 %v3520
        %v4562 = vpop.f32.mrf.mxu0
        %v4563 = vadd.f32 %v4549, %v4562
        %v4564 = vpop.f32.mrf.mxu0
        %v4565 = vadd.f32 %v4551, %v4564
        %4566 = vdwg.mxu0
        %4567 = vmatpush.bf16.msra.mxu0 %v4134
        %4568 = vmatpush.bf16.msra.mxu0 %v4132
        %4569 = vmatpush.bf16.msra.mxu0 %v4130
        %4570 = vmatpush.bf16.msra.mxu0 %v4128
        %4571 = vmatpush.bf16.msra.mxu0 %v4126
        %4572 = vmatpush.bf16.msra.mxu0 %v4124
        %4573 = vmatpush.bf16.msra.mxu0 %v4122
        %4574 = vmatpush.bf16.msra.mxu0 %v4120
        %4575 = vmatmul.bf16.gmra.mxu0 %v3523
        %v4576 = vpop.f32.mrf.mxu0
        %v4577 = vadd.f32 %v4563, %v4576
        %v4578 = vpop.f32.mrf.mxu0
        %v4579 = vadd.f32 %v4565, %v4578
        %4580 = vdwg.mxu0
        %4581 = vmatpush.bf16.msra.mxu0 %v4150
        %4582 = vmatpush.bf16.msra.mxu0 %v4148
        %4583 = vmatpush.bf16.msra.mxu0 %v4146
        %4584 = vmatpush.bf16.msra.mxu0 %v4144
        %4585 = vmatpush.bf16.msra.mxu0 %v4142
        %4586 = vmatpush.bf16.msra.mxu0 %v4140
        %4587 = vmatpush.bf16.msra.mxu0 %v4138
        %4588 = vmatpush.bf16.msra.mxu0 %v4136
        %4589 = vmatmul.bf16.gmra.mxu0 %v3526
        %v4590 = vpop.f32.mrf.mxu0
        %v4591 = vadd.f32 %v4577, %v4590
        %v4592 = vpop.f32.mrf.mxu0
        %v4593 = vadd.f32 %v4579, %v4592
        %4594 = vdwg.mxu0
        %4595 = vmatpush.bf16.msra.mxu0 %v4166
        %4596 = vmatpush.bf16.msra.mxu0 %v4164
        %4597 = vmatpush.bf16.msra.mxu0 %v4162
        %4598 = vmatpush.bf16.msra.mxu0 %v4160
        %4599 = vmatpush.bf16.msra.mxu0 %v4158
        %4600 = vmatpush.bf16.msra.mxu0 %v4156
        %4601 = vmatpush.bf16.msra.mxu0 %v4154
        %4602 = vmatpush.bf16.msra.mxu0 %v4152
        %4603 = vmatmul.bf16.gmra.mxu0 %v3529
        %v4604 = vpop.f32.mrf.mxu0
        %v4605 = vadd.f32 %v4591, %v4604
        %v4606 = vpop.f32.mrf.mxu0
        %v4607 = vadd.f32 %v4593, %v4606
        %4608 = vdwg.mxu0
        %4609 = vmatpush.bf16.msra.mxu0 %v4182
        %4610 = vmatpush.bf16.msra.mxu0 %v4180
        %4611 = vmatpush.bf16.msra.mxu0 %v4178
        %4612 = vmatpush.bf16.msra.mxu0 %v4176
        %4613 = vmatpush.bf16.msra.mxu0 %v4174
        %4614 = vmatpush.bf16.msra.mxu0 %v4172
        %4615 = vmatpush.bf16.msra.mxu0 %v4170
        %4616 = vmatpush.bf16.msra.mxu0 %v4168
        %4617 = vmatmul.bf16.gmra.mxu0 %v3532
        %v4618 = vpop.f32.mrf.mxu0
        %v4619 = vadd.f32 %v4605, %v4618
        %v4620 = vpop.f32.mrf.mxu0
        %v4621 = vadd.f32 %v4607, %v4620
        %4622 = vdwg.mxu0
        %v4623 = vadd.f32 %v3307, %v4479
        %v4624 = vadd.f32 %v3308, %v4619
        %v4625 = vadd.f32 %v3309, %v4481
        %v4626 = vadd.f32 %v3310, %v4621
        %4627 = vst [vmem:[%s263] sm:$0xff] %v4623
        %4628 = vst [vmem:[%s263 + $0x8] sm:$0xff] %v4624
        %4629 = vst [vmem:[%s263 + $0x10] sm:$0xff] %v4625
        %4630 = vst [vmem:[%s263 + $0x18] sm:$0xff] %v4626
        %s4631 = smul.u32 2, %s18
        %p4632 = scmp.lt.s32.totalorder %s4631, 3
        %s4633 = scalar_select %p4632, %s4631, 3
        %s4634 = smul.addr %s4633, 2
        %s4635 = smul.addr %s4634, 8
        %s4636 = scalar_lea.vmem %s5, %s4635
        // Predicated region
        $region49: #{resnet_layer_forward.1} parent=39 // pred_check
          %p4637 = pneg %p146
        $region50: #{resnet_layer_forward.1} parent=39 // pred_check_branch
          %4639 = sbr.rel (%p4637) target = $region52
        $region51: #{resnet_layer_forward.1} parent=39 // pred_region
          %s4640 = smul.u32 2, %s18
        $region52: #{resnet_layer_forward.1} parent=39 // pred_fallthru
          _
      $region40: #{resnet_layer_forward.1} parent=5 // pred_fallthru
        _
      %p4641 = scmp.le.s32.totalorder 2, %s13
      // Predicated region
      $region53: #{resnet_layer_forward.1} parent=5 // pred_check
        %p4642 = pneg %p4641
      $region54: #{resnet_layer_forward.1} parent=5 // pred_check_branch
        %4644 = sbr.rel (%p4642) target = $region56
      $region55: #{resnet_layer_forward.1} parent=5 // pred_region
        %s4645 = ssub.s32 %s13, 2
        // Predicated region
        $region57: #{resnet_layer_forward.1} parent=55 // pred_check
          %p4646 = pneg %p152
        $region58: #{resnet_layer_forward.1} parent=55 // pred_check_branch
          %4648 = sbr.rel (%p4646) target = $region60
        $region59: #{resnet_layer_forward.1} parent=55 // pred_region
          %s4649 = smul.u32 2, %s19
          %p4650 = scmp.lt.s32.totalorder %s4649, 3
          %s4651 = scalar_select %p4650, %s4649, 3
          %s4652 = smul.addr %s4651, 2
          %s4653 = smul.addr %s4652, 8
          %s4654 = scalar_lea.vmem %s5, %s4653
        $region60: #{resnet_layer_forward.1} parent=55 // pred_fallthru
          _
      $region56: #{resnet_layer_forward.1} parent=5 // pred_fallthru
        _
    $region6: #{resnet_layer_forward.1} parent=1 // loop_footer
      %s17 = sadd.s32 1, %s13
    $region7: #{resnet_layer_forward.1} parent=1 // loop_footer_branch
      %12 = sbr.rel target = $region3
    $region8: #{resnet_layer_forward.1} parent=1 // loop_exit
      _
    %4655 = vsyncpa [#allocation4], 1
    %s4656 = scalar_lea.sflag [#allocation4], 1
    %4657 = vsyncpa %s4656, 1
    %4658 = vsyncpa [#allocation6], 1

</llo_original>
